<compile_context>
chip_gen: v7x
topology: tpu7x:2x2x1
jax: 0.10.0
libtpu: 0.0.40
codegen_flags: <defaults>
</compile_context>

<pallas_src>
import functools
import numpy as np
import jax
import jax.numpy as jnp
from jax.experimental import pallas as pl
from jax.experimental.pallas import tpu as pltpu

EPS = 1e-5
K = 3                      # ConvTranspose2d kernel size
_STASH_CIN_THRESHOLD = 128  # Cin at which the conv is MXU-bound -> stash path


# --------------------------------------------------------------------------
# In-kernel shared compute
# --------------------------------------------------------------------------
def _conv_tile(xm_ref, xn_ref, weh_ref, woh_ref):
    """Phase-decomposed transposed-conv for one row tile.

    xm_ref : (1, TH, W+1, Cin)  bf16, input rows [t*TH, t*TH+TH) (padded)
    xn_ref : (1, 1,  W+1, Cin)  bf16, row t*TH+TH (next tile's row / pad row)
    weh_ref: (2*Cin, 2*Cpad)    bf16, fused weights, even output rows
    woh_ref: (4*Cin, 2*Cpad)    bf16, fused weights, odd  output rows
    returns (acc_eh, acc_oh) each (TH*W, 2*Cpad) float32
    """
    _, TH, WP, CIN = xm_ref.shape
    W = WP - 1

    xm = xm_ref[0]                                # (TH,   W+1, Cin)
    xn = xn_ref[0]                                # (1,    W+1, Cin)
    slab = jnp.concatenate([xm, xn], axis=0)      # (TH+1, W+1, Cin)

    x00 = slab[0:TH, 0:W, :]            # x[m,   n  ]
    x01 = slab[0:TH, 1:W + 1, :]        # x[m,   n+1]
    x10 = slab[1:TH + 1, 0:W, :]        # x[m+1, n  ]
    x11 = slab[1:TH + 1, 1:W + 1, :]    # x[m+1, n+1]

    mt = TH * W
    # Single tap concatenate; the even-row operand is a lane slice of it
    # (free when 2*Cin is a multiple of 128).
    xall = jnp.concatenate([x00, x01, x10, x11], axis=-1).reshape(mt, 4 * CIN)
    xrow = xall[:, :2 * CIN]

    acc_eh = jnp.dot(xrow, weh_ref[...], preferred_element_type=jnp.float32)
    acc_oh = jnp.dot(xall, woh_ref[...], preferred_element_type=jnp.float32)
    return acc_eh, acc_oh


def _partial_stats(acc_eh, acc_oh, cpad):
    """Per-tile partial sum / sum-of-squares, folded over the two pw phases."""
    se = (jnp.sum(acc_eh, axis=0, keepdims=True)
          + jnp.sum(acc_oh, axis=0, keepdims=True))            # (1, 2*Cpad)
    sq = (jnp.sum(acc_eh * acc_eh, axis=0, keepdims=True)
          + jnp.sum(acc_oh * acc_oh, axis=0, keepdims=True))   # (1, 2*Cpad)
    return se[:, :cpad] + se[:, cpad:], sq[:, :cpad] + sq[:, cpad:]


# --------------------------------------------------------------------------
# Kernels
# --------------------------------------------------------------------------
def _stats_kernel(xm_ref, xn_ref, weh_ref, woh_ref, psum_ref, psq_ref):
    """Pass 1 (recompute path): partial BN statistics only."""
    acc_eh, acc_oh = _conv_tile(xm_ref, xn_ref, weh_ref, woh_ref)
    cpad = psum_ref.shape[-1]
    ps, pq = _partial_stats(acc_eh, acc_oh, cpad)
    psum_ref[0, 0] = ps
    psq_ref[0, 0] = pq


def _stats_stash_kernel(xm_ref, xn_ref, weh_ref, woh_ref,
                        psum_ref, psq_ref, conv_ref):
    """Pass 1 (stash path): partial BN stats + bf16 un-normalized conv output."""
    acc_eh, acc_oh = _conv_tile(xm_ref, xn_ref, weh_ref, woh_ref)
    _, TH, WP, _ = xm_ref.shape
    W = WP - 1
    cpad = psum_ref.shape[-1]
    ps, pq = _partial_stats(acc_eh, acc_oh, cpad)
    psum_ref[0, 0] = ps
    psq_ref[0, 0] = pq
    dt = conv_ref.dtype
    conv_ref[0] = acc_eh[:, :cpad].reshape(TH, W, cpad).astype(dt)  # (ph0,pw0)
    conv_ref[1] = acc_eh[:, cpad:].reshape(TH, W, cpad).astype(dt)  # (ph0,pw1)
    conv_ref[2] = acc_oh[:, :cpad].reshape(TH, W, cpad).astype(dt)  # (ph1,pw0)
    conv_ref[3] = acc_oh[:, cpad:].reshape(TH, W, cpad).astype(dt)  # (ph1,pw1)


def _apply_recompute_kernel(xm_ref, xn_ref, weh_ref, woh_ref,
                            s_ref, b_ref, out_ref):
    """Pass 2 (recompute path): conv + folded BN affine (one FMA) + ReLU."""
    acc_eh, acc_oh = _conv_tile(xm_ref, xn_ref, weh_ref, woh_ref)
    _, TH, WP, _ = xm_ref.shape
    W = WP - 1
    cpad = s_ref.shape[-1]
    s = s_ref[...]          # (1, Cpad) f32
    b = b_ref[...]          # (1, Cpad) f32

    def finish(acc):
        return jnp.maximum(acc * s + b, 0.0).reshape(TH, W, cpad).astype(
            out_ref.dtype)

    out_ref[0] = finish(acc_eh[:, :cpad])   # phase (ph=0, pw=0)
    out_ref[1] = finish(acc_eh[:, cpad:])   # phase (ph=0, pw=1)
    out_ref[2] = finish(acc_oh[:, :cpad])   # phase (ph=1, pw=0)
    out_ref[3] = finish(acc_oh[:, cpad:])   # phase (ph=1, pw=1)


def _apply_affine_kernel(conv_ref, s_ref, b_ref, out_ref):
    """Pass 2 (stash path): pure elementwise folded affine + ReLU."""
    s = s_ref[...].reshape(1, 1, 1, -1)
    b = b_ref[...].reshape(1, 1, 1, -1)
    y = conv_ref[...].astype(jnp.float32)
    out_ref[...] = jnp.maximum(y * s + b, 0.0).astype(out_ref.dtype)


# --------------------------------------------------------------------------
# Wrapper helpers
# --------------------------------------------------------------------------
def _vmem_budget_and_limit():
    """(tile-sizing byte budget, vmem_limit_bytes) from the chip's VMEM size."""
    try:
        cap = int(pltpu.get_tpu_info().vmem_capacity_bytes)
    except Exception:
        cap = 64 * 1024 * 1024   # conservative fallback (= v7x per-TensorCore)
    return int(cap * 0.60), int(cap * 0.85)


def _pick_tile_h(H, W, cin, cpad, budget):
    """Largest row tile dividing H whose per-step VMEM estimate fits budget."""
    def est(th):
        mt = th * W
        b = 2 * th * (W + 1) * cin * 2          # x main block (bf16, 2-deep)
        b += 2 * (W + 1) * cin * 2              # x next-row block (bf16, 2-deep)
        b += 6 * cin * 2 * cpad * 2             # fused weights (bf16, 1-deep)
        b += (th + 1) * (W + 1) * cin * 2       # slab temp (bf16)
        b += mt * 4 * cin * 2                   # xall temp (bf16)
        b += 2 * mt * 2 * cpad * 4              # acc_eh + acc_oh (f32)
        b += 2 * 4 * mt * cpad * 4              # out block (f32, 2-deep)
        return b

    best = 1
    for th in range(1, H + 1):
        if H % th == 0 and est(th) <= budget:
            best = th
    return best


def _const_spec(shape):
    """BlockSpec for a grid-invariant operand; single-buffer it if supported."""
    idx = lambda n, t: (0, 0)
    try:
        return pl.BlockSpec(shape, idx, pipeline_mode=pl.Buffered(1))
    except TypeError:   # older/newer API without pipeline_mode kwarg
        return pl.BlockSpec(shape, idx)


# --------------------------------------------------------------------------
# Forward
# --------------------------------------------------------------------------
@functools.partial(jax.jit, static_argnames=("tile_h", "stash_conv"))
def up_forward(x_nchw, w_pt, gamma, beta, *, tile_h=None, stash_conv=None):
    """Pallas implementation of Up.forward.

    x_nchw : (N, Cin, H, W)     float32, NCHW (PyTorch layout)
    w_pt   : (Cin, Cout, K, K)  PyTorch ConvTranspose2d weight layout
    gamma, beta : (Cout,)       BatchNorm2d affine parameters
    returns  (N, Cout, 2H, 2W)  NCHW float32
    """
    N, Cin, H, W = x_nchw.shape
    Cout = w_pt.shape[1]
    cpad = 128 * ((Cout + 127) // 128)

    budget, vmem_limit = _vmem_budget_and_limit()
    if tile_h is None:
        tile_h = _pick_tile_h(H, W, Cin, cpad, budget)
    assert H % tile_h == 0, "tile_h must divide H"
    th = tile_h
    gt = H // th
    if stash_conv is None:
        stash_conv = Cin >= _STASH_CIN_THRESHOLD

    # bf16 activations for the MXU (f32 accumulation in-kernel); NHWC +
    # right/bottom zero pad by 1 (covers the ih=H / iw=W neighbor taps).
    x_nhwc = jnp.transpose(x_nchw, (0, 2, 3, 1)).astype(jnp.bfloat16)
    x_pad = jnp.pad(x_nhwc, ((0, 0), (0, 1), (0, 1), (0, 0)))

    # PyTorch weight (Cin, Cout, kh, kw) -> (kh, kw, Cin, Cpad); direct scatter
    # formula (oh = 2*ih - 1 + kh), so NO spatial flip.  Build the fused
    # per-phase weight matrices (unused taps are zero blocks), cast to bf16.
    wk = jnp.transpose(w_pt, (2, 3, 0, 1)).astype(jnp.float32)
    wk = jnp.pad(wk, ((0, 0), (0, 0), (0, 0), (0, cpad - Cout)))
    z = jnp.zeros((Cin, cpad), jnp.float32)
    w_eh = jnp.concatenate([                       # rows: [x00 | x01] segments
        jnp.concatenate([wk[1, 1], wk[1, 2]], axis=1),
        jnp.concatenate([z,        wk[1, 0]], axis=1)],
        axis=0).astype(jnp.bfloat16)               # (2*Cin, 2*Cpad)
    w_oh = jnp.concatenate([                       # rows: [x00|x01|x10|x11]
        jnp.concatenate([wk[2, 1], wk[2, 2]], axis=1),
        jnp.concatenate([z,        wk[2, 0]], axis=1),
        jnp.concatenate([wk[0, 1], wk[0, 2]], axis=1),
        jnp.concatenate([z,        wk[0, 0]], axis=1)],
        axis=0).astype(jnp.bfloat16)               # (4*Cin, 2*Cpad)

    # Both grid axes are "parallel" -> megacore sharding on v7x (N*gt steps).
    grid = (N, gt)
    x_main_spec = pl.BlockSpec((1, th, W + 1, Cin), lambda n, t: (n, t, 0, 0))
    # block height 1 => block index == element row index: row (t+1)*th is the
    # next tile's first row, or the zero pad row for the last tile.
    x_next_spec = pl.BlockSpec((1, 1, W + 1, Cin),
                               lambda n, t: (n, (t + 1) * th, 0, 0))
    w_eh_spec = _const_spec((2 * Cin, 2 * cpad))
    w_oh_spec = _const_spec((4 * Cin, 2 * cpad))
    vec_spec = _const_spec((1, cpad))
    stat_spec = pl.BlockSpec((1, 1, 1, cpad), lambda n, t: (n, t, 0, 0))
    sep_spec = pl.BlockSpec((4, th, W, cpad), lambda n, t: (n, t, 0, 0))
    cparams = pltpu.CompilerParams(
        dimension_semantics=("parallel", "parallel"),
        vmem_limit_bytes=vmem_limit)

    # ---- pass 1: conv -> per-tile partial BN statistics (+ optional stash) --
    if stash_conv:
        psum, psq, conv_sep = pl.pallas_call(
            _stats_stash_kernel,
            out_shape=(jax.ShapeDtypeStruct((N, gt, 1, cpad), jnp.float32),
                       jax.ShapeDtypeStruct((N, gt, 1, cpad), jnp.float32),
                       jax.ShapeDtypeStruct((4 * N, H, W, cpad), jnp.bfloat16)),
            grid=grid,
            in_specs=[x_main_spec, x_next_spec, w_eh_spec, w_oh_spec],
            out_specs=(stat_spec, stat_spec, sep_spec),
            compiler_params=cparams,
        )(x_pad, x_pad, w_eh, w_oh)
    else:
        psum, psq = pl.pallas_call(
            _stats_kernel,
            out_shape=(jax.ShapeDtypeStruct((N, gt, 1, cpad), jnp.float32),
                       jax.ShapeDtypeStruct((N, gt, 1, cpad), jnp.float32)),
            grid=grid,
            in_specs=[x_main_spec, x_next_spec, w_eh_spec, w_oh_spec],
            out_specs=(stat_spec, stat_spec),
            compiler_params=cparams,
        )(x_pad, x_pad, w_eh, w_oh)

    # ---- global BatchNorm2d stats via Chan combine of per-tile partials -----
    m_t = 4.0 * th * W                       # output elements per tile
    m_total = float(N * 2 * H * 2 * W)       # total output elements per channel
    psum2 = psum.reshape(-1, cpad)
    psq2 = psq.reshape(-1, cpad)
    mean_t = psum2 / m_t
    m2_t = psq2 - psum2 * mean_t
    mean = jnp.sum(psum2, axis=0) / m_total
    m2 = jnp.sum(m2_t, axis=0) + m_t * jnp.sum((mean_t - mean[None, :]) ** 2,
                                               axis=0)
    var = jnp.maximum(m2 / m_total, 0.0)     # biased variance (PyTorch BN fwd)

    # NOTE: padded channels (Cout..Cpad) have zero conv output, so var == 0 and
    # s == gamma_pad * rsqrt(eps) ~ 316.  Harmless because those channels are
    # sliced off below -- do not reuse s/b without the [:Cout] slice.
    gamma_p = jnp.pad(gamma.astype(jnp.float32), (0, cpad - Cout),
                      constant_values=1.0)
    beta_p = jnp.pad(beta.astype(jnp.float32), (0, cpad - Cout))
    s = (gamma_p * jax.lax.rsqrt(var + EPS)).reshape(1, cpad)
    b = beta_p.reshape(1, cpad) - mean.reshape(1, cpad) * s

    # ---- pass 2: fused affine + ReLU, phase-separated output ----------------
    out_shape = jax.ShapeDtypeStruct((4 * N, H, W, cpad), jnp.float32)
    if stash_conv:
        out_sep = pl.pallas_call(
            _apply_affine_kernel,
            out_shape=out_shape,
            grid=grid,
            in_specs=[sep_spec, vec_spec, vec_spec],
            out_specs=sep_spec,
            compiler_params=cparams,
        )(conv_sep, s, b)
    else:
        out_sep = pl.pallas_call(
            _apply_recompute_kernel,
            out_shape=out_shape,
            grid=grid,
            in_specs=[x_main_spec, x_next_spec, w_eh_spec, w_oh_spec,
                      vec_spec, vec_spec],
            out_specs=sep_spec,
            compiler_params=cparams,
        )(x_pad, x_pad, w_eh, w_oh, s, b)

    # (N*4, H, W, Cpad) -> (N, ph, pw, H, W, C) -> NCHW (N, C, 2H, 2W)
    out_sep = out_sep.reshape(N, 2, 2, H, W, cpad)[..., :Cout]
    out = jnp.transpose(out_sep, (0, 5, 3, 1, 4, 2)).reshape(N, Cout,
                                                             2 * H, 2 * W)
    return out


# --------------------------------------------------------------------------
# Self-test
# --------------------------------------------------------------------------
if __name__ == "__main__":
    key = jax.random.PRNGKey(0)
    N, Cin, Cout, H, W = 2, 4, 8, 16, 16
    k1, k2, k3, k4 = jax.random.split(key, 4)

    x = jax.random.normal(k1, (N, Cin, H, W), jnp.float32)
    w = jax.random.normal(k2, (Cin, Cout, K, K), jnp.float32) * 0.2
    gamma = 1.0 + 0.1 * jax.random.normal(k3, (Cout,), jnp.float32)
    beta = 0.1 * jax.random.normal(k4, (Cout,), jnp.float32)

    # Recompute path (what small-Cin shapes take), explicit row tile.
    out = jax.block_until_ready(up_forward(x, w, gamma, beta, tile_h=8))
    # Conv-stash path (what Cin>=128 shapes take) + VMEM-budget tile pick.
    out_s = jax.block_until_ready(up_forward(x, w, gamma, beta,
                                             stash_conv=True))
    assert out.shape == (N, Cout, 2 * H, 2 * W)
    assert out_s.shape == (N, Cout, 2 * H, 2 * W)

    # --- pure-numpy f32 reference using the direct transposed-conv formula ---
    xn, wn = np.asarray(x), np.asarray(w)
    ref = np.zeros((N, Cout, 2 * H, 2 * W), np.float32)
    for kh in range(K):
        for kw in range(K):
            for ih in range(H):
                oh = 2 * ih - 1 + kh
                if not (0 <= oh < 2 * H):
                    continue
                for iw in range(W):
                    ow = 2 * iw - 1 + kw
                    if not (0 <= ow < 2 * W):
                        continue
                    ref[:, :, oh, ow] += np.einsum(
                        'ni,io->no', xn[:, :, ih, iw], wn[:, :, kh, kw])
    mean = ref.mean(axis=(0, 2, 3), keepdims=True)
    var = ((ref - mean) ** 2).mean(axis=(0, 2, 3), keepdims=True)
    refn = (ref - mean) / np.sqrt(var + EPS)
    refn = refn * np.asarray(gamma).reshape(1, -1, 1, 1) \
         + np.asarray(beta).reshape(1, -1, 1, 1)
    refn = np.maximum(refn, 0.0)

    # bf16 operands on the MXU (f32 accumulation) -> relaxed tolerance vs the
    # f32 reference, per the review's guidance.
    err = float(np.max(np.abs(np.asarray(out) - refn)))
    assert np.allclose(np.asarray(out), refn, atol=5e-2, rtol=5e-2), err
    err_s = float(np.max(np.abs(np.asarray(out_s) - refn)))
    assert np.allclose(np.asarray(out_s), refn, atol=5e-2, rtol=5e-2), err_s

    print("KERNEL_OK")
</pallas_src>

<mosaic_0001>
module attributes {stable_mosaic.version = 11 : i64} {
  func.func @_stats_kernel(%arg0: i32, %arg1: i32, %arg2: memref<1x8x17x4xbf16, #tpu.memory_space<vmem>>, %arg3: memref<1x1x17x4xbf16, #tpu.memory_space<vmem>>, %arg4: memref<8x256xbf16, #tpu.memory_space<vmem>>, %arg5: memref<16x256xbf16, #tpu.memory_space<vmem>>, %arg6: memref<1x1x1x128xf32, #tpu.memory_space<vmem>>, %arg7: memref<1x1x1x128xf32, #tpu.memory_space<vmem>>) attributes {dimension_semantics = [#tpu.dimension_semantics<parallel>, #tpu.dimension_semantics<parallel>], iteration_bounds = array<i64: 2, 2>, scalar_prefetch = 0 : i64, scratch_operands = 0 : i64, tpu.core_type = #tpu.core_type<tc>, window_params = [{transform_indices = @transform_0, window_bounds = array<i64: 1, 8, 17, 4>}, {transform_indices = @transform_1, window_bounds = array<i64: 1, 1, 17, 4>}, {pipeline_mode = #tpu.pipeline_mode<synchronous>, transform_indices = @transform_2, window_bounds = array<i64: 8, 256>}, {pipeline_mode = #tpu.pipeline_mode<synchronous>, transform_indices = @transform_3, window_bounds = array<i64: 16, 256>}, {transform_indices = @transform_4, window_bounds = array<i64: 1, 1, 1, 128>}, {transform_indices = @transform_5, window_bounds = array<i64: 1, 1, 1, 128>}]} {
    %c0 = arith.constant 0 : index
    %c0_0 = arith.constant 0 : index
    %c0_1 = arith.constant 0 : index
    %c0_2 = arith.constant 0 : index
    %0 = vector.load %arg2[%c0, %c0_0, %c0_1, %c0_2] : memref<1x8x17x4xbf16, #tpu.memory_space<vmem>>, vector<1x8x17x4xbf16>
    %1 = vector.shape_cast %0 : vector<1x8x17x4xbf16> to vector<8x17x4xbf16>
    %c0_3 = arith.constant 0 : index
    %c0_4 = arith.constant 0 : index
    %c0_5 = arith.constant 0 : index
    %c0_6 = arith.constant 0 : index
    %2 = vector.load %arg3[%c0_3, %c0_4, %c0_5, %c0_6] : memref<1x1x17x4xbf16, #tpu.memory_space<vmem>>, vector<1x1x17x4xbf16>
    %3 = vector.shape_cast %2 : vector<1x1x17x4xbf16> to vector<1x17x4xbf16>
    %4 = tpu.concatenate %1, %3 in 0 : vector<8x17x4xbf16>, vector<1x17x4xbf16> -> vector<9x17x4xbf16>
    %5 = vector.extract_strided_slice %4 {offsets = [0, 0, 0], sizes = [8, 16, 4], strides = [1, 1, 1]} : vector<9x17x4xbf16> to vector<8x16x4xbf16>
    %6 = vector.extract_strided_slice %4 {offsets = [0, 1, 0], sizes = [8, 16, 4], strides = [1, 1, 1]} : vector<9x17x4xbf16> to vector<8x16x4xbf16>
    %7 = vector.extract_strided_slice %4 {offsets = [1, 0, 0], sizes = [8, 16, 4], strides = [1, 1, 1]} : vector<9x17x4xbf16> to vector<8x16x4xbf16>
    %8 = vector.extract_strided_slice %4 {offsets = [1, 1, 0], sizes = [8, 16, 4], strides = [1, 1, 1]} : vector<9x17x4xbf16> to vector<8x16x4xbf16>
    %9 = tpu.concatenate %5, %6, %7, %8 in 2 : vector<8x16x4xbf16>, vector<8x16x4xbf16>, vector<8x16x4xbf16>, vector<8x16x4xbf16> -> vector<8x16x16xbf16>
    %10 = vector.shape_cast %9 : vector<8x16x16xbf16> to vector<128x16xbf16>
    %11 = vector.extract_strided_slice %10 {offsets = [0, 0], sizes = [128, 8], strides = [1, 1]} : vector<128x16xbf16> to vector<128x8xbf16>
    %c0_7 = arith.constant 0 : index
    %c0_8 = arith.constant 0 : index
    %12 = vector.load %arg4[%c0_7, %c0_8] : memref<8x256xbf16, #tpu.memory_space<vmem>>, vector<8x256xbf16>
    %cst = arith.constant dense<0.000000e+00> : vector<128x256xf32>
    %13 = tpu.matmul %11, %12, %cst {dimension_numbers = #tpu.dot_dimension_numbers<[1], [0], [0], [1], [0, 0, 1, 1], [], []>} : vector<128x8xbf16>, vector<8x256xbf16>, vector<128x256xf32> -> vector<128x256xf32>
    %c0_9 = arith.constant 0 : index
    %c0_10 = arith.constant 0 : index
    %14 = vector.load %arg5[%c0_9, %c0_10] : memref<16x256xbf16, #tpu.memory_space<vmem>>, vector<16x256xbf16>
    %cst_11 = arith.constant dense<0.000000e+00> : vector<128x256xf32>
    %15 = tpu.matmul %10, %14, %cst_11 {dimension_numbers = #tpu.dot_dimension_numbers<[1], [0], [0], [1], [0, 0, 1, 1], [], []>} : vector<128x16xbf16>, vector<16x256xbf16>, vector<128x256xf32> -> vector<128x256xf32>
    %cst_12 = arith.constant dense<0.000000e+00> : vector<256xf32>
    %16 = vector.multi_reduction <add>, %13, %cst_12 [0] : vector<128x256xf32> to vector<256xf32>
    %17 = vector.shape_cast %16 : vector<256xf32> to vector<1x256xf32>
    %cst_13 = arith.constant dense<0.000000e+00> : vector<256xf32>
    %18 = vector.multi_reduction <add>, %15, %cst_13 [0] : vector<128x256xf32> to vector<256xf32>
    %19 = vector.shape_cast %18 : vector<256xf32> to vector<1x256xf32>
    %20 = arith.addf %17, %19 : vector<1x256xf32>
    %21 = arith.mulf %13, %13 : vector<128x256xf32>
    %cst_14 = arith.constant dense<0.000000e+00> : vector<256xf32>
    %22 = vector.multi_reduction <add>, %21, %cst_14 [0] : vector<128x256xf32> to vector<256xf32>
    %23 = vector.shape_cast %22 : vector<256xf32> to vector<1x256xf32>
    %24 = arith.mulf %15, %15 : vector<128x256xf32>
    %cst_15 = arith.constant dense<0.000000e+00> : vector<256xf32>
    %25 = vector.multi_reduction <add>, %24, %cst_15 [0] : vector<128x256xf32> to vector<256xf32>
    %26 = vector.shape_cast %25 : vector<256xf32> to vector<1x256xf32>
    %27 = arith.addf %23, %26 : vector<1x256xf32>
    %28 = vector.extract_strided_slice %20 {offsets = [0, 0], sizes = [1, 128], strides = [1, 1]} : vector<1x256xf32> to vector<1x128xf32>
    %29 = vector.extract_strided_slice %20 {offsets = [0, 128], sizes = [1, 128], strides = [1, 1]} : vector<1x256xf32> to vector<1x128xf32>
    %30 = arith.addf %28, %29 : vector<1x128xf32>
    %31 = vector.extract_strided_slice %27 {offsets = [0, 0], sizes = [1, 128], strides = [1, 1]} : vector<1x256xf32> to vector<1x128xf32>
    %32 = vector.extract_strided_slice %27 {offsets = [0, 128], sizes = [1, 128], strides = [1, 1]} : vector<1x256xf32> to vector<1x128xf32>
    %33 = arith.addf %31, %32 : vector<1x128xf32>
    %c0_16 = arith.constant 0 : index
    %c0_17 = arith.constant 0 : index
    %c0_18 = arith.constant 0 : index
    %c0_19 = arith.constant 0 : index
    %34 = vector.load %arg6[%c0_16, %c0_17, %c0_18, %c0_19] : memref<1x1x1x128xf32, #tpu.memory_space<vmem>>, vector<1x1x1x128xf32>
    %35 = vector.shape_cast %34 : vector<1x1x1x128xf32> to vector<1x128xf32>
    %36 = vector.shape_cast %30 : vector<1x128xf32> to vector<1x1x1x128xf32>
    tpu.vector_store %arg6[%c0_16, %c0_17, %c0_18, %c0_19], %36 {strides = array<i32>} : memref<1x1x1x128xf32, #tpu.memory_space<vmem>>, vector<1x1x1x128xf32>,
    %c0_20 = arith.constant 0 : index
    %c0_21 = arith.constant 0 : index
    %c0_22 = arith.constant 0 : index
    %c0_23 = arith.constant 0 : index
    %37 = vector.load %arg7[%c0_20, %c0_21, %c0_22, %c0_23] : memref<1x1x1x128xf32, #tpu.memory_space<vmem>>, vector<1x1x1x128xf32>
    %38 = vector.shape_cast %37 : vector<1x1x1x128xf32> to vector<1x128xf32>
    %39 = vector.shape_cast %33 : vector<1x128xf32> to vector<1x1x1x128xf32>
    tpu.vector_store %arg7[%c0_20, %c0_21, %c0_22, %c0_23], %39 {strides = array<i32>} : memref<1x1x1x128xf32, #tpu.memory_space<vmem>>, vector<1x1x1x128xf32>,
    return
  }
  func.func @transform_0(%arg0: i32, %arg1: i32) -> (i32, i32, i32, i32) {
    %c0_i32 = arith.constant 0 : i32
    %c0_i32_0 = arith.constant 0 : i32
    %c0_i32_1 = arith.constant 0 : i32
    return %arg0, %arg1, %c0_i32, %c0_i32_0 : i32, i32, i32, i32
  }
  func.func @transform_1(%arg0: i32, %arg1: i32) -> (i32, i32, i32, i32) {
    %c1_i32 = arith.constant 1 : i32
    %0 = arith.addi %arg1, %c1_i32 : i32
    %c8_i32 = arith.constant 8 : i32
    %1 = arith.muli %0, %c8_i32 : i32
    %c0_i32 = arith.constant 0 : i32
    %c0_i32_0 = arith.constant 0 : i32
    %c0_i32_1 = arith.constant 0 : i32
    return %arg0, %1, %c0_i32, %c0_i32_0 : i32, i32, i32, i32
  }
  func.func @transform_2(%arg0: i32, %arg1: i32) -> (i32, i32) {
    %c0_i32 = arith.constant 0 : i32
    %c0_i32_0 = arith.constant 0 : i32
    %c0_i32_1 = arith.constant 0 : i32
    return %c0_i32, %c0_i32_0 : i32, i32
  }
  func.func @transform_3(%arg0: i32, %arg1: i32) -> (i32, i32) {
    %c0_i32 = arith.constant 0 : i32
    %c0_i32_0 = arith.constant 0 : i32
    %c0_i32_1 = arith.constant 0 : i32
    return %c0_i32, %c0_i32_0 : i32, i32
  }
  func.func @transform_4(%arg0: i32, %arg1: i32) -> (i32, i32, i32, i32) {
    %c0_i32 = arith.constant 0 : i32
    %c0_i32_0 = arith.constant 0 : i32
    %c0_i32_1 = arith.constant 0 : i32
    return %arg0, %arg1, %c0_i32, %c0_i32_0 : i32, i32, i32, i32
  }
  func.func @transform_5(%arg0: i32, %arg1: i32) -> (i32, i32, i32, i32) {
    %c0_i32 = arith.constant 0 : i32
    %c0_i32_0 = arith.constant 0 : i32
    %c0_i32_1 = arith.constant 0 : i32
    return %arg0, %arg1, %c0_i32, %c0_i32_0 : i32, i32, i32, i32
  }
}

module attributes {stable_mosaic.version = 11 : i64} {
  func.func @_apply_recompute_kernel(%arg0: i32, %arg1: i32, %arg2: memref<1x8x17x4xbf16, #tpu.memory_space<vmem>>, %arg3: memref<1x1x17x4xbf16, #tpu.memory_space<vmem>>, %arg4: memref<8x256xbf16, #tpu.memory_space<vmem>>, %arg5: memref<16x256xbf16, #tpu.memory_space<vmem>>, %arg6: memref<1x128xf32, #tpu.memory_space<vmem>>, %arg7: memref<1x128xf32, #tpu.memory_space<vmem>>, %arg8: memref<4x8x16x128xf32, #tpu.memory_space<vmem>>) attributes {dimension_semantics = [#tpu.dimension_semantics<parallel>, #tpu.dimension_semantics<parallel>], iteration_bounds = array<i64: 2, 2>, scalar_prefetch = 0 : i64, scratch_operands = 0 : i64, tpu.core_type = #tpu.core_type<tc>, window_params = [{transform_indices = @transform_0, window_bounds = array<i64: 1, 8, 17, 4>}, {transform_indices = @transform_1, window_bounds = array<i64: 1, 1, 17, 4>}, {pipeline_mode = #tpu.pipeline_mode<synchronous>, transform_indices = @transform_2, window_bounds = array<i64: 8, 256>}, {pipeline_mode = #tpu.pipeline_mode<synchronous>, transform_indices = @transform_3, window_bounds = array<i64: 16, 256>}, {pipeline_mode = #tpu.pipeline_mode<synchronous>, transform_indices = @transform_4, window_bounds = array<i64: 1, 128>}, {pipeline_mode = #tpu.pipeline_mode<synchronous>, transform_indices = @transform_5, window_bounds = array<i64: 1, 128>}, {transform_indices = @transform_6, window_bounds = array<i64: 4, 8, 16, 128>}]} {
    %c0 = arith.constant 0 : index
    %c0_0 = arith.constant 0 : index
    %c0_1 = arith.constant 0 : index
    %c0_2 = arith.constant 0 : index
    %0 = vector.load %arg2[%c0, %c0_0, %c0_1, %c0_2] : memref<1x8x17x4xbf16, #tpu.memory_space<vmem>>, vector<1x8x17x4xbf16>
    %1 = vector.shape_cast %0 : vector<1x8x17x4xbf16> to vector<8x17x4xbf16>
    %c0_3 = arith.constant 0 : index
    %c0_4 = arith.constant 0 : index
    %c0_5 = arith.constant 0 : index
    %c0_6 = arith.constant 0 : index
    %2 = vector.load %arg3[%c0_3, %c0_4, %c0_5, %c0_6] : memref<1x1x17x4xbf16, #tpu.memory_space<vmem>>, vector<1x1x17x4xbf16>
    %3 = vector.shape_cast %2 : vector<1x1x17x4xbf16> to vector<1x17x4xbf16>
    %4 = tpu.concatenate %1, %3 in 0 : vector<8x17x4xbf16>, vector<1x17x4xbf16> -> vector<9x17x4xbf16>
    %5 = vector.extract_strided_slice %4 {offsets = [0, 0, 0], sizes = [8, 16, 4], strides = [1, 1, 1]} : vector<9x17x4xbf16> to vector<8x16x4xbf16>
    %6 = vector.extract_strided_slice %4 {offsets = [0, 1, 0], sizes = [8, 16, 4], strides = [1, 1, 1]} : vector<9x17x4xbf16> to vector<8x16x4xbf16>
    %7 = vector.extract_strided_slice %4 {offsets = [1, 0, 0], sizes = [8, 16, 4], strides = [1, 1, 1]} : vector<9x17x4xbf16> to vector<8x16x4xbf16>
    %8 = vector.extract_strided_slice %4 {offsets = [1, 1, 0], sizes = [8, 16, 4], strides = [1, 1, 1]} : vector<9x17x4xbf16> to vector<8x16x4xbf16>
    %9 = tpu.concatenate %5, %6, %7, %8 in 2 : vector<8x16x4xbf16>, vector<8x16x4xbf16>, vector<8x16x4xbf16>, vector<8x16x4xbf16> -> vector<8x16x16xbf16>
    %10 = vector.shape_cast %9 : vector<8x16x16xbf16> to vector<128x16xbf16>
    %11 = vector.extract_strided_slice %10 {offsets = [0, 0], sizes = [128, 8], strides = [1, 1]} : vector<128x16xbf16> to vector<128x8xbf16>
    %c0_7 = arith.constant 0 : index
    %c0_8 = arith.constant 0 : index
    %12 = vector.load %arg4[%c0_7, %c0_8] : memref<8x256xbf16, #tpu.memory_space<vmem>>, vector<8x256xbf16>
    %cst = arith.constant dense<0.000000e+00> : vector<128x256xf32>
    %13 = tpu.matmul %11, %12, %cst {dimension_numbers = #tpu.dot_dimension_numbers<[1], [0], [0], [1], [0, 0, 1, 1], [], []>} : vector<128x8xbf16>, vector<8x256xbf16>, vector<128x256xf32> -> vector<128x256xf32>
    %c0_9 = arith.constant 0 : index
    %c0_10 = arith.constant 0 : index
    %14 = vector.load %arg5[%c0_9, %c0_10] : memref<16x256xbf16, #tpu.memory_space<vmem>>, vector<16x256xbf16>
    %cst_11 = arith.constant dense<0.000000e+00> : vector<128x256xf32>
    %15 = tpu.matmul %10, %14, %cst_11 {dimension_numbers = #tpu.dot_dimension_numbers<[1], [0], [0], [1], [0, 0, 1, 1], [], []>} : vector<128x16xbf16>, vector<16x256xbf16>, vector<128x256xf32> -> vector<128x256xf32>
    %c0_12 = arith.constant 0 : index
    %c0_13 = arith.constant 0 : index
    %16 = vector.load %arg6[%c0_12, %c0_13] : memref<1x128xf32, #tpu.memory_space<vmem>>, vector<1x128xf32>
    %c0_14 = arith.constant 0 : index
    %c0_15 = arith.constant 0 : index
    %17 = vector.load %arg7[%c0_14, %c0_15] : memref<1x128xf32, #tpu.memory_space<vmem>>, vector<1x128xf32>
    %18 = vector.extract_strided_slice %13 {offsets = [0, 0], sizes = [128, 128], strides = [1, 1]} : vector<128x256xf32> to vector<128x128xf32>
    %19 = vector.broadcast %16 : vector<1x128xf32> to vector<128x128xf32>
    %20 = arith.mulf %18, %19 : vector<128x128xf32>
    %21 = vector.broadcast %17 : vector<1x128xf32> to vector<128x128xf32>
    %22 = arith.addf %20, %21 : vector<128x128xf32>
    %cst_16 = arith.constant 0.000000e+00 : f32
    %23 = vector.broadcast %cst_16 : f32 to vector<128x128xf32>
    %24 = arith.maximumf %22, %23 : vector<128x128xf32>
    %25 = vector.shape_cast %24 : vector<128x128xf32> to vector<8x16x128xf32>
    %c0_17 = arith.constant 0 : index
    %c0_18 = arith.constant 0 : index
    %c0_19 = arith.constant 0 : index
    %c0_20 = arith.constant 0 : index
    %26 = vector.load %arg8[%c0_17, %c0_18, %c0_19, %c0_20] : memref<4x8x16x128xf32, #tpu.memory_space<vmem>>, vector<1x8x16x128xf32>
    %27 = vector.shape_cast %26 : vector<1x8x16x128xf32> to vector<8x16x128xf32>
    %28 = vector.shape_cast %25 : vector<8x16x128xf32> to vector<1x8x16x128xf32>
    tpu.vector_store %arg8[%c0_17, %c0_18, %c0_19, %c0_20], %28 {strides = array<i32>} : memref<4x8x16x128xf32, #tpu.memory_space<vmem>>, vector<1x8x16x128xf32>,
    %29 = vector.extract_strided_slice %13 {offsets = [0, 128], sizes = [128, 128], strides = [1, 1]} : vector<128x256xf32> to vector<128x128xf32>
    %30 = vector.broadcast %16 : vector<1x128xf32> to vector<128x128xf32>
    %31 = arith.mulf %29, %30 : vector<128x128xf32>
    %32 = vector.broadcast %17 : vector<1x128xf32> to vector<128x128xf32>
    %33 = arith.addf %31, %32 : vector<128x128xf32>
    %cst_21 = arith.constant 0.000000e+00 : f32
    %34 = vector.broadcast %cst_21 : f32 to vector<128x128xf32>
    %35 = arith.maximumf %33, %34 : vector<128x128xf32>
    %36 = vector.shape_cast %35 : vector<128x128xf32> to vector<8x16x128xf32>
    %c1 = arith.constant 1 : index
    %c0_22 = arith.constant 0 : index
    %c0_23 = arith.constant 0 : index
    %c0_24 = arith.constant 0 : index
    %37 = vector.load %arg8[%c1, %c0_22, %c0_23, %c0_24] : memref<4x8x16x128xf32, #tpu.memory_space<vmem>>, vector<1x8x16x128xf32>
    %38 = vector.shape_cast %37 : vector<1x8x16x128xf32> to vector<8x16x128xf32>
    %39 = vector.shape_cast %36 : vector<8x16x128xf32> to vector<1x8x16x128xf32>
    tpu.vector_store %arg8[%c1, %c0_22, %c0_23, %c0_24], %39 {strides = array<i32>} : memref<4x8x16x128xf32, #tpu.memory_space<vmem>>, vector<1x8x16x128xf32>,
    %40 = vector.extract_strided_slice %15 {offsets = [0, 0], sizes = [128, 128], strides = [1, 1]} : vector<128x256xf32> to vector<128x128xf32>
    %41 = vector.broadcast %16 : vector<1x128xf32> to vector<128x128xf32>
    %42 = arith.mulf %40, %41 : vector<128x128xf32>
    %43 = vector.broadcast %17 : vector<1x128xf32> to vector<128x128xf32>
    %44 = arith.addf %42, %43 : vector<128x128xf32>
    %cst_25 = arith.constant 0.000000e+00 : f32
    %45 = vector.broadcast %cst_25 : f32 to vector<128x128xf32>
    %46 = arith.maximumf %44, %45 : vector<128x128xf32>
    %47 = vector.shape_cast %46 : vector<128x128xf32> to vector<8x16x128xf32>
    %c2 = arith.constant 2 : index
    %c0_26 = arith.constant 0 : index
    %c0_27 = arith.constant 0 : index
    %c0_28 = arith.constant 0 : index
    %48 = vector.load %arg8[%c2, %c0_26, %c0_27, %c0_28] : memref<4x8x16x128xf32, #tpu.memory_space<vmem>>, vector<1x8x16x128xf32>
    %49 = vector.shape_cast %48 : vector<1x8x16x128xf32> to vector<8x16x128xf32>
    %50 = vector.shape_cast %47 : vector<8x16x128xf32> to vector<1x8x16x128xf32>
    tpu.vector_store %arg8[%c2, %c0_26, %c0_27, %c0_28], %50 {strides = array<i32>} : memref<4x8x16x128xf32, #tpu.memory_space<vmem>>, vector<1x8x16x128xf32>,
    %51 = vector.extract_strided_slice %15 {offsets = [0, 128], sizes = [128, 128], strides = [1, 1]} : vector<128x256xf32> to vector<128x128xf32>
    %52 = vector.broadcast %16 : vector<1x128xf32> to vector<128x128xf32>
    %53 = arith.mulf %51, %52 : vector<128x128xf32>
    %54 = vector.broadcast %17 : vector<1x128xf32> to vector<128x128xf32>
    %55 = arith.addf %53, %54 : vector<128x128xf32>
    %cst_29 = arith.constant 0.000000e+00 : f32
    %56 = vector.broadcast %cst_29 : f32 to vector<128x128xf32>
    %57 = arith.maximumf %55, %56 : vector<128x128xf32>
    %58 = vector.shape_cast %57 : vector<128x128xf32> to vector<8x16x128xf32>
    %c3 = arith.constant 3 : index
    %c0_30 = arith.constant 0 : index
    %c0_31 = arith.constant 0 : index
    %c0_32 = arith.constant 0 : index
    %59 = vector.load %arg8[%c3, %c0_30, %c0_31, %c0_32] : memref<4x8x16x128xf32, #tpu.memory_space<vmem>>, vector<1x8x16x128xf32>
    %60 = vector.shape_cast %59 : vector<1x8x16x128xf32> to vector<8x16x128xf32>
    %61 = vector.shape_cast %58 : vector<8x16x128xf32> to vector<1x8x16x128xf32>
    tpu.vector_store %arg8[%c3, %c0_30, %c0_31, %c0_32], %61 {strides = array<i32>} : memref<4x8x16x128xf32, #tpu.memory_space<vmem>>, vector<1x8x16x128xf32>,
    return
  }
  func.func @transform_0(%arg0: i32, %arg1: i32) -> (i32, i32, i32, i32) {
    %c0_i32 = arith.constant 0 : i32
    %c0_i32_0 = arith.constant 0 : i32
    %c0_i32_1 = arith.constant 0 : i32
    return %arg0, %arg1, %c0_i32, %c0_i32_0 : i32, i32, i32, i32
  }
  func.func @transform_1(%arg0: i32, %arg1: i32) -> (i32, i32, i32, i32) {
    %c1_i32 = arith.constant 1 : i32
    %0 = arith.addi %arg1, %c1_i32 : i32
    %c8_i32 = arith.constant 8 : i32
    %1 = arith.muli %0, %c8_i32 : i32
    %c0_i32 = arith.constant 0 : i32
    %c0_i32_0 = arith.constant 0 : i32
    %c0_i32_1 = arith.constant 0 : i32
    return %arg0, %1, %c0_i32, %c0_i32_0 : i32, i32, i32, i32
  }
  func.func @transform_2(%arg0: i32, %arg1: i32) -> (i32, i32) {
    %c0_i32 = arith.constant 0 : i32
    %c0_i32_0 = arith.constant 0 : i32
    %c0_i32_1 = arith.constant 0 : i32
    return %c0_i32, %c0_i32_0 : i32, i32
  }
  func.func @transform_3(%arg0: i32, %arg1: i32) -> (i32, i32) {
    %c0_i32 = arith.constant 0 : i32
    %c0_i32_0 = arith.constant 0 : i32
    %c0_i32_1 = arith.constant 0 : i32
    return %c0_i32, %c0_i32_0 : i32, i32
  }
  func.func @transform_4(%arg0: i32, %arg1: i32) -> (i32, i32) {
    %c0_i32 = arith.constant 0 : i32
    %c0_i32_0 = arith.constant 0 : i32
    %c0_i32_1 = arith.constant 0 : i32
    return %c0_i32, %c0_i32_0 : i32, i32
  }
  func.func @transform_5(%arg0: i32, %arg1: i32) -> (i32, i32) {
    %c0_i32 = arith.constant 0 : i32
    %c0_i32_0 = arith.constant 0 : i32
    %c0_i32_1 = arith.constant 0 : i32
    return %c0_i32, %c0_i32_0 : i32, i32
  }
  func.func @transform_6(%arg0: i32, %arg1: i32) -> (i32, i32, i32, i32) {
    %c0_i32 = arith.constant 0 : i32
    %c0_i32_0 = arith.constant 0 : i32
    %c0_i32_1 = arith.constant 0 : i32
    return %arg0, %arg1, %c0_i32, %c0_i32_0 : i32, i32, i32, i32
  }
}

</mosaic_0001>

<llo_original>
// kernel: up_forward.2
$region0: #{up_forward.2}
  #allocation0 [shape = 'u32[]', space=smem, size = 0x4, offset = 0x4, fixed_abs, tag = 'smem constant byte address 0x4 - core index']
  #allocation1 [shape = 'u32[144,128]{1,0:T(1,128)}', space=vmem, size = 0x12000, scoped, tag = 'internal scratch']
  %s0 = inlined_call_operand.vmem [shape: bf16[2,17,17,4], index: 0, kind: input, shape index: {}, may-alias: {0,1}]
  %s1 = inlined_call_operand.vmem [shape: bf16[2,17,17,4], index: 1, kind: input, shape index: {}, may-alias: {0,1}]
  %s2 = inlined_call_operand.vmem [shape: bf16[8,256], index: 2, kind: input, shape index: {}]
  %s3 = inlined_call_operand.vmem [shape: bf16[16,256], index: 3, kind: input, shape index: {}]
  %s4 = inlined_call_operand.vmem [shape: f32[2,2,1,128], index: 4, kind: output, shape index: {0}]
  %s5 = inlined_call_operand.vmem [shape: f32[2,2,1,128], index: 5, kind: output, shape index: {1}]
  %6 = xla_tuple %s4, %s5
  %s7 = sld [smem:[#allocation0]]
  $region57: #{up_forward.2} parent=0
    _
  %s9 = ssub.s32 1, %s7
  %s10 = scalar_select 0, %s9, %s7
  loop: start=0, step=1, limit=6
  $region2: #{up_forward.2} parent=0 // loop_pre_header
    _
  $region3: #{up_forward.2} parent=0 // loop_header
    %s12 = sphi 0, %s16
    %p13 = scmp.ge.s32.totalorder %s12, 6
    %s19 = sphi 0, %s31
    %s20 = sphi 0, %s27
    %s21 = sphi 0, %s19
    %s22 = sphi 0, %s20
    %s23 = sphi 0, %s21
    %s24 = sphi 0, %s22
    %s36 = sphi 0, %s38
    %s39 = sphi 0, %s36
    %s40 = sphi 0, %s39
    %s56 = sphi 0, %s40
    %s68 = sphi 0, %s70
    %s71 = sphi 0, %s68
    %s72 = sphi 0, %s71
    %s88 = sphi 0, %s72
    %s92 = sphi 0, %s92
    %s94 = sphi 0, %s92
    %s95 = sphi 0, %s94
    %s109 = sphi 0, %s95
    %s113 = sphi 0, %s113
    %s115 = sphi 0, %s113
    %s116 = sphi 0, %s115
    %s130 = sphi 0, %s116
    %s138 = sphi 0, %s140
    %s141 = sphi 0, %s138
    %s142 = sphi 0, %s141
    %s158 = sphi 0, %s142
    %s166 = sphi 0, %s168
    %s169 = sphi 0, %s166
    %s170 = sphi 0, %s169
    %s186 = sphi 0, %s170
  $region4: #{up_forward.2} parent=0 // loop_header_branch
    %15 = sbr.rel (%p13) target = $region8
  $region5: #{up_forward.2} parent=0 // loop_body
    %s17 = ssub.s32 %s12, 1
    %s18 = ssub.s32 %s12, 2
    %s25 = sadd.s32 1, %s20
    %p26 = scmp.ge.s32.totalorder %s25, 2
    %s27 = scalar_select %p26, 0, %s25
    %s28 = sadd.s32 1, %s19
    %s29 = scalar_select %p26, %s28, %s19
    %p30 = scmp.ge.s32.totalorder %s29, 2
    %s31 = scalar_select %p30, 0, %s29
    %s32 = ssub.s32 %s19, %s31
    %s33 = ssub.s32 %s20, %s27
    %s34 = sor.u32 %s32, %s33
    %p35 = scmp.eq.s32.totalorder %s34, 0
    %s37 = sadd.s32 %s36, 1
    %s38 = scalar_select %p35, %s36, %s37
    %p41 = pneg %p35
    %p42 = scmp.eq.s32.totalorder %s12, 3
    %p43 = por %p41, %p42
    %p44 = scmp.ne.s32.totalorder %s36, %s39
    %p45 = scmp.eq.s32.totalorder %s12, 0
    %p46 = por %p44, %p45
    %p47 = scmp.ne.s32.totalorder %s36, %s39
    %p48 = scmp.eq.s32.totalorder %s17, 3
    %p49 = por %p47, %p48
    %p50 = scmp.ne.s32.totalorder %s39, %s40
    %p51 = scmp.eq.s32.totalorder %s17, 0
    %p52 = por %p50, %p51
    %p53 = scmp.ne.s32.totalorder %s39, %s40
    %p54 = scmp.eq.s32.totalorder %s18, 3
    %p55 = por %p53, %p54
    %p57 = scmp.ne.s32.totalorder %s40, %s56
    %p58 = scmp.eq.s32.totalorder %s18, 0
    %p59 = por %p57, %p58
    %s60 = sadd.s32 %s20, 1
    %s61 = smul.u32 %s60, 8
    %s62 = sadd.s32 %s27, 1
    %s63 = smul.u32 %s62, 8
    %s64 = ssub.s32 %s19, %s31
    %s65 = ssub.s32 %s61, %s63
    %s66 = sor.u32 %s64, %s65
    %p67 = scmp.eq.s32.totalorder %s66, 0
    %s69 = sadd.s32 %s68, 1
    %s70 = scalar_select %p67, %s68, %s69
    %p73 = pneg %p67
    %p74 = scmp.eq.s32.totalorder %s12, 3
    %p75 = por %p73, %p74
    %p76 = scmp.ne.s32.totalorder %s68, %s71
    %p77 = scmp.eq.s32.totalorder %s12, 0
    %p78 = por %p76, %p77
    %p79 = scmp.ne.s32.totalorder %s68, %s71
    %p80 = scmp.eq.s32.totalorder %s17, 3
    %p81 = por %p79, %p80
    %p82 = scmp.ne.s32.totalorder %s71, %s72
    %p83 = scmp.eq.s32.totalorder %s17, 0
    %p84 = por %p82, %p83
    %p85 = scmp.ne.s32.totalorder %s71, %s72
    %p86 = scmp.eq.s32.totalorder %s18, 3
    %p87 = por %p85, %p86
    %p89 = scmp.ne.s32.totalorder %s72, %s88
    %p90 = scmp.eq.s32.totalorder %s18, 0
    %p91 = por %p89, %p90
    %s93 = sadd.s32 %s92, 1
    %p96 = scmp.eq.s32.totalorder %s12, 3
    %p97 = scmp.ne.s32.totalorder %s92, %s94
    %p98 = scmp.eq.s32.totalorder %s12, 0
    %p99 = por %p97, %p98
    %p100 = scmp.ne.s32.totalorder %s92, %s94
    %p101 = scmp.eq.s32.totalorder %s17, 3
    %p102 = por %p100, %p101
    %p103 = scmp.ne.s32.totalorder %s94, %s95
    %p104 = scmp.eq.s32.totalorder %s17, 0
    %p105 = por %p103, %p104
    %p106 = scmp.ne.s32.totalorder %s94, %s95
    %p107 = scmp.eq.s32.totalorder %s18, 3
    %p108 = por %p106, %p107
    %p110 = scmp.ne.s32.totalorder %s95, %s109
    %p111 = scmp.eq.s32.totalorder %s18, 0
    %p112 = por %p110, %p111
    %s114 = sadd.s32 %s113, 1
    %p117 = scmp.eq.s32.totalorder %s12, 3
    %p118 = scmp.ne.s32.totalorder %s113, %s115
    %p119 = scmp.eq.s32.totalorder %s12, 0
    %p120 = por %p118, %p119
    %p121 = scmp.ne.s32.totalorder %s113, %s115
    %p122 = scmp.eq.s32.totalorder %s17, 3
    %p123 = por %p121, %p122
    %p124 = scmp.ne.s32.totalorder %s115, %s116
    %p125 = scmp.eq.s32.totalorder %s17, 0
    %p126 = por %p124, %p125
    %p127 = scmp.ne.s32.totalorder %s115, %s116
    %p128 = scmp.eq.s32.totalorder %s18, 3
    %p129 = por %p127, %p128
    %p131 = scmp.ne.s32.totalorder %s116, %s130
    %p132 = scmp.eq.s32.totalorder %s18, 0
    %p133 = por %p131, %p132
    %s134 = ssub.s32 %s19, %s31
    %s135 = ssub.s32 %s20, %s27
    %s136 = sor.u32 %s134, %s135
    %p137 = scmp.eq.s32.totalorder %s136, 0
    %s139 = sadd.s32 %s138, 1
    %s140 = scalar_select %p137, %s138, %s139
    %p143 = pneg %p137
    %p144 = scmp.eq.s32.totalorder %s12, 3
    %p145 = por %p143, %p144
    %p146 = scmp.ne.s32.totalorder %s138, %s141
    %p147 = scmp.eq.s32.totalorder %s12, 0
    %p148 = por %p146, %p147
    %p149 = scmp.ne.s32.totalorder %s138, %s141
    %p150 = scmp.eq.s32.totalorder %s17, 3
    %p151 = por %p149, %p150
    %p152 = scmp.ne.s32.totalorder %s141, %s142
    %p153 = scmp.eq.s32.totalorder %s17, 0
    %p154 = por %p152, %p153
    %p155 = scmp.ne.s32.totalorder %s141, %s142
    %p156 = scmp.eq.s32.totalorder %s18, 3
    %p157 = por %p155, %p156
    %p159 = scmp.ne.s32.totalorder %s142, %s158
    %p160 = scmp.eq.s32.totalorder %s18, 0
    %p161 = por %p159, %p160
    %s162 = ssub.s32 %s19, %s31
    %s163 = ssub.s32 %s20, %s27
    %s164 = sor.u32 %s162, %s163
    %p165 = scmp.eq.s32.totalorder %s164, 0
    %s167 = sadd.s32 %s166, 1
    %s168 = scalar_select %p165, %s166, %s167
    %p171 = pneg %p165
    %p172 = scmp.eq.s32.totalorder %s12, 3
    %p173 = por %p171, %p172
    %p174 = scmp.ne.s32.totalorder %s166, %s169
    %p175 = scmp.eq.s32.totalorder %s12, 0
    %p176 = por %p174, %p175
    %p177 = scmp.ne.s32.totalorder %s166, %s169
    %p178 = scmp.eq.s32.totalorder %s17, 3
    %p179 = por %p177, %p178
    %p180 = scmp.ne.s32.totalorder %s169, %s170
    %p181 = scmp.eq.s32.totalorder %s17, 0
    %p182 = por %p180, %p181
    %p183 = scmp.ne.s32.totalorder %s169, %s170
    %p184 = scmp.eq.s32.totalorder %s18, 3
    %p185 = por %p183, %p184
    %p187 = scmp.ne.s32.totalorder %s170, %s186
    %p188 = scmp.eq.s32.totalorder %s18, 0
    %p189 = por %p187, %p188
    %p190 = scmp.le.s32.totalorder 1, %s12
    %p191 = scmp.lt.s32.totalorder %s12, 5
    %p192 = pnand %p190, %p191
    %p193 = pneg %p192
    // Predicated region
    $region9: #{up_forward.2} parent=5 // pred_check
      _
    $region10: #{up_forward.2} parent=5 // pred_check_branch
      %195 = sbr.rel (%p192) target = $region12
    $region11: #{up_forward.2} parent=5 // pred_region
      %s196 = ssub.s32 %s12, 1
      // Predicated region
      $region13: #{up_forward.2} parent=11 // pred_check
        %p197 = pneg %p105
      $region14: #{up_forward.2} parent=11 // pred_check_branch
        %199 = sbr.rel (%p197) target = $region16
      $region15: #{up_forward.2} parent=11 // pred_region
        _
      $region16: #{up_forward.2} parent=11 // pred_fallthru
        _
      // Predicated region
      $region17: #{up_forward.2} parent=11 // pred_check
        %p200 = pneg %p126
      $region18: #{up_forward.2} parent=11 // pred_check_branch
        %202 = sbr.rel (%p200) target = $region20
      $region19: #{up_forward.2} parent=11 // pred_region
        _
      $region20: #{up_forward.2} parent=11 // pred_fallthru
        _
    $region12: #{up_forward.2} parent=5 // pred_fallthru
      _
    %p203 = scmp.lt.s32.totalorder %s12, 4
    // Predicated region
    $region21: #{up_forward.2} parent=5 // pred_check
      %p204 = pneg %p203
    $region22: #{up_forward.2} parent=5 // pred_check_branch
      %206 = sbr.rel (%p204) target = $region24
    $region23: #{up_forward.2} parent=5 // pred_region
      // Predicated region
      $region25: #{up_forward.2} parent=23 // pred_check
        %p207 = pneg %p46
      $region26: #{up_forward.2} parent=23 // pred_check_branch
        %209 = sbr.rel (%p207) target = $region28
      $region27: #{up_forward.2} parent=23 // pred_region
        %s210 = smul.u32 8, %s20
        %s211 = ssub.s32 17, %s210
        %p212 = scmp.lt.s32.totalorder %s211, 8
        %s213 = scalar_select %p212, %s211, 8
        %s214 = smul.u32 64, %s213
        %s215 = smul.u32 %s214, 3
        %p216 = scmp.lt.s32.totalorder %s19, 1
        %s217 = scalar_select %p216, %s19, 1
        %p218 = scmp.lt.s32.totalorder %s210, 16
        %s219 = scalar_select %p218, %s210, 16
        %s220 = smul.addr %s219, 3
        %s221 = smul.addr %s217, 51
        %s222 = sadd.s32 %s220, %s221
        %s223 = smul.addr %s222, 4
        %s224 = scalar_lea.vmem %s0, %s223
        %s225 = smul.u32 8, %s20
        %s226 = ssub.s32 17, %s225
        %p227 = scmp.lt.s32.totalorder %s226, 8
        %s228 = scalar_select %p227, %s226, 8
        %s229 = smul.u32 64, %s228
        %s230 = smul.u32 %s229, 3
      $region28: #{up_forward.2} parent=23 // pred_fallthru
        _
      // Predicated region
      $region29: #{up_forward.2} parent=23 // pred_check
        %p231 = pneg %p78
      $region30: #{up_forward.2} parent=23 // pred_check_branch
        %233 = sbr.rel (%p231) target = $region32
      $region31: #{up_forward.2} parent=23 // pred_region
        %s234 = sadd.s32 %s20, 1
        %s235 = smul.u32 %s234, 8
        %p236 = scmp.lt.s32.totalorder %s19, 1
        %s237 = scalar_select %p236, %s19, 1
        %p238 = scmp.lt.s32.totalorder %s235, 16
        %s239 = scalar_select %p238, %s235, 16
        %s240 = smul.addr %s239, 3
        %s241 = smul.addr %s237, 51
        %s242 = sadd.s32 %s240, %s241
        %s243 = smul.addr %s242, 4
        %s244 = scalar_lea.vmem %s1, %s243
        %s245 = sadd.s32 %s20, 1
        %s246 = smul.u32 %s245, 8
      $region32: #{up_forward.2} parent=23 // pred_fallthru
        _
    $region24: #{up_forward.2} parent=5 // pred_fallthru
      _
    %p247 = scmp.le.s32.totalorder 1, %s12
    %p248 = scmp.lt.s32.totalorder %s12, 5
    %p249 = pnand %p247, %p248
    %p250 = pneg %p249
    // Predicated region
    $region33: #{up_forward.2} parent=5 // pred_check
      _
    $region34: #{up_forward.2} parent=5 // pred_check_branch
      %252 = sbr.rel (%p249) target = $region36
    $region35: #{up_forward.2} parent=5 // pred_region
      %s253 = ssub.s32 %s12, 1
      %s254 = smul.u32 8, %s22
      %s255 = ssub.s32 17, %s254
      %p256 = scmp.lt.s32.totalorder %s255, 8
      %s257 = scalar_select %p256, %s255, 8
      %s258 = smul.u32 64, %s257
      %s259 = smul.u32 %s258, 3
      %p260 = scmp.lt.s32.totalorder %s21, 1
      %s261 = scalar_select %p260, %s21, 1
      %p262 = scmp.lt.s32.totalorder %s254, 16
      %s263 = scalar_select %p262, %s254, 16
      %s264 = smul.addr %s263, 3
      %s265 = smul.addr %s261, 51
      %s266 = sadd.s32 %s264, %s265
      %s267 = smul.addr %s266, 4
      %s268 = scalar_lea.vmem %s0, %s267
      %p269 = pneg %p52
      %p270 = pneg %p49
      %s271 = sadd.s32 %s22, 1
      %s272 = smul.u32 %s271, 8
      %p273 = scmp.lt.s32.totalorder %s21, 1
      %s274 = scalar_select %p273, %s21, 1
      %p275 = scmp.lt.s32.totalorder %s272, 16
      %s276 = scalar_select %p275, %s272, 16
      %s277 = smul.addr %s276, 3
      %s278 = smul.addr %s274, 51
      %s279 = sadd.s32 %s277, %s278
      %s280 = smul.addr %s279, 4
      %s281 = scalar_lea.vmem %s1, %s280
      %p282 = pneg %p84
      %p283 = pneg %p81
      %p284 = pneg %p105
      %p285 = pneg %p102
      %p286 = pneg %p126
      %p287 = pneg %p123
      %p288 = pneg %p154
      %p289 = pneg %p151
      %p290 = scmp.lt.s32.totalorder %s21, 1
      %s291 = scalar_select %p290, %s21, 1
      %p292 = scmp.lt.s32.totalorder %s22, 1
      %s293 = scalar_select %p292, %s22, 1
      %s294 = smul.addr %s291, 2
      %s295 = sadd.s32 %s293, %s294
      %s296 = scalar_lea.vmem %s4, %s295
      %p297 = pneg %p182
      %p298 = pneg %p179
      %p299 = scmp.lt.s32.totalorder %s21, 1
      %s300 = scalar_select %p299, %s21, 1
      %p301 = scmp.lt.s32.totalorder %s22, 1
      %s302 = scalar_select %p301, %s22, 1
      %s303 = smul.addr %s300, 2
      %s304 = sadd.s32 %s302, %s303
      %s305 = scalar_lea.vmem %s5, %s304
      %s306 = smul.u32 8, %s22
      %s307 = ssub.s32 17, %s306
      %p308 = scmp.lt.s32.totalorder %s307, 8
      %s309 = scalar_select %p308, %s307, 8
      %s310 = smul.u32 64, %s309
      %s311 = smul.u32 %s310, 3
      %p312 = scmp.lt.s32.totalorder %s21, 1
      %s313 = scalar_select %p312, %s21, 1
      %p314 = scmp.lt.s32.totalorder %s306, 16
      %s315 = scalar_select %p314, %s306, 16
      %s316 = smul.addr %s315, 3
      %s317 = smul.addr %s313, 51
      %s318 = sadd.s32 %s316, %s317
      %s319 = smul.addr %s318, 4
      %s320 = scalar_lea.vmem %s0, %s319
      %s321 = smul.u32 8, %s22
      %s322 = ssub.s32 17, %s321
      %p323 = scmp.lt.s32.totalorder %s322, 8
      %s324 = scalar_select %p323, %s322, 8
      %s325 = smul.u32 64, %s324
      %s326 = smul.u32 %s325, 3
      %s327 = sadd.s32 %s22, 1
      %s328 = smul.u32 %s327, 8
      %p329 = scmp.lt.s32.totalorder %s21, 1
      %s330 = scalar_select %p329, %s21, 1
      %p331 = scmp.lt.s32.totalorder %s328, 16
      %s332 = scalar_select %p331, %s328, 16
      %s333 = smul.addr %s332, 3
      %s334 = smul.addr %s330, 51
      %s335 = sadd.s32 %s333, %s334
      %s336 = smul.addr %s335, 4
      %s337 = scalar_lea.vmem %s1, %s336
      %s338 = sadd.s32 %s22, 1
      %s339 = smul.u32 %s338, 8
      %p340 = scmp.lt.s32.totalorder %s21, 1
      %s341 = scalar_select %p340, %s21, 1
      %p342 = scmp.lt.s32.totalorder %s22, 1
      %s343 = scalar_select %p342, %s22, 1
      %s344 = smul.addr %s341, 2
      %s345 = sadd.s32 %s343, %s344
      %s346 = scalar_lea.vmem %s4, %s345
      %p347 = scmp.lt.s32.totalorder %s21, 1
      %s348 = scalar_select %p347, %s21, 1
      %p349 = scmp.lt.s32.totalorder %s22, 1
      %s350 = scalar_select %p349, %s22, 1
      %s351 = smul.addr %s348, 2
      %s352 = sadd.s32 %s350, %s351
      %s353 = scalar_lea.vmem %s5, %s352
      %v355 = vld [vmem:[%s320] sm:$0xf]
      %v356 = vld [vmem:[%s320 + $0x4] sm:$0xf]
      %v357 = vld [vmem:[%s320 + $0x8] sm:$0x1]
      %v358 = vld [vmem:[%s320 + $0xc] sm:$0xf]
      %v359 = vld [vmem:[%s320 + $0x10] sm:$0xf]
      %v360 = vld [vmem:[%s320 + $0x14] sm:$0x1]
      %v361 = vld [vmem:[%s320 + $0x18] sm:$0xf]
      %v362 = vld [vmem:[%s320 + $0x1c] sm:$0xf]
      %v363 = vld [vmem:[%s320 + $0x20] sm:$0x1]
      %v364 = vld [vmem:[%s320 + $0x24] sm:$0xf]
      %v365 = vld [vmem:[%s320 + $0x28] sm:$0xf]
      %v366 = vld [vmem:[%s320 + $0x2c] sm:$0x1]
      %v367 = vld [vmem:[%s320 + $0x30] sm:$0xf]
      %v368 = vld [vmem:[%s320 + $0x34] sm:$0xf]
      %v369 = vld [vmem:[%s320 + $0x38] sm:$0x1]
      %v370 = vld [vmem:[%s320 + $0x3c] sm:$0xf]
      %v371 = vld [vmem:[%s320 + $0x40] sm:$0xf]
      %v372 = vld [vmem:[%s320 + $0x44] sm:$0x1]
      %v373 = vld [vmem:[%s320 + $0x48] sm:$0xf]
      %v374 = vld [vmem:[%s320 + $0x4c] sm:$0xf]
      %v375 = vld [vmem:[%s320 + $0x50] sm:$0x1]
      %v376 = vld [vmem:[%s320 + $0x54] sm:$0xf]
      %v377 = vld [vmem:[%s320 + $0x58] sm:$0xf]
      %v378 = vld [vmem:[%s320 + $0x5c] sm:$0x1]
      %v379 = vld [vmem:[%s337] sm:$0xf]
      %v380 = vld [vmem:[%s337 + $0x4] sm:$0xf]
      %v381 = vld [vmem:[%s337 + $0x8] sm:$0x1]
      %v398 = vunpack.c.l.b16 %v355
      %v399 = vunpack.c.l.b16 %v356
      %v400 = vunpack.c.l.b16 %v358
      %v401 = vunpack.c.l.b16 %v359
      %v402 = vunpack.c.l.b16 %v361
      %v403 = vunpack.c.l.b16 %v362
      %v404 = vunpack.c.l.b16 %v364
      %v405 = vunpack.c.l.b16 %v365
      %v406 = vunpack.c.l.b16 %v367
      %v407 = vunpack.c.l.b16 %v368
      %v408 = vunpack.c.l.b16 %v370
      %v409 = vunpack.c.l.b16 %v371
      %v410 = vunpack.c.l.b16 %v373
      %v411 = vunpack.c.l.b16 %v374
      %v412 = vunpack.c.l.b16 %v376
      %v413 = vunpack.c.l.b16 %v377
      %v414 = vpack.c.b16 %v399, %v398
      %v415 = vpack.c.b16 %v401, %v400
      %v416 = vpack.c.b16 %v403, %v402
      %v417 = vpack.c.b16 %v405, %v404
      %v418 = vpack.c.b16 %v407, %v406
      %v419 = vpack.c.b16 %v409, %v408
      %v420 = vpack.c.b16 %v411, %v410
      %v421 = vpack.c.b16 %v413, %v412
      %v430 = vunpack.c.l.b16 %v357
      %v431 = vunpack.c.l.b16 %v360
      %v432 = vunpack.c.l.b16 %v363
      %v433 = vunpack.c.l.b16 %v366
      %v434 = vunpack.c.l.b16 %v369
      %v435 = vunpack.c.l.b16 %v372
      %v436 = vunpack.c.l.b16 %v375
      %v437 = vunpack.c.l.b16 %v378
      %v438 = vpack.c.b16 %v430, %v430
      %v439 = vpack.c.b16 %v431, %v431
      %v440 = vpack.c.b16 %v432, %v432
      %v441 = vpack.c.b16 %v433, %v433
      %v442 = vpack.c.b16 %v434, %v434
      %v443 = vpack.c.b16 %v435, %v435
      %v444 = vpack.c.b16 %v436, %v436
      %v445 = vpack.c.b16 %v437, %v437
      %vm446 = vsmask.f32 7424
      %v448 = vshrl.u32 %v414, 16
      %v450 = vshll.u32 %v414, 16
      %v452 = vrot.slane %v450, 1
      %v453 = vor.u32 %v448, %v452
      %v455 = vshll.u32 %v438, 16
      %v457 = vrot.slane %v455, 1
      %v458 = vsel %vm446, %v453, %v457
      %v460 = vshrl.u32 %v415, 16
      %v462 = vshll.u32 %v415, 16
      %v464 = vrot.slane %v462, 1
      %v465 = vor.u32 %v460, %v464
      %v467 = vshll.u32 %v439, 16
      %v469 = vrot.slane %v467, 1
      %v470 = vsel %vm446, %v465, %v469
      %v472 = vshrl.u32 %v416, 16
      %v474 = vshll.u32 %v416, 16
      %v476 = vrot.slane %v474, 1
      %v477 = vor.u32 %v472, %v476
      %v479 = vshll.u32 %v440, 16
      %v481 = vrot.slane %v479, 1
      %v482 = vsel %vm446, %v477, %v481
      %v484 = vshrl.u32 %v417, 16
      %v486 = vshll.u32 %v417, 16
      %v488 = vrot.slane %v486, 1
      %v489 = vor.u32 %v484, %v488
      %v491 = vshll.u32 %v441, 16
      %v493 = vrot.slane %v491, 1
      %v494 = vsel %vm446, %v489, %v493
      %v496 = vshrl.u32 %v418, 16
      %v498 = vshll.u32 %v418, 16
      %v500 = vrot.slane %v498, 1
      %v501 = vor.u32 %v496, %v500
      %v503 = vshll.u32 %v442, 16
      %v505 = vrot.slane %v503, 1
      %v506 = vsel %vm446, %v501, %v505
      %v508 = vshrl.u32 %v419, 16
      %v510 = vshll.u32 %v419, 16
      %v512 = vrot.slane %v510, 1
      %v513 = vor.u32 %v508, %v512
      %v515 = vshll.u32 %v443, 16
      %v517 = vrot.slane %v515, 1
      %v518 = vsel %vm446, %v513, %v517
      %v520 = vshrl.u32 %v420, 16
      %v522 = vshll.u32 %v420, 16
      %v524 = vrot.slane %v522, 1
      %v525 = vor.u32 %v520, %v524
      %v527 = vshll.u32 %v444, 16
      %v529 = vrot.slane %v527, 1
      %v530 = vsel %vm446, %v525, %v529
      %v532 = vshrl.u32 %v421, 16
      %v534 = vshll.u32 %v421, 16
      %v536 = vrot.slane %v534, 1
      %v537 = vor.u32 %v532, %v536
      %v539 = vshll.u32 %v445, 16
      %v541 = vrot.slane %v539, 1
      %v542 = vsel %vm446, %v537, %v541
      %543 = vrot.lane.b32.xlu0 %v458, 4
      %v544 = vpop.permute.xlu0 %543
      %545 = vrot.lane.b32.xlu0 %v470, 4
      %v546 = vpop.permute.xlu0 %545
      %547 = vrot.lane.b32.xlu0 %v482, 4
      %v548 = vpop.permute.xlu0 %547
      %549 = vrot.lane.b32.xlu0 %v494, 4
      %v550 = vpop.permute.xlu0 %549
      %551 = vrot.lane.b32.xlu0 %v506, 4
      %v552 = vpop.permute.xlu0 %551
      %553 = vrot.lane.b32.xlu0 %v518, 4
      %v554 = vpop.permute.xlu0 %553
      %555 = vrot.lane.b32.xlu0 %v530, 4
      %v556 = vpop.permute.xlu0 %555
      %557 = vrot.lane.b32.xlu0 %v542, 4
      %v558 = vpop.permute.xlu0 %557
      %v561 = vunpack.c.l.b16 %v379
      %v562 = vunpack.c.l.b16 %v380
      %v563 = vpack.c.b16 %v562, %v561
      %564 = vrot.lane.b32.xlu0 %v415, 8
      %v565 = vpop.permute.xlu0 %564
      %566 = vrot.lane.b32.xlu0 %v416, 8
      %v567 = vpop.permute.xlu0 %566
      %568 = vrot.lane.b32.xlu0 %v417, 8
      %v569 = vpop.permute.xlu0 %568
      %570 = vrot.lane.b32.xlu0 %v418, 8
      %v571 = vpop.permute.xlu0 %570
      %572 = vrot.lane.b32.xlu0 %v419, 8
      %v573 = vpop.permute.xlu0 %572
      %574 = vrot.lane.b32.xlu0 %v420, 8
      %v575 = vpop.permute.xlu0 %574
      %576 = vrot.lane.b32.xlu0 %v421, 8
      %v577 = vpop.permute.xlu0 %576
      %578 = vrot.lane.b32.xlu0 %v563, 8
      %v579 = vpop.permute.xlu0 %578
      %v581 = vunpack.c.l.b16 %v381
      %v582 = vpack.c.b16 %v581, %v581
      %v584 = vshrl.u32 %v563, 16
      %v586 = vshll.u32 %v563, 16
      %v588 = vrot.slane %v586, 1
      %v589 = vor.u32 %v584, %v588
      %v591 = vshll.u32 %v582, 16
      %v593 = vrot.slane %v591, 1
      %v594 = vsel %vm446, %v589, %v593
      %595 = vrot.lane.b32.xlu0 %v470, 12
      %v596 = vpop.permute.xlu0 %595
      %597 = vrot.lane.b32.xlu0 %v482, 12
      %v598 = vpop.permute.xlu0 %597
      %599 = vrot.lane.b32.xlu0 %v494, 12
      %v600 = vpop.permute.xlu0 %599
      %601 = vrot.lane.b32.xlu0 %v506, 12
      %v602 = vpop.permute.xlu0 %601
      %603 = vrot.lane.b32.xlu0 %v518, 12
      %v604 = vpop.permute.xlu0 %603
      %605 = vrot.lane.b32.xlu0 %v530, 12
      %v606 = vpop.permute.xlu0 %605
      %607 = vrot.lane.b32.xlu0 %v542, 12
      %v608 = vpop.permute.xlu0 %607
      %609 = vrot.lane.b32.xlu0 %v594, 12
      %v610 = vpop.permute.xlu0 %609
      %vm611 = vcmask 31744
      %v613 = vsel %vm611, %v414, %v544
      %v615 = vsel %vm611, %v415, %v546
      %v617 = vsel %vm611, %v416, %v548
      %v619 = vsel %vm611, %v417, %v550
      %v621 = vsel %vm611, %v418, %v552
      %v623 = vsel %vm611, %v419, %v554
      %v625 = vsel %vm611, %v420, %v556
      %v627 = vsel %vm611, %v421, %v558
      %vm628 = vcmask 64512
      %v630 = vsel %vm628, %v613, %v565
      %v632 = vsel %vm628, %v615, %v567
      %v634 = vsel %vm628, %v617, %v569
      %v636 = vsel %vm628, %v619, %v571
      %v638 = vsel %vm628, %v621, %v573
      %v640 = vsel %vm628, %v623, %v575
      %v642 = vsel %vm628, %v625, %v577
      %v644 = vsel %vm628, %v627, %v579
      %vm645 = vcmask 97280
      %v647 = vsel %vm645, %v630, %v596
      %v649 = vsel %vm645, %v632, %v598
      %v651 = vsel %vm645, %v634, %v600
      %v653 = vsel %vm645, %v636, %v602
      %v655 = vsel %vm645, %v638, %v604
      %v657 = vsel %vm645, %v640, %v606
      %v659 = vsel %vm645, %v642, %v608
      %v661 = vsel %vm645, %v644, %v610
      %v662 = vld [vmem:[%s2] sm:$0xff]
      %v664 = vunpack.c.l.b16 %v662
      %v665 = vunpack.c.h.b16 %v662
      %v666 = vpack.c.b16 %v664, %v664
      %v667 = vpack.c.b16 %v665, %v665
      %v668 = vsel %vm628, %v647, 0
      %v670 = vsel %vm628, %v649, 0
      %v672 = vsel %vm628, %v651, 0
      %v674 = vsel %vm628, %v653, 0
      %v676 = vsel %vm628, %v655, 0
      %v678 = vsel %vm628, %v657, 0
      %v680 = vsel %vm628, %v659, 0
      %v682 = vsel %vm628, %v661, 0
      %vm684 = vcmask 1043456
      %v686 = vsel %vm684, %v666, 0
      %v689 = vsel %vm684, %v667, 0
      %691 = vmatprep.subr.bf16.mxu0 %v689
      %692 = vmatpush1.bf16.msra.mxu0 %v686
      %693 = vmatprep.subr.bf16.mxu0 0
      %694 = vmatpush1.bf16.msra.mxu0 0
      %695 = vmatprep.subr.bf16.mxu0 0
      %696 = vmatpush1.bf16.msra.mxu0 0
      %697 = vmatprep.subr.bf16.mxu0 0
      %698 = vmatpush1.bf16.msra.mxu0 0
      %699 = vmatprep.subr.bf16.mxu0 0
      %700 = vmatpush1.bf16.msra.mxu0 0
      %701 = vmatprep.subr.bf16.mxu0 0
      %702 = vmatpush1.bf16.msra.mxu0 0
      %703 = vmatprep.subr.bf16.mxu0 0
      %704 = vmatpush1.bf16.msra.mxu0 0
      %705 = vmatprep.subr.bf16.mxu0 0
      %706 = vmatpush1.bf16.msra.mxu0 0
      %707 = vmatprep.subr.bf16.mxu0 0
      %708 = vmatpush1.bf16.msra.mxu0 0
      %709 = vmatprep.subr.bf16.mxu0 0
      %710 = vmatpush1.bf16.msra.mxu0 0
      %711 = vmatprep.subr.bf16.mxu0 0
      %712 = vmatpush1.bf16.msra.mxu0 0
      %713 = vmatprep.subr.bf16.mxu0 0
      %714 = vmatpush1.bf16.msra.mxu0 0
      %715 = vmatprep.subr.bf16.mxu0 0
      %716 = vmatpush1.bf16.msra.mxu0 0
      %717 = vmatprep.subr.bf16.mxu0 0
      %718 = vmatpush1.bf16.msra.mxu0 0
      %719 = vmatprep.subr.bf16.mxu0 0
      %720 = vmatpush1.bf16.msra.mxu0 0
      %721 = vmatprep.subr.bf16.mxu0 0
      %722 = vmatpush1.bf16.msra.mxu0 0
      %723 = vmatprep.mubr.bf16.mxu0 0
      %724 = vmatmul.mubr.bf16.gmra.mrb[0].mxu0 %v668
      %v725 = vpop.f32.mrb[0].mxu0
      %v726 = vadd.f32 0.0, %v725
      %v727 = vpop.f32.mrb[0].mxu0
      %v728 = vadd.f32 0.0, %v727
      %v729 = vpop.f32.mrb[0].mxu0
      %v730 = vadd.f32 0.0, %v729
      %v731 = vpop.f32.mrb[0].mxu0
      %v732 = vadd.f32 0.0, %v731
      %733 = vmatprep.mubr.bf16.mxu0 0
      %734 = vmatmul.mubr.bf16.gmra.mrb[0].mxu0 %v670
      %v735 = vpop.f32.mrb[0].mxu0
      %v736 = vadd.f32 0.0, %v735
      %v737 = vpop.f32.mrb[0].mxu0
      %v738 = vadd.f32 0.0, %v737
      %v739 = vpop.f32.mrb[0].mxu0
      %v740 = vadd.f32 0.0, %v739
      %v741 = vpop.f32.mrb[0].mxu0
      %v742 = vadd.f32 0.0, %v741
      %743 = vmatprep.mubr.bf16.mxu0 0
      %744 = vmatmul.mubr.bf16.gmra.mrb[0].mxu0 %v672
      %v745 = vpop.f32.mrb[0].mxu0
      %v746 = vadd.f32 0.0, %v745
      %v747 = vpop.f32.mrb[0].mxu0
      %v748 = vadd.f32 0.0, %v747
      %v749 = vpop.f32.mrb[0].mxu0
      %v750 = vadd.f32 0.0, %v749
      %v751 = vpop.f32.mrb[0].mxu0
      %v752 = vadd.f32 0.0, %v751
      %753 = vmatprep.mubr.bf16.mxu0 0
      %754 = vmatmul.mubr.bf16.gmra.mrb[0].mxu0 %v674
      %v755 = vpop.f32.mrb[0].mxu0
      %v756 = vadd.f32 0.0, %v755
      %v757 = vpop.f32.mrb[0].mxu0
      %v758 = vadd.f32 0.0, %v757
      %v759 = vpop.f32.mrb[0].mxu0
      %v760 = vadd.f32 0.0, %v759
      %v761 = vpop.f32.mrb[0].mxu0
      %v762 = vadd.f32 0.0, %v761
      %763 = vmatprep.mubr.bf16.mxu0 0
      %764 = vmatmul.mubr.bf16.gmra.mrb[0].mxu0 %v676
      %v765 = vpop.f32.mrb[0].mxu0
      %v766 = vadd.f32 0.0, %v765
      %v767 = vpop.f32.mrb[0].mxu0
      %v768 = vadd.f32 0.0, %v767
      %v769 = vpop.f32.mrb[0].mxu0
      %v770 = vadd.f32 0.0, %v769
      %v771 = vpop.f32.mrb[0].mxu0
      %v772 = vadd.f32 0.0, %v771
      %773 = vmatprep.mubr.bf16.mxu0 0
      %774 = vmatmul.mubr.bf16.gmra.mrb[0].mxu0 %v678
      %v775 = vpop.f32.mrb[0].mxu0
      %v776 = vadd.f32 0.0, %v775
      %v777 = vpop.f32.mrb[0].mxu0
      %v778 = vadd.f32 0.0, %v777
      %v779 = vpop.f32.mrb[0].mxu0
      %v780 = vadd.f32 0.0, %v779
      %v781 = vpop.f32.mrb[0].mxu0
      %v782 = vadd.f32 0.0, %v781
      %783 = vmatprep.mubr.bf16.mxu0 0
      %784 = vmatmul.mubr.bf16.gmra.mrb[0].mxu0 %v680
      %v785 = vpop.f32.mrb[0].mxu0
      %v786 = vadd.f32 0.0, %v785
      %v787 = vpop.f32.mrb[0].mxu0
      %v788 = vadd.f32 0.0, %v787
      %v789 = vpop.f32.mrb[0].mxu0
      %v790 = vadd.f32 0.0, %v789
      %v791 = vpop.f32.mrb[0].mxu0
      %v792 = vadd.f32 0.0, %v791
      %793 = vmatprep.mubr.bf16.mxu0 0
      %794 = vmatmul.mubr.bf16.gmra.mrb[0].mxu0 %v682
      %v795 = vpop.f32.mrb[0].mxu0
      %v796 = vadd.f32 0.0, %v795
      %v797 = vpop.f32.mrb[0].mxu0
      %v798 = vadd.f32 0.0, %v797
      %v799 = vpop.f32.mrb[0].mxu0
      %v800 = vadd.f32 0.0, %v799
      %v801 = vpop.f32.mrb[0].mxu0
      %v802 = vadd.f32 0.0, %v801
      %803 = vdwg.mxu0
      %v804 = vld [vmem:[%s3] sm:$0xff]
      %v805 = vld [vmem:[%s3 + $0x8] sm:$0xff]
      %v808 = vunpack.c.l.b16 %v804
      %v809 = vunpack.c.h.b16 %v804
      %v810 = vunpack.c.l.b16 %v805
      %v811 = vunpack.c.h.b16 %v805
      %v812 = vpack.c.b16 %v810, %v808
      %v813 = vpack.c.b16 %v811, %v809
      %vm816 = vcmask 130048
      %v817 = vsel %vm816, %v647, 0
      %v819 = vsel %vm816, %v649, 0
      %v821 = vsel %vm816, %v651, 0
      %v823 = vsel %vm816, %v653, 0
      %v825 = vsel %vm816, %v655, 0
      %v827 = vsel %vm816, %v657, 0
      %v829 = vsel %vm816, %v659, 0
      %v831 = vsel %vm816, %v661, 0
      %833 = vmatprep.subr.bf16.mxu0 %v813
      %834 = vmatpush1.bf16.msra.mxu0 %v812
      %835 = vmatprep.subr.bf16.mxu0 0
      %836 = vmatpush1.bf16.msra.mxu0 0
      %837 = vmatprep.subr.bf16.mxu0 0
      %838 = vmatpush1.bf16.msra.mxu0 0
      %839 = vmatprep.subr.bf16.mxu0 0
      %840 = vmatpush1.bf16.msra.mxu0 0
      %841 = vmatprep.subr.bf16.mxu0 0
      %842 = vmatpush1.bf16.msra.mxu0 0
      %843 = vmatprep.subr.bf16.mxu0 0
      %844 = vmatpush1.bf16.msra.mxu0 0
      %845 = vmatprep.subr.bf16.mxu0 0
      %846 = vmatpush1.bf16.msra.mxu0 0
      %847 = vmatprep.subr.bf16.mxu0 0
      %848 = vmatpush1.bf16.msra.mxu0 0
      %849 = vmatprep.subr.bf16.mxu0 0
      %850 = vmatpush1.bf16.msra.mxu0 0
      %851 = vmatprep.subr.bf16.mxu0 0
      %852 = vmatpush1.bf16.msra.mxu0 0
      %853 = vmatprep.subr.bf16.mxu0 0
      %854 = vmatpush1.bf16.msra.mxu0 0
      %855 = vmatprep.subr.bf16.mxu0 0
      %856 = vmatpush1.bf16.msra.mxu0 0
      %857 = vmatprep.subr.bf16.mxu0 0
      %858 = vmatpush1.bf16.msra.mxu0 0
      %859 = vmatprep.subr.bf16.mxu0 0
      %860 = vmatpush1.bf16.msra.mxu0 0
      %861 = vmatprep.subr.bf16.mxu0 0
      %862 = vmatpush1.bf16.msra.mxu0 0
      %863 = vmatprep.subr.bf16.mxu0 0
      %864 = vmatpush1.bf16.msra.mxu0 0
      %865 = vmatprep.mubr.bf16.mxu0 0
      %866 = vmatmul.mubr.bf16.gmra.mrb[0].mxu0 %v817
      %v867 = vpop.f32.mrb[0].mxu0
      %v868 = vadd.f32 0.0, %v867
      %v869 = vpop.f32.mrb[0].mxu0
      %v870 = vadd.f32 0.0, %v869
      %v871 = vpop.f32.mrb[0].mxu0
      %v872 = vadd.f32 0.0, %v871
      %v873 = vpop.f32.mrb[0].mxu0
      %v874 = vadd.f32 0.0, %v873
      %875 = vmatprep.mubr.bf16.mxu0 0
      %876 = vmatmul.mubr.bf16.gmra.mrb[0].mxu0 %v819
      %v877 = vpop.f32.mrb[0].mxu0
      %v878 = vadd.f32 0.0, %v877
      %v879 = vpop.f32.mrb[0].mxu0
      %v880 = vadd.f32 0.0, %v879
      %v881 = vpop.f32.mrb[0].mxu0
      %v882 = vadd.f32 0.0, %v881
      %v883 = vpop.f32.mrb[0].mxu0
      %v884 = vadd.f32 0.0, %v883
      %885 = vmatprep.mubr.bf16.mxu0 0
      %886 = vmatmul.mubr.bf16.gmra.mrb[0].mxu0 %v821
      %v887 = vpop.f32.mrb[0].mxu0
      %v888 = vadd.f32 0.0, %v887
      %v889 = vpop.f32.mrb[0].mxu0
      %v890 = vadd.f32 0.0, %v889
      %v891 = vpop.f32.mrb[0].mxu0
      %v892 = vadd.f32 0.0, %v891
      %v893 = vpop.f32.mrb[0].mxu0
      %v894 = vadd.f32 0.0, %v893
      %895 = vmatprep.mubr.bf16.mxu0 0
      %896 = vmatmul.mubr.bf16.gmra.mrb[0].mxu0 %v823
      %v897 = vpop.f32.mrb[0].mxu0
      %v898 = vadd.f32 0.0, %v897
      %v899 = vpop.f32.mrb[0].mxu0
      %v900 = vadd.f32 0.0, %v899
      %v901 = vpop.f32.mrb[0].mxu0
      %v902 = vadd.f32 0.0, %v901
      %v903 = vpop.f32.mrb[0].mxu0
      %v904 = vadd.f32 0.0, %v903
      %905 = vmatprep.mubr.bf16.mxu0 0
      %906 = vmatmul.mubr.bf16.gmra.mrb[0].mxu0 %v825
      %v907 = vpop.f32.mrb[0].mxu0
      %v908 = vadd.f32 0.0, %v907
      %v909 = vpop.f32.mrb[0].mxu0
      %v910 = vadd.f32 0.0, %v909
      %v911 = vpop.f32.mrb[0].mxu0
      %v912 = vadd.f32 0.0, %v911
      %v913 = vpop.f32.mrb[0].mxu0
      %v914 = vadd.f32 0.0, %v913
      %915 = vmatprep.mubr.bf16.mxu0 0
      %916 = vmatmul.mubr.bf16.gmra.mrb[0].mxu0 %v827
      %v917 = vpop.f32.mrb[0].mxu0
      %v918 = vadd.f32 0.0, %v917
      %v919 = vpop.f32.mrb[0].mxu0
      %v920 = vadd.f32 0.0, %v919
      %v921 = vpop.f32.mrb[0].mxu0
      %v922 = vadd.f32 0.0, %v921
      %v923 = vpop.f32.mrb[0].mxu0
      %v924 = vadd.f32 0.0, %v923
      %925 = vmatprep.mubr.bf16.mxu0 0
      %926 = vmatmul.mubr.bf16.gmra.mrb[0].mxu0 %v829
      %v927 = vpop.f32.mrb[0].mxu0
      %v928 = vadd.f32 0.0, %v927
      %v929 = vpop.f32.mrb[0].mxu0
      %v930 = vadd.f32 0.0, %v929
      %v931 = vpop.f32.mrb[0].mxu0
      %v932 = vadd.f32 0.0, %v931
      %v933 = vpop.f32.mrb[0].mxu0
      %v934 = vadd.f32 0.0, %v933
      %935 = vmatprep.mubr.bf16.mxu0 0
      %936 = vmatmul.mubr.bf16.gmra.mrb[0].mxu0 %v831
      %v937 = vpop.f32.mrb[0].mxu0
      %v938 = vadd.f32 0.0, %v937
      %v939 = vpop.f32.mrb[0].mxu0
      %v940 = vadd.f32 0.0, %v939
      %v941 = vpop.f32.mrb[0].mxu0
      %v942 = vadd.f32 0.0, %v941
      %v943 = vpop.f32.mrb[0].mxu0
      %v944 = vadd.f32 0.0, %v943
      %945 = vdwg.mxu0
      %v946 = vadd.f32 %v726, %v730
      %v947 = vadd.f32 %v946, %v736
      %v948 = vadd.f32 %v947, %v740
      %v949 = vadd.f32 %v948, %v746
      %v950 = vadd.f32 %v949, %v750
      %v951 = vadd.f32 %v950, %v756
      %v952 = vadd.f32 %v951, %v760
      %v953 = vadd.f32 %v952, %v766
      %v954 = vadd.f32 %v953, %v770
      %v955 = vadd.f32 %v954, %v776
      %v956 = vadd.f32 %v955, %v780
      %v957 = vadd.f32 %v956, %v786
      %v958 = vadd.f32 %v957, %v790
      %v959 = vadd.f32 %v958, %v796
      %v960 = vadd.f32 %v959, %v800
      %v961 = vrot.slane %v960, 4
      %v962 = vadd.f32 %v960, %v961
      %v963 = vrot.slane %v962, 2
      %v964 = vadd.f32 %v962, %v963
      %v965 = vrot.slane %v964, 1
      %v966 = vadd.f32 %v964, %v965
      %v967 = vadd.f32 %v728, %v732
      %v968 = vadd.f32 %v967, %v738
      %v969 = vadd.f32 %v968, %v742
      %v970 = vadd.f32 %v969, %v748
      %v971 = vadd.f32 %v970, %v752
      %v972 = vadd.f32 %v971, %v758
      %v973 = vadd.f32 %v972, %v762
      %v974 = vadd.f32 %v973, %v768
      %v975 = vadd.f32 %v974, %v772
      %v976 = vadd.f32 %v975, %v778
      %v977 = vadd.f32 %v976, %v782
      %v978 = vadd.f32 %v977, %v788
      %v979 = vadd.f32 %v978, %v792
      %v980 = vadd.f32 %v979, %v798
      %v981 = vadd.f32 %v980, %v802
      %v982 = vrot.slane %v981, 4
      %v983 = vadd.f32 %v981, %v982
      %v984 = vrot.slane %v983, 2
      %v985 = vadd.f32 %v983, %v984
      %v986 = vrot.slane %v985, 1
      %v987 = vadd.f32 %v985, %v986
      %v988 = vadd.f32 %v868, %v872
      %v989 = vadd.f32 %v988, %v878
      %v990 = vadd.f32 %v989, %v882
      %v991 = vadd.f32 %v990, %v888
      %v992 = vadd.f32 %v991, %v892
      %v993 = vadd.f32 %v992, %v898
      %v994 = vadd.f32 %v993, %v902
      %v995 = vadd.f32 %v994, %v908
      %v996 = vadd.f32 %v995, %v912
      %v997 = vadd.f32 %v996, %v918
      %v998 = vadd.f32 %v997, %v922
      %v999 = vadd.f32 %v998, %v928
      %v1000 = vadd.f32 %v999, %v932
      %v1001 = vadd.f32 %v1000, %v938
      %v1002 = vadd.f32 %v1001, %v942
      %v1003 = vrot.slane %v1002, 4
      %v1004 = vadd.f32 %v1002, %v1003
      %v1005 = vrot.slane %v1004, 2
      %v1006 = vadd.f32 %v1004, %v1005
      %v1007 = vrot.slane %v1006, 1
      %v1008 = vadd.f32 %v1006, %v1007
      %v1009 = vadd.f32 %v870, %v874
      %v1010 = vadd.f32 %v1009, %v880
      %v1011 = vadd.f32 %v1010, %v884
      %v1012 = vadd.f32 %v1011, %v890
      %v1013 = vadd.f32 %v1012, %v894
      %v1014 = vadd.f32 %v1013, %v900
      %v1015 = vadd.f32 %v1014, %v904
      %v1016 = vadd.f32 %v1015, %v910
      %v1017 = vadd.f32 %v1016, %v914
      %v1018 = vadd.f32 %v1017, %v920
      %v1019 = vadd.f32 %v1018, %v924
      %v1020 = vadd.f32 %v1019, %v930
      %v1021 = vadd.f32 %v1020, %v934
      %v1022 = vadd.f32 %v1021, %v940
      %v1023 = vadd.f32 %v1022, %v944
      %v1024 = vrot.slane %v1023, 4
      %v1025 = vadd.f32 %v1023, %v1024
      %v1026 = vrot.slane %v1025, 2
      %v1027 = vadd.f32 %v1025, %v1026
      %v1028 = vrot.slane %v1027, 1
      %v1029 = vadd.f32 %v1027, %v1028
      %v1030 = vadd.f32 %v966, %v1008
      %v1031 = vadd.f32 %v987, %v1029
      %v1032 = vmul.f32 %v726, %v726
      %v1033 = vmul.f32 %v728, %v728
      %v1034 = vmul.f32 %v730, %v730
      %v1035 = vmul.f32 %v732, %v732
      %v1036 = vmul.f32 %v736, %v736
      %v1037 = vmul.f32 %v738, %v738
      %v1038 = vmul.f32 %v740, %v740
      %v1039 = vmul.f32 %v742, %v742
      %v1040 = vmul.f32 %v746, %v746
      %v1041 = vmul.f32 %v748, %v748
      %v1042 = vmul.f32 %v750, %v750
      %v1043 = vmul.f32 %v752, %v752
      %v1044 = vmul.f32 %v756, %v756
      %v1045 = vmul.f32 %v758, %v758
      %v1046 = vmul.f32 %v760, %v760
      %v1047 = vmul.f32 %v762, %v762
      %v1048 = vmul.f32 %v766, %v766
      %v1049 = vmul.f32 %v768, %v768
      %v1050 = vmul.f32 %v770, %v770
      %v1051 = vmul.f32 %v772, %v772
      %v1052 = vmul.f32 %v776, %v776
      %v1053 = vmul.f32 %v778, %v778
      %v1054 = vmul.f32 %v780, %v780
      %v1055 = vmul.f32 %v782, %v782
      %v1056 = vmul.f32 %v786, %v786
      %v1057 = vmul.f32 %v788, %v788
      %v1058 = vmul.f32 %v790, %v790
      %v1059 = vmul.f32 %v792, %v792
      %v1060 = vmul.f32 %v796, %v796
      %v1061 = vmul.f32 %v798, %v798
      %v1062 = vmul.f32 %v800, %v800
      %v1063 = vmul.f32 %v802, %v802
      %v1064 = vadd.f32 %v1032, %v1034
      %v1065 = vadd.f32 %v1064, %v1036
      %v1066 = vadd.f32 %v1065, %v1038
      %v1067 = vadd.f32 %v1066, %v1040
      %v1068 = vadd.f32 %v1067, %v1042
      %v1069 = vadd.f32 %v1068, %v1044
      %v1070 = vadd.f32 %v1069, %v1046
      %v1071 = vadd.f32 %v1070, %v1048
      %v1072 = vadd.f32 %v1071, %v1050
      %v1073 = vadd.f32 %v1072, %v1052
      %v1074 = vadd.f32 %v1073, %v1054
      %v1075 = vadd.f32 %v1074, %v1056
      %v1076 = vadd.f32 %v1075, %v1058
      %v1077 = vadd.f32 %v1076, %v1060
      %v1078 = vadd.f32 %v1077, %v1062
      %v1079 = vrot.slane %v1078, 4
      %v1080 = vadd.f32 %v1078, %v1079
      %v1081 = vrot.slane %v1080, 2
      %v1082 = vadd.f32 %v1080, %v1081
      %v1083 = vrot.slane %v1082, 1
      %v1084 = vadd.f32 %v1082, %v1083
      %v1085 = vadd.f32 %v1033, %v1035
      %v1086 = vadd.f32 %v1085, %v1037
      %v1087 = vadd.f32 %v1086, %v1039
      %v1088 = vadd.f32 %v1087, %v1041
      %v1089 = vadd.f32 %v1088, %v1043
      %v1090 = vadd.f32 %v1089, %v1045
      %v1091 = vadd.f32 %v1090, %v1047
      %v1092 = vadd.f32 %v1091, %v1049
      %v1093 = vadd.f32 %v1092, %v1051
      %v1094 = vadd.f32 %v1093, %v1053
      %v1095 = vadd.f32 %v1094, %v1055
      %v1096 = vadd.f32 %v1095, %v1057
      %v1097 = vadd.f32 %v1096, %v1059
      %v1098 = vadd.f32 %v1097, %v1061
      %v1099 = vadd.f32 %v1098, %v1063
      %v1100 = vrot.slane %v1099, 4
      %v1101 = vadd.f32 %v1099, %v1100
      %v1102 = vrot.slane %v1101, 2
      %v1103 = vadd.f32 %v1101, %v1102
      %v1104 = vrot.slane %v1103, 1
      %v1105 = vadd.f32 %v1103, %v1104
      %v1106 = vmul.f32 %v868, %v868
      %v1107 = vmul.f32 %v870, %v870
      %v1108 = vmul.f32 %v872, %v872
      %v1109 = vmul.f32 %v874, %v874
      %v1110 = vmul.f32 %v878, %v878
      %v1111 = vmul.f32 %v880, %v880
      %v1112 = vmul.f32 %v882, %v882
      %v1113 = vmul.f32 %v884, %v884
      %v1114 = vmul.f32 %v888, %v888
      %v1115 = vmul.f32 %v890, %v890
      %v1116 = vmul.f32 %v892, %v892
      %v1117 = vmul.f32 %v894, %v894
      %v1118 = vmul.f32 %v898, %v898
      %v1119 = vmul.f32 %v900, %v900
      %v1120 = vmul.f32 %v902, %v902
      %v1121 = vmul.f32 %v904, %v904
      %v1122 = vmul.f32 %v908, %v908
      %v1123 = vmul.f32 %v910, %v910
      %v1124 = vmul.f32 %v912, %v912
      %v1125 = vmul.f32 %v914, %v914
      %v1126 = vmul.f32 %v918, %v918
      %v1127 = vmul.f32 %v920, %v920
      %v1128 = vmul.f32 %v922, %v922
      %v1129 = vmul.f32 %v924, %v924
      %v1130 = vmul.f32 %v928, %v928
      %v1131 = vmul.f32 %v930, %v930
      %v1132 = vmul.f32 %v932, %v932
      %v1133 = vmul.f32 %v934, %v934
      %v1134 = vmul.f32 %v938, %v938
      %v1135 = vmul.f32 %v940, %v940
      %v1136 = vmul.f32 %v942, %v942
      %v1137 = vmul.f32 %v944, %v944
      %v1138 = vadd.f32 %v1106, %v1108
      %v1139 = vadd.f32 %v1138, %v1110
      %v1140 = vadd.f32 %v1139, %v1112
      %v1141 = vadd.f32 %v1140, %v1114
      %v1142 = vadd.f32 %v1141, %v1116
      %v1143 = vadd.f32 %v1142, %v1118
      %v1144 = vadd.f32 %v1143, %v1120
      %v1145 = vadd.f32 %v1144, %v1122
      %v1146 = vadd.f32 %v1145, %v1124
      %v1147 = vadd.f32 %v1146, %v1126
      %v1148 = vadd.f32 %v1147, %v1128
      %v1149 = vadd.f32 %v1148, %v1130
      %v1150 = vadd.f32 %v1149, %v1132
      %v1151 = vadd.f32 %v1150, %v1134
      %v1152 = vadd.f32 %v1151, %v1136
      %v1153 = vrot.slane %v1152, 4
      %v1154 = vadd.f32 %v1152, %v1153
      %v1155 = vrot.slane %v1154, 2
      %v1156 = vadd.f32 %v1154, %v1155
      %v1157 = vrot.slane %v1156, 1
      %v1158 = vadd.f32 %v1156, %v1157
      %v1159 = vadd.f32 %v1107, %v1109
      %v1160 = vadd.f32 %v1159, %v1111
      %v1161 = vadd.f32 %v1160, %v1113
      %v1162 = vadd.f32 %v1161, %v1115
      %v1163 = vadd.f32 %v1162, %v1117
      %v1164 = vadd.f32 %v1163, %v1119
      %v1165 = vadd.f32 %v1164, %v1121
      %v1166 = vadd.f32 %v1165, %v1123
      %v1167 = vadd.f32 %v1166, %v1125
      %v1168 = vadd.f32 %v1167, %v1127
      %v1169 = vadd.f32 %v1168, %v1129
      %v1170 = vadd.f32 %v1169, %v1131
      %v1171 = vadd.f32 %v1170, %v1133
      %v1172 = vadd.f32 %v1171, %v1135
      %v1173 = vadd.f32 %v1172, %v1137
      %v1174 = vrot.slane %v1173, 4
      %v1175 = vadd.f32 %v1173, %v1174
      %v1176 = vrot.slane %v1175, 2
      %v1177 = vadd.f32 %v1175, %v1176
      %v1178 = vrot.slane %v1177, 1
      %v1179 = vadd.f32 %v1177, %v1178
      %v1180 = vadd.f32 %v1084, %v1158
      %v1181 = vadd.f32 %v1105, %v1179
      %v1182 = vadd.f32 %v1030, %v1031
      %v1183 = vadd.f32 %v1180, %v1181
      %1184 = vst [vmem:[%s346] sm:$0x1] %v1182
      %1185 = vst [vmem:[%s353] sm:$0x1] %v1183
      %p1186 = scmp.lt.s32.totalorder %s21, 1
      %s1187 = scalar_select %p1186, %s21, 1
      %p1188 = scmp.lt.s32.totalorder %s22, 1
      %s1189 = scalar_select %p1188, %s22, 1
      %s1190 = smul.addr %s1187, 2
      %s1191 = sadd.s32 %s1189, %s1190
      %s1192 = scalar_lea.vmem %s4, %s1191
      %p1193 = scmp.lt.s32.totalorder %s21, 1
      %s1194 = scalar_select %p1193, %s21, 1
      %p1195 = scmp.lt.s32.totalorder %s22, 1
      %s1196 = scalar_select %p1195, %s22, 1
      %s1197 = smul.addr %s1194, 2
      %s1198 = sadd.s32 %s1196, %s1197
      %s1199 = scalar_lea.vmem %s5, %s1198
      // Predicated region
      $region37: #{up_forward.2} parent=35 // pred_check
        %p1200 = pneg %p151
      $region38: #{up_forward.2} parent=35 // pred_check_branch
        %1202 = sbr.rel (%p1200) target = $region40
      $region39: #{up_forward.2} parent=35 // pred_region
        _
      $region40: #{up_forward.2} parent=35 // pred_fallthru
        _
      // Predicated region
      $region41: #{up_forward.2} parent=35 // pred_check
        %p1203 = pneg %p179
      $region42: #{up_forward.2} parent=35 // pred_check_branch
        %1205 = sbr.rel (%p1203) target = $region44
      $region43: #{up_forward.2} parent=35 // pred_region
        _
      $region44: #{up_forward.2} parent=35 // pred_fallthru
        _
    $region36: #{up_forward.2} parent=5 // pred_fallthru
      _
    %p1206 = scmp.le.s32.totalorder 2, %s12
    // Predicated region
    $region45: #{up_forward.2} parent=5 // pred_check
      %p1207 = pneg %p1206
    $region46: #{up_forward.2} parent=5 // pred_check_branch
      %1209 = sbr.rel (%p1207) target = $region48
    $region47: #{up_forward.2} parent=5 // pred_region
      %s1210 = ssub.s32 %s12, 2
      // Predicated region
      $region49: #{up_forward.2} parent=47 // pred_check
        %p1211 = pneg %p157
      $region50: #{up_forward.2} parent=47 // pred_check_branch
        %1213 = sbr.rel (%p1211) target = $region52
      $region51: #{up_forward.2} parent=47 // pred_region
        %p1214 = scmp.lt.s32.totalorder %s23, 1
        %s1215 = scalar_select %p1214, %s23, 1
        %p1216 = scmp.lt.s32.totalorder %s24, 1
        %s1217 = scalar_select %p1216, %s24, 1
        %s1218 = smul.addr %s1215, 2
        %s1219 = sadd.s32 %s1217, %s1218
        %s1220 = scalar_lea.vmem %s4, %s1219
      $region52: #{up_forward.2} parent=47 // pred_fallthru
        _
      // Predicated region
      $region53: #{up_forward.2} parent=47 // pred_check
        %p1221 = pneg %p185
      $region54: #{up_forward.2} parent=47 // pred_check_branch
        %1223 = sbr.rel (%p1221) target = $region56
      $region55: #{up_forward.2} parent=47 // pred_region
        %p1224 = scmp.lt.s32.totalorder %s23, 1
        %s1225 = scalar_select %p1224, %s23, 1
        %p1226 = scmp.lt.s32.totalorder %s24, 1
        %s1227 = scalar_select %p1226, %s24, 1
        %s1228 = smul.addr %s1225, 2
        %s1229 = sadd.s32 %s1227, %s1228
        %s1230 = scalar_lea.vmem %s5, %s1229
      $region56: #{up_forward.2} parent=47 // pred_fallthru
        _
    $region48: #{up_forward.2} parent=5 // pred_fallthru
      _
  $region6: #{up_forward.2} parent=0 // loop_footer
    %s16 = sadd.s32 1, %s12
  $region7: #{up_forward.2} parent=0 // loop_footer_branch
    %11 = sbr.rel target = $region3
  $region8: #{up_forward.2} parent=0 // loop_exit
    _

// kernel: up_forward.3
$region0: #{up_forward.3}
  #allocation0 [shape = 'u32[]', space=smem, size = 0x4, offset = 0x4, fixed_abs, tag = 'smem constant byte address 0x4 - core index']
  #allocation1 [shape = 'u32[144,128]{1,0:T(1,128)}', space=vmem, size = 0x12000, scoped, tag = 'internal scratch']
  %s0 = inlined_call_operand.vmem [shape: bf16[2,17,17,4], index: 0, kind: input, shape index: {}, may-alias: {0,1}]
  %s1 = inlined_call_operand.vmem [shape: bf16[2,17,17,4], index: 1, kind: input, shape index: {}, may-alias: {0,1}]
  %s2 = inlined_call_operand.vmem [shape: bf16[8,256], index: 2, kind: input, shape index: {}]
  %s3 = inlined_call_operand.vmem [shape: bf16[16,256], index: 3, kind: input, shape index: {}]
  %s4 = inlined_call_operand.vmem [shape: f32[1,128], index: 4, kind: input, shape index: {}]
  %s5 = inlined_call_operand.vmem [shape: f32[1,128], index: 5, kind: input, shape index: {}]
  %s6 = inlined_call_operand.vmem [shape: f32[8,16,16,128], index: 6, kind: output, shape index: {}]
  %s7 = sld [smem:[#allocation0]]
  $region91: #{up_forward.3} parent=0
    _
  %s9 = ssub.s32 1, %s7
  %s10 = scalar_select 0, %s9, %s7
  $region1: #{up_forward.3} parent=0
    #allocation2 [shape = 'u8[524288]{0}', space=vmem, size = 0x80000, scoped, tag = 'output window, operand 0']
    loop: start=0, step=1, limit=6
    $region2: #{up_forward.3} parent=1 // loop_pre_header
      _
    $region3: #{up_forward.3} parent=1 // loop_header
      %s12 = sphi 0, %s16
      %p13 = scmp.ge.s32.totalorder %s12, 6
      %s19 = sphi 0, %s31
      %s20 = sphi 0, %s27
      %s21 = sphi 0, %s19
      %s22 = sphi 0, %s20
      %s23 = sphi 0, %s21
      %s24 = sphi 0, %s22
      %s36 = sphi 0, %s38
      %s39 = sphi 0, %s36
      %s40 = sphi 0, %s39
      %s56 = sphi 0, %s40
      %s68 = sphi 0, %s70
      %s71 = sphi 0, %s68
      %s72 = sphi 0, %s71
      %s88 = sphi 0, %s72
      %s92 = sphi 0, %s92
      %s94 = sphi 0, %s92
      %s95 = sphi 0, %s94
      %s109 = sphi 0, %s95
      %s113 = sphi 0, %s113
      %s115 = sphi 0, %s113
      %s116 = sphi 0, %s115
      %s130 = sphi 0, %s116
      %s134 = sphi 0, %s134
      %s136 = sphi 0, %s134
      %s137 = sphi 0, %s136
      %s151 = sphi 0, %s137
      %s155 = sphi 0, %s155
      %s157 = sphi 0, %s155
      %s158 = sphi 0, %s157
      %s172 = sphi 0, %s158
      %s180 = sphi 0, %s182
      %s183 = sphi 0, %s180
      %s184 = sphi 0, %s183
      %s200 = sphi 0, %s184
    $region4: #{up_forward.3} parent=1 // loop_header_branch
      %15 = sbr.rel (%p13) target = $region8
    $region5: #{up_forward.3} parent=1 // loop_body
      %s17 = ssub.s32 %s12, 1
      %s18 = ssub.s32 %s12, 2
      %s25 = sadd.s32 1, %s20
      %p26 = scmp.ge.s32.totalorder %s25, 2
      %s27 = scalar_select %p26, 0, %s25
      %s28 = sadd.s32 1, %s19
      %s29 = scalar_select %p26, %s28, %s19
      %p30 = scmp.ge.s32.totalorder %s29, 2
      %s31 = scalar_select %p30, 0, %s29
      %s32 = ssub.s32 %s19, %s31
      %s33 = ssub.s32 %s20, %s27
      %s34 = sor.u32 %s32, %s33
      %p35 = scmp.eq.s32.totalorder %s34, 0
      %s37 = sadd.s32 %s36, 1
      %s38 = scalar_select %p35, %s36, %s37
      %p41 = pneg %p35
      %p42 = scmp.eq.s32.totalorder %s12, 3
      %p43 = por %p41, %p42
      %p44 = scmp.ne.s32.totalorder %s36, %s39
      %p45 = scmp.eq.s32.totalorder %s12, 0
      %p46 = por %p44, %p45
      %p47 = scmp.ne.s32.totalorder %s36, %s39
      %p48 = scmp.eq.s32.totalorder %s17, 3
      %p49 = por %p47, %p48
      %p50 = scmp.ne.s32.totalorder %s39, %s40
      %p51 = scmp.eq.s32.totalorder %s17, 0
      %p52 = por %p50, %p51
      %p53 = scmp.ne.s32.totalorder %s39, %s40
      %p54 = scmp.eq.s32.totalorder %s18, 3
      %p55 = por %p53, %p54
      %p57 = scmp.ne.s32.totalorder %s40, %s56
      %p58 = scmp.eq.s32.totalorder %s18, 0
      %p59 = por %p57, %p58
      %s60 = sadd.s32 %s20, 1
      %s61 = smul.u32 %s60, 8
      %s62 = sadd.s32 %s27, 1
      %s63 = smul.u32 %s62, 8
      %s64 = ssub.s32 %s19, %s31
      %s65 = ssub.s32 %s61, %s63
      %s66 = sor.u32 %s64, %s65
      %p67 = scmp.eq.s32.totalorder %s66, 0
      %s69 = sadd.s32 %s68, 1
      %s70 = scalar_select %p67, %s68, %s69
      %p73 = pneg %p67
      %p74 = scmp.eq.s32.totalorder %s12, 3
      %p75 = por %p73, %p74
      %p76 = scmp.ne.s32.totalorder %s68, %s71
      %p77 = scmp.eq.s32.totalorder %s12, 0
      %p78 = por %p76, %p77
      %p79 = scmp.ne.s32.totalorder %s68, %s71
      %p80 = scmp.eq.s32.totalorder %s17, 3
      %p81 = por %p79, %p80
      %p82 = scmp.ne.s32.totalorder %s71, %s72
      %p83 = scmp.eq.s32.totalorder %s17, 0
      %p84 = por %p82, %p83
      %p85 = scmp.ne.s32.totalorder %s71, %s72
      %p86 = scmp.eq.s32.totalorder %s18, 3
      %p87 = por %p85, %p86
      %p89 = scmp.ne.s32.totalorder %s72, %s88
      %p90 = scmp.eq.s32.totalorder %s18, 0
      %p91 = por %p89, %p90
      %s93 = sadd.s32 %s92, 1
      %p96 = scmp.eq.s32.totalorder %s12, 3
      %p97 = scmp.ne.s32.totalorder %s92, %s94
      %p98 = scmp.eq.s32.totalorder %s12, 0
      %p99 = por %p97, %p98
      %p100 = scmp.ne.s32.totalorder %s92, %s94
      %p101 = scmp.eq.s32.totalorder %s17, 3
      %p102 = por %p100, %p101
      %p103 = scmp.ne.s32.totalorder %s94, %s95
      %p104 = scmp.eq.s32.totalorder %s17, 0
      %p105 = por %p103, %p104
      %p106 = scmp.ne.s32.totalorder %s94, %s95
      %p107 = scmp.eq.s32.totalorder %s18, 3
      %p108 = por %p106, %p107
      %p110 = scmp.ne.s32.totalorder %s95, %s109
      %p111 = scmp.eq.s32.totalorder %s18, 0
      %p112 = por %p110, %p111
      %s114 = sadd.s32 %s113, 1
      %p117 = scmp.eq.s32.totalorder %s12, 3
      %p118 = scmp.ne.s32.totalorder %s113, %s115
      %p119 = scmp.eq.s32.totalorder %s12, 0
      %p120 = por %p118, %p119
      %p121 = scmp.ne.s32.totalorder %s113, %s115
      %p122 = scmp.eq.s32.totalorder %s17, 3
      %p123 = por %p121, %p122
      %p124 = scmp.ne.s32.totalorder %s115, %s116
      %p125 = scmp.eq.s32.totalorder %s17, 0
      %p126 = por %p124, %p125
      %p127 = scmp.ne.s32.totalorder %s115, %s116
      %p128 = scmp.eq.s32.totalorder %s18, 3
      %p129 = por %p127, %p128
      %p131 = scmp.ne.s32.totalorder %s116, %s130
      %p132 = scmp.eq.s32.totalorder %s18, 0
      %p133 = por %p131, %p132
      %s135 = sadd.s32 %s134, 1
      %p138 = scmp.eq.s32.totalorder %s12, 3
      %p139 = scmp.ne.s32.totalorder %s134, %s136
      %p140 = scmp.eq.s32.totalorder %s12, 0
      %p141 = por %p139, %p140
      %p142 = scmp.ne.s32.totalorder %s134, %s136
      %p143 = scmp.eq.s32.totalorder %s17, 3
      %p144 = por %p142, %p143
      %p145 = scmp.ne.s32.totalorder %s136, %s137
      %p146 = scmp.eq.s32.totalorder %s17, 0
      %p147 = por %p145, %p146
      %p148 = scmp.ne.s32.totalorder %s136, %s137
      %p149 = scmp.eq.s32.totalorder %s18, 3
      %p150 = por %p148, %p149
      %p152 = scmp.ne.s32.totalorder %s137, %s151
      %p153 = scmp.eq.s32.totalorder %s18, 0
      %p154 = por %p152, %p153
      %s156 = sadd.s32 %s155, 1
      %p159 = scmp.eq.s32.totalorder %s12, 3
      %p160 = scmp.ne.s32.totalorder %s155, %s157
      %p161 = scmp.eq.s32.totalorder %s12, 0
      %p162 = por %p160, %p161
      %p163 = scmp.ne.s32.totalorder %s155, %s157
      %p164 = scmp.eq.s32.totalorder %s17, 3
      %p165 = por %p163, %p164
      %p166 = scmp.ne.s32.totalorder %s157, %s158
      %p167 = scmp.eq.s32.totalorder %s17, 0
      %p168 = por %p166, %p167
      %p169 = scmp.ne.s32.totalorder %s157, %s158
      %p170 = scmp.eq.s32.totalorder %s18, 3
      %p171 = por %p169, %p170
      %p173 = scmp.ne.s32.totalorder %s158, %s172
      %p174 = scmp.eq.s32.totalorder %s18, 0
      %p175 = por %p173, %p174
      %s176 = ssub.s32 %s19, %s31
      %s177 = ssub.s32 %s20, %s27
      %s178 = sor.u32 %s176, %s177
      %p179 = scmp.eq.s32.totalorder %s178, 0
      %s181 = sadd.s32 %s180, 1
      %s182 = scalar_select %p179, %s180, %s181
      %p185 = pneg %p179
      %p186 = scmp.eq.s32.totalorder %s12, 3
      %p187 = por %p185, %p186
      %p188 = scmp.ne.s32.totalorder %s180, %s183
      %p189 = scmp.eq.s32.totalorder %s12, 0
      %p190 = por %p188, %p189
      %p191 = scmp.ne.s32.totalorder %s180, %s183
      %p192 = scmp.eq.s32.totalorder %s17, 3
      %p193 = por %p191, %p192
      %p194 = scmp.ne.s32.totalorder %s183, %s184
      %p195 = scmp.eq.s32.totalorder %s17, 0
      %p196 = por %p194, %p195
      %p197 = scmp.ne.s32.totalorder %s183, %s184
      %p198 = scmp.eq.s32.totalorder %s18, 3
      %p199 = por %p197, %p198
      %p201 = scmp.ne.s32.totalorder %s184, %s200
      %p202 = scmp.eq.s32.totalorder %s18, 0
      %p203 = por %p201, %p202
      %p204 = scmp.le.s32.totalorder 1, %s12
      %p205 = scmp.lt.s32.totalorder %s12, 5
      %p206 = pnand %p204, %p205
      %p207 = pneg %p206
      // Predicated region
      $region9: #{up_forward.3} parent=5 // pred_check
        _
      $region10: #{up_forward.3} parent=5 // pred_check_branch
        %209 = sbr.rel (%p206) target = $region12
      $region11: #{up_forward.3} parent=5 // pred_region
        %s210 = ssub.s32 %s12, 1
        // Predicated region
        $region13: #{up_forward.3} parent=11 // pred_check
          %p211 = pneg %p105
        $region14: #{up_forward.3} parent=11 // pred_check_branch
          %213 = sbr.rel (%p211) target = $region16
        $region15: #{up_forward.3} parent=11 // pred_region
          _
        $region16: #{up_forward.3} parent=11 // pred_fallthru
          _
        // Predicated region
        $region17: #{up_forward.3} parent=11 // pred_check
          %p214 = pneg %p126
        $region18: #{up_forward.3} parent=11 // pred_check_branch
          %216 = sbr.rel (%p214) target = $region20
        $region19: #{up_forward.3} parent=11 // pred_region
          _
        $region20: #{up_forward.3} parent=11 // pred_fallthru
          _
        // Predicated region
        $region21: #{up_forward.3} parent=11 // pred_check
          %p217 = pneg %p147
        $region22: #{up_forward.3} parent=11 // pred_check_branch
          %219 = sbr.rel (%p217) target = $region24
        $region23: #{up_forward.3} parent=11 // pred_region
          _
        $region24: #{up_forward.3} parent=11 // pred_fallthru
          _
        // Predicated region
        $region25: #{up_forward.3} parent=11 // pred_check
          %p220 = pneg %p168
        $region26: #{up_forward.3} parent=11 // pred_check_branch
          %222 = sbr.rel (%p220) target = $region28
        $region27: #{up_forward.3} parent=11 // pred_region
          _
        $region28: #{up_forward.3} parent=11 // pred_fallthru
          _
      $region12: #{up_forward.3} parent=5 // pred_fallthru
        _
      %p223 = scmp.lt.s32.totalorder %s12, 4
      // Predicated region
      $region29: #{up_forward.3} parent=5 // pred_check
        %p224 = pneg %p223
      $region30: #{up_forward.3} parent=5 // pred_check_branch
        %226 = sbr.rel (%p224) target = $region32
      $region31: #{up_forward.3} parent=5 // pred_region
        // Predicated region
        $region33: #{up_forward.3} parent=31 // pred_check
          %p227 = pneg %p46
        $region34: #{up_forward.3} parent=31 // pred_check_branch
          %229 = sbr.rel (%p227) target = $region36
        $region35: #{up_forward.3} parent=31 // pred_region
          %s230 = smul.u32 8, %s20
          %s231 = ssub.s32 17, %s230
          %p232 = scmp.lt.s32.totalorder %s231, 8
          %s233 = scalar_select %p232, %s231, 8
          %s234 = smul.u32 64, %s233
          %s235 = smul.u32 %s234, 3
          %p236 = scmp.lt.s32.totalorder %s19, 1
          %s237 = scalar_select %p236, %s19, 1
          %p238 = scmp.lt.s32.totalorder %s230, 16
          %s239 = scalar_select %p238, %s230, 16
          %s240 = smul.addr %s239, 3
          %s241 = smul.addr %s237, 51
          %s242 = sadd.s32 %s240, %s241
          %s243 = smul.addr %s242, 4
          %s244 = scalar_lea.vmem %s0, %s243
          %s245 = smul.u32 8, %s20
          %s246 = ssub.s32 17, %s245
          %p247 = scmp.lt.s32.totalorder %s246, 8
          %s248 = scalar_select %p247, %s246, 8
          %s249 = smul.u32 64, %s248
          %s250 = smul.u32 %s249, 3
        $region36: #{up_forward.3} parent=31 // pred_fallthru
          _
        // Predicated region
        $region37: #{up_forward.3} parent=31 // pred_check
          %p251 = pneg %p78
        $region38: #{up_forward.3} parent=31 // pred_check_branch
          %253 = sbr.rel (%p251) target = $region40
        $region39: #{up_forward.3} parent=31 // pred_region
          %s254 = sadd.s32 %s20, 1
          %s255 = smul.u32 %s254, 8
          %p256 = scmp.lt.s32.totalorder %s19, 1
          %s257 = scalar_select %p256, %s19, 1
          %p258 = scmp.lt.s32.totalorder %s255, 16
          %s259 = scalar_select %p258, %s255, 16
          %s260 = smul.addr %s259, 3
          %s261 = smul.addr %s257, 51
          %s262 = sadd.s32 %s260, %s261
          %s263 = smul.addr %s262, 4
          %s264 = scalar_lea.vmem %s1, %s263
          %s265 = sadd.s32 %s20, 1
          %s266 = smul.u32 %s265, 8
        $region40: #{up_forward.3} parent=31 // pred_fallthru
          _
      $region32: #{up_forward.3} parent=5 // pred_fallthru
        _
      %p267 = scmp.le.s32.totalorder 1, %s12
      %p268 = scmp.lt.s32.totalorder %s12, 5
      %p269 = pnand %p267, %p268
      %p270 = pneg %p269
      // Predicated region
      $region41: #{up_forward.3} parent=5 // pred_check
        _
      $region42: #{up_forward.3} parent=5 // pred_check_branch
        %272 = sbr.rel (%p269) target = $region44
      $region43: #{up_forward.3} parent=5 // pred_region
        %s273 = ssub.s32 %s12, 1
        %s274 = smul.u32 8, %s22
        %s275 = ssub.s32 17, %s274
        %p276 = scmp.lt.s32.totalorder %s275, 8
        %s277 = scalar_select %p276, %s275, 8
        %s278 = smul.u32 64, %s277
        %s279 = smul.u32 %s278, 3
        %p280 = scmp.lt.s32.totalorder %s21, 1
        %s281 = scalar_select %p280, %s21, 1
        %p282 = scmp.lt.s32.totalorder %s274, 16
        %s283 = scalar_select %p282, %s274, 16
        %s284 = smul.addr %s283, 3
        %s285 = smul.addr %s281, 51
        %s286 = sadd.s32 %s284, %s285
        %s287 = smul.addr %s286, 4
        %s288 = scalar_lea.vmem %s0, %s287
        %p289 = pneg %p52
        %p290 = pneg %p49
        %s291 = sadd.s32 %s22, 1
        %s292 = smul.u32 %s291, 8
        %p293 = scmp.lt.s32.totalorder %s21, 1
        %s294 = scalar_select %p293, %s21, 1
        %p295 = scmp.lt.s32.totalorder %s292, 16
        %s296 = scalar_select %p295, %s292, 16
        %s297 = smul.addr %s296, 3
        %s298 = smul.addr %s294, 51
        %s299 = sadd.s32 %s297, %s298
        %s300 = smul.addr %s299, 4
        %s301 = scalar_lea.vmem %s1, %s300
        %p302 = pneg %p84
        %p303 = pneg %p81
        %p304 = pneg %p105
        %p305 = pneg %p102
        %p306 = pneg %p126
        %p307 = pneg %p123
        %p308 = pneg %p147
        %p309 = pneg %p144
        %p310 = pneg %p168
        %p311 = pneg %p165
        %p312 = pneg %p196
        %p313 = pneg %p193
        %s314 = sand.u32 %s183, 1
        %s315 = sand.u32 %s183, 1
        %s316 = smul.addr %s315, 512
        %s317 = scalar_lea.vmem [#allocation2], %s316
        %s318 = smul.u32 8, %s22
        %s319 = ssub.s32 17, %s318
        %p320 = scmp.lt.s32.totalorder %s319, 8
        %s321 = scalar_select %p320, %s319, 8
        %s322 = smul.u32 64, %s321
        %s323 = smul.u32 %s322, 3
        %p324 = scmp.lt.s32.totalorder %s21, 1
        %s325 = scalar_select %p324, %s21, 1
        %p326 = scmp.lt.s32.totalorder %s318, 16
        %s327 = scalar_select %p326, %s318, 16
        %s328 = smul.addr %s327, 3
        %s329 = smul.addr %s325, 51
        %s330 = sadd.s32 %s328, %s329
        %s331 = smul.addr %s330, 4
        %s332 = scalar_lea.vmem %s0, %s331
        %s333 = smul.u32 8, %s22
        %s334 = ssub.s32 17, %s333
        %p335 = scmp.lt.s32.totalorder %s334, 8
        %s336 = scalar_select %p335, %s334, 8
        %s337 = smul.u32 64, %s336
        %s338 = smul.u32 %s337, 3
        %s339 = sadd.s32 %s22, 1
        %s340 = smul.u32 %s339, 8
        %p341 = scmp.lt.s32.totalorder %s21, 1
        %s342 = scalar_select %p341, %s21, 1
        %p343 = scmp.lt.s32.totalorder %s340, 16
        %s344 = scalar_select %p343, %s340, 16
        %s345 = smul.addr %s344, 3
        %s346 = smul.addr %s342, 51
        %s347 = sadd.s32 %s345, %s346
        %s348 = smul.addr %s347, 4
        %s349 = scalar_lea.vmem %s1, %s348
        %s350 = sadd.s32 %s22, 1
        %s351 = smul.u32 %s350, 8
        %s352 = smul.u32 4, %s21
        %s353 = smul.u32 8, %s22
        %v355 = vld [vmem:[%s332] sm:$0xf]
        %v356 = vld [vmem:[%s332 + $0x4] sm:$0xf]
        %v357 = vld [vmem:[%s332 + $0x8] sm:$0x1]
        %v358 = vld [vmem:[%s332 + $0xc] sm:$0xf]
        %v359 = vld [vmem:[%s332 + $0x10] sm:$0xf]
        %v360 = vld [vmem:[%s332 + $0x14] sm:$0x1]
        %v361 = vld [vmem:[%s332 + $0x18] sm:$0xf]
        %v362 = vld [vmem:[%s332 + $0x1c] sm:$0xf]
        %v363 = vld [vmem:[%s332 + $0x20] sm:$0x1]
        %v364 = vld [vmem:[%s332 + $0x24] sm:$0xf]
        %v365 = vld [vmem:[%s332 + $0x28] sm:$0xf]
        %v366 = vld [vmem:[%s332 + $0x2c] sm:$0x1]
        %v367 = vld [vmem:[%s332 + $0x30] sm:$0xf]
        %v368 = vld [vmem:[%s332 + $0x34] sm:$0xf]
        %v369 = vld [vmem:[%s332 + $0x38] sm:$0x1]
        %v370 = vld [vmem:[%s332 + $0x3c] sm:$0xf]
        %v371 = vld [vmem:[%s332 + $0x40] sm:$0xf]
        %v372 = vld [vmem:[%s332 + $0x44] sm:$0x1]
        %v373 = vld [vmem:[%s332 + $0x48] sm:$0xf]
        %v374 = vld [vmem:[%s332 + $0x4c] sm:$0xf]
        %v375 = vld [vmem:[%s332 + $0x50] sm:$0x1]
        %v376 = vld [vmem:[%s332 + $0x54] sm:$0xf]
        %v377 = vld [vmem:[%s332 + $0x58] sm:$0xf]
        %v378 = vld [vmem:[%s332 + $0x5c] sm:$0x1]
        %v379 = vld [vmem:[%s349] sm:$0xf]
        %v380 = vld [vmem:[%s349 + $0x4] sm:$0xf]
        %v381 = vld [vmem:[%s349 + $0x8] sm:$0x1]
        %v398 = vunpack.c.l.b16 %v355
        %v399 = vunpack.c.l.b16 %v356
        %v400 = vunpack.c.l.b16 %v358
        %v401 = vunpack.c.l.b16 %v359
        %v402 = vunpack.c.l.b16 %v361
        %v403 = vunpack.c.l.b16 %v362
        %v404 = vunpack.c.l.b16 %v364
        %v405 = vunpack.c.l.b16 %v365
        %v406 = vunpack.c.l.b16 %v367
        %v407 = vunpack.c.l.b16 %v368
        %v408 = vunpack.c.l.b16 %v370
        %v409 = vunpack.c.l.b16 %v371
        %v410 = vunpack.c.l.b16 %v373
        %v411 = vunpack.c.l.b16 %v374
        %v412 = vunpack.c.l.b16 %v376
        %v413 = vunpack.c.l.b16 %v377
        %v414 = vpack.c.b16 %v399, %v398
        %v415 = vpack.c.b16 %v401, %v400
        %v416 = vpack.c.b16 %v403, %v402
        %v417 = vpack.c.b16 %v405, %v404
        %v418 = vpack.c.b16 %v407, %v406
        %v419 = vpack.c.b16 %v409, %v408
        %v420 = vpack.c.b16 %v411, %v410
        %v421 = vpack.c.b16 %v413, %v412
        %v430 = vunpack.c.l.b16 %v357
        %v431 = vunpack.c.l.b16 %v360
        %v432 = vunpack.c.l.b16 %v363
        %v433 = vunpack.c.l.b16 %v366
        %v434 = vunpack.c.l.b16 %v369
        %v435 = vunpack.c.l.b16 %v372
        %v436 = vunpack.c.l.b16 %v375
        %v437 = vunpack.c.l.b16 %v378
        %v438 = vpack.c.b16 %v430, %v430
        %v439 = vpack.c.b16 %v431, %v431
        %v440 = vpack.c.b16 %v432, %v432
        %v441 = vpack.c.b16 %v433, %v433
        %v442 = vpack.c.b16 %v434, %v434
        %v443 = vpack.c.b16 %v435, %v435
        %v444 = vpack.c.b16 %v436, %v436
        %v445 = vpack.c.b16 %v437, %v437
        %vm446 = vsmask.f32 7424
        %v448 = vshrl.u32 %v414, 16
        %v450 = vshll.u32 %v414, 16
        %v452 = vrot.slane %v450, 1
        %v453 = vor.u32 %v448, %v452
        %v455 = vshll.u32 %v438, 16
        %v457 = vrot.slane %v455, 1
        %v458 = vsel %vm446, %v453, %v457
        %v460 = vshrl.u32 %v415, 16
        %v462 = vshll.u32 %v415, 16
        %v464 = vrot.slane %v462, 1
        %v465 = vor.u32 %v460, %v464
        %v467 = vshll.u32 %v439, 16
        %v469 = vrot.slane %v467, 1
        %v470 = vsel %vm446, %v465, %v469
        %v472 = vshrl.u32 %v416, 16
        %v474 = vshll.u32 %v416, 16
        %v476 = vrot.slane %v474, 1
        %v477 = vor.u32 %v472, %v476
        %v479 = vshll.u32 %v440, 16
        %v481 = vrot.slane %v479, 1
        %v482 = vsel %vm446, %v477, %v481
        %v484 = vshrl.u32 %v417, 16
        %v486 = vshll.u32 %v417, 16
        %v488 = vrot.slane %v486, 1
        %v489 = vor.u32 %v484, %v488
        %v491 = vshll.u32 %v441, 16
        %v493 = vrot.slane %v491, 1
        %v494 = vsel %vm446, %v489, %v493
        %v496 = vshrl.u32 %v418, 16
        %v498 = vshll.u32 %v418, 16
        %v500 = vrot.slane %v498, 1
        %v501 = vor.u32 %v496, %v500
        %v503 = vshll.u32 %v442, 16
        %v505 = vrot.slane %v503, 1
        %v506 = vsel %vm446, %v501, %v505
        %v508 = vshrl.u32 %v419, 16
        %v510 = vshll.u32 %v419, 16
        %v512 = vrot.slane %v510, 1
        %v513 = vor.u32 %v508, %v512
        %v515 = vshll.u32 %v443, 16
        %v517 = vrot.slane %v515, 1
        %v518 = vsel %vm446, %v513, %v517
        %v520 = vshrl.u32 %v420, 16
        %v522 = vshll.u32 %v420, 16
        %v524 = vrot.slane %v522, 1
        %v525 = vor.u32 %v520, %v524
        %v527 = vshll.u32 %v444, 16
        %v529 = vrot.slane %v527, 1
        %v530 = vsel %vm446, %v525, %v529
        %v532 = vshrl.u32 %v421, 16
        %v534 = vshll.u32 %v421, 16
        %v536 = vrot.slane %v534, 1
        %v537 = vor.u32 %v532, %v536
        %v539 = vshll.u32 %v445, 16
        %v541 = vrot.slane %v539, 1
        %v542 = vsel %vm446, %v537, %v541
        %543 = vrot.lane.b32.xlu0 %v458, 4
        %v544 = vpop.permute.xlu0 %543
        %545 = vrot.lane.b32.xlu0 %v470, 4
        %v546 = vpop.permute.xlu0 %545
        %547 = vrot.lane.b32.xlu0 %v482, 4
        %v548 = vpop.permute.xlu0 %547
        %549 = vrot.lane.b32.xlu0 %v494, 4
        %v550 = vpop.permute.xlu0 %549
        %551 = vrot.lane.b32.xlu0 %v506, 4
        %v552 = vpop.permute.xlu0 %551
        %553 = vrot.lane.b32.xlu0 %v518, 4
        %v554 = vpop.permute.xlu0 %553
        %555 = vrot.lane.b32.xlu0 %v530, 4
        %v556 = vpop.permute.xlu0 %555
        %557 = vrot.lane.b32.xlu0 %v542, 4
        %v558 = vpop.permute.xlu0 %557
        %v561 = vunpack.c.l.b16 %v379
        %v562 = vunpack.c.l.b16 %v380
        %v563 = vpack.c.b16 %v562, %v561
        %564 = vrot.lane.b32.xlu0 %v415, 8
        %v565 = vpop.permute.xlu0 %564
        %566 = vrot.lane.b32.xlu0 %v416, 8
        %v567 = vpop.permute.xlu0 %566
        %568 = vrot.lane.b32.xlu0 %v417, 8
        %v569 = vpop.permute.xlu0 %568
        %570 = vrot.lane.b32.xlu0 %v418, 8
        %v571 = vpop.permute.xlu0 %570
        %572 = vrot.lane.b32.xlu0 %v419, 8
        %v573 = vpop.permute.xlu0 %572
        %574 = vrot.lane.b32.xlu0 %v420, 8
        %v575 = vpop.permute.xlu0 %574
        %576 = vrot.lane.b32.xlu0 %v421, 8
        %v577 = vpop.permute.xlu0 %576
        %578 = vrot.lane.b32.xlu0 %v563, 8
        %v579 = vpop.permute.xlu0 %578
        %v581 = vunpack.c.l.b16 %v381
        %v582 = vpack.c.b16 %v581, %v581
        %v584 = vshrl.u32 %v563, 16
        %v586 = vshll.u32 %v563, 16
        %v588 = vrot.slane %v586, 1
        %v589 = vor.u32 %v584, %v588
        %v591 = vshll.u32 %v582, 16
        %v593 = vrot.slane %v591, 1
        %v594 = vsel %vm446, %v589, %v593
        %595 = vrot.lane.b32.xlu0 %v470, 12
        %v596 = vpop.permute.xlu0 %595
        %597 = vrot.lane.b32.xlu0 %v482, 12
        %v598 = vpop.permute.xlu0 %597
        %599 = vrot.lane.b32.xlu0 %v494, 12
        %v600 = vpop.permute.xlu0 %599
        %601 = vrot.lane.b32.xlu0 %v506, 12
        %v602 = vpop.permute.xlu0 %601
        %603 = vrot.lane.b32.xlu0 %v518, 12
        %v604 = vpop.permute.xlu0 %603
        %605 = vrot.lane.b32.xlu0 %v530, 12
        %v606 = vpop.permute.xlu0 %605
        %607 = vrot.lane.b32.xlu0 %v542, 12
        %v608 = vpop.permute.xlu0 %607
        %609 = vrot.lane.b32.xlu0 %v594, 12
        %v610 = vpop.permute.xlu0 %609
        %vm611 = vcmask 31744
        %v613 = vsel %vm611, %v414, %v544
        %v615 = vsel %vm611, %v415, %v546
        %v617 = vsel %vm611, %v416, %v548
        %v619 = vsel %vm611, %v417, %v550
        %v621 = vsel %vm611, %v418, %v552
        %v623 = vsel %vm611, %v419, %v554
        %v625 = vsel %vm611, %v420, %v556
        %v627 = vsel %vm611, %v421, %v558
        %vm628 = vcmask 64512
        %v630 = vsel %vm628, %v613, %v565
        %v632 = vsel %vm628, %v615, %v567
        %v634 = vsel %vm628, %v617, %v569
        %v636 = vsel %vm628, %v619, %v571
        %v638 = vsel %vm628, %v621, %v573
        %v640 = vsel %vm628, %v623, %v575
        %v642 = vsel %vm628, %v625, %v577
        %v644 = vsel %vm628, %v627, %v579
        %vm645 = vcmask 97280
        %v647 = vsel %vm645, %v630, %v596
        %v649 = vsel %vm645, %v632, %v598
        %v651 = vsel %vm645, %v634, %v600
        %v653 = vsel %vm645, %v636, %v602
        %v655 = vsel %vm645, %v638, %v604
        %v657 = vsel %vm645, %v640, %v606
        %v659 = vsel %vm645, %v642, %v608
        %v661 = vsel %vm645, %v644, %v610
        %v662 = vld [vmem:[%s2] sm:$0xff]
        %v664 = vunpack.c.l.b16 %v662
        %v665 = vunpack.c.h.b16 %v662
        %v666 = vpack.c.b16 %v664, %v664
        %v667 = vpack.c.b16 %v665, %v665
        %v668 = vsel %vm628, %v647, 0
        %v670 = vsel %vm628, %v649, 0
        %v672 = vsel %vm628, %v651, 0
        %v674 = vsel %vm628, %v653, 0
        %v676 = vsel %vm628, %v655, 0
        %v678 = vsel %vm628, %v657, 0
        %v680 = vsel %vm628, %v659, 0
        %v682 = vsel %vm628, %v661, 0
        %vm684 = vcmask 1043456
        %v686 = vsel %vm684, %v666, 0
        %v689 = vsel %vm684, %v667, 0
        %691 = vmatprep.subr.bf16.mxu0 %v689
        %692 = vmatpush1.bf16.msra.mxu0 %v686
        %693 = vmatprep.subr.bf16.mxu0 0
        %694 = vmatpush1.bf16.msra.mxu0 0
        %695 = vmatprep.subr.bf16.mxu0 0
        %696 = vmatpush1.bf16.msra.mxu0 0
        %697 = vmatprep.subr.bf16.mxu0 0
        %698 = vmatpush1.bf16.msra.mxu0 0
        %699 = vmatprep.subr.bf16.mxu0 0
        %700 = vmatpush1.bf16.msra.mxu0 0
        %701 = vmatprep.subr.bf16.mxu0 0
        %702 = vmatpush1.bf16.msra.mxu0 0
        %703 = vmatprep.subr.bf16.mxu0 0
        %704 = vmatpush1.bf16.msra.mxu0 0
        %705 = vmatprep.subr.bf16.mxu0 0
        %706 = vmatpush1.bf16.msra.mxu0 0
        %707 = vmatprep.subr.bf16.mxu0 0
        %708 = vmatpush1.bf16.msra.mxu0 0
        %709 = vmatprep.subr.bf16.mxu0 0
        %710 = vmatpush1.bf16.msra.mxu0 0
        %711 = vmatprep.subr.bf16.mxu0 0
        %712 = vmatpush1.bf16.msra.mxu0 0
        %713 = vmatprep.subr.bf16.mxu0 0
        %714 = vmatpush1.bf16.msra.mxu0 0
        %715 = vmatprep.subr.bf16.mxu0 0
        %716 = vmatpush1.bf16.msra.mxu0 0
        %717 = vmatprep.subr.bf16.mxu0 0
        %718 = vmatpush1.bf16.msra.mxu0 0
        %719 = vmatprep.subr.bf16.mxu0 0
        %720 = vmatpush1.bf16.msra.mxu0 0
        %721 = vmatprep.subr.bf16.mxu0 0
        %722 = vmatpush1.bf16.msra.mxu0 0
        %723 = vmatprep.mubr.bf16.mxu0 0
        %724 = vmatmul.mubr.bf16.gmra.mrb[0].mxu0 %v668
        %v725 = vpop.f32.mrb[0].mxu0
        %v726 = vadd.f32 0.0, %v725
        %v727 = vpop.f32.mrb[0].mxu0
        %v728 = vadd.f32 0.0, %v727
        %v729 = vpop.f32.mrb[0].mxu0
        %v730 = vadd.f32 0.0, %v729
        %v731 = vpop.f32.mrb[0].mxu0
        %v732 = vadd.f32 0.0, %v731
        %733 = vmatprep.mubr.bf16.mxu0 0
        %734 = vmatmul.mubr.bf16.gmra.mrb[0].mxu0 %v670
        %v735 = vpop.f32.mrb[0].mxu0
        %v736 = vadd.f32 0.0, %v735
        %v737 = vpop.f32.mrb[0].mxu0
        %v738 = vadd.f32 0.0, %v737
        %v739 = vpop.f32.mrb[0].mxu0
        %v740 = vadd.f32 0.0, %v739
        %v741 = vpop.f32.mrb[0].mxu0
        %v742 = vadd.f32 0.0, %v741
        %743 = vmatprep.mubr.bf16.mxu0 0
        %744 = vmatmul.mubr.bf16.gmra.mrb[0].mxu0 %v672
        %v745 = vpop.f32.mrb[0].mxu0
        %v746 = vadd.f32 0.0, %v745
        %v747 = vpop.f32.mrb[0].mxu0
        %v748 = vadd.f32 0.0, %v747
        %v749 = vpop.f32.mrb[0].mxu0
        %v750 = vadd.f32 0.0, %v749
        %v751 = vpop.f32.mrb[0].mxu0
        %v752 = vadd.f32 0.0, %v751
        %753 = vmatprep.mubr.bf16.mxu0 0
        %754 = vmatmul.mubr.bf16.gmra.mrb[0].mxu0 %v674
        %v755 = vpop.f32.mrb[0].mxu0
        %v756 = vadd.f32 0.0, %v755
        %v757 = vpop.f32.mrb[0].mxu0
        %v758 = vadd.f32 0.0, %v757
        %v759 = vpop.f32.mrb[0].mxu0
        %v760 = vadd.f32 0.0, %v759
        %v761 = vpop.f32.mrb[0].mxu0
        %v762 = vadd.f32 0.0, %v761
        %763 = vmatprep.mubr.bf16.mxu0 0
        %764 = vmatmul.mubr.bf16.gmra.mrb[0].mxu0 %v676
        %v765 = vpop.f32.mrb[0].mxu0
        %v766 = vadd.f32 0.0, %v765
        %v767 = vpop.f32.mrb[0].mxu0
        %v768 = vadd.f32 0.0, %v767
        %v769 = vpop.f32.mrb[0].mxu0
        %v770 = vadd.f32 0.0, %v769
        %v771 = vpop.f32.mrb[0].mxu0
        %v772 = vadd.f32 0.0, %v771
        %773 = vmatprep.mubr.bf16.mxu0 0
        %774 = vmatmul.mubr.bf16.gmra.mrb[0].mxu0 %v678
        %v775 = vpop.f32.mrb[0].mxu0
        %v776 = vadd.f32 0.0, %v775
        %v777 = vpop.f32.mrb[0].mxu0
        %v778 = vadd.f32 0.0, %v777
        %v779 = vpop.f32.mrb[0].mxu0
        %v780 = vadd.f32 0.0, %v779
        %v781 = vpop.f32.mrb[0].mxu0
        %v782 = vadd.f32 0.0, %v781
        %783 = vmatprep.mubr.bf16.mxu0 0
        %784 = vmatmul.mubr.bf16.gmra.mrb[0].mxu0 %v680
        %v785 = vpop.f32.mrb[0].mxu0
        %v786 = vadd.f32 0.0, %v785
        %v787 = vpop.f32.mrb[0].mxu0
        %v788 = vadd.f32 0.0, %v787
        %v789 = vpop.f32.mrb[0].mxu0
        %v790 = vadd.f32 0.0, %v789
        %v791 = vpop.f32.mrb[0].mxu0
        %v792 = vadd.f32 0.0, %v791
        %793 = vmatprep.mubr.bf16.mxu0 0
        %794 = vmatmul.mubr.bf16.gmra.mrb[0].mxu0 %v682
        %v795 = vpop.f32.mrb[0].mxu0
        %v796 = vadd.f32 0.0, %v795
        %v797 = vpop.f32.mrb[0].mxu0
        %v798 = vadd.f32 0.0, %v797
        %v799 = vpop.f32.mrb[0].mxu0
        %v800 = vadd.f32 0.0, %v799
        %v801 = vpop.f32.mrb[0].mxu0
        %v802 = vadd.f32 0.0, %v801
        %803 = vdwg.mxu0
        %v804 = vld [vmem:[%s3] sm:$0xff]
        %v805 = vld [vmem:[%s3 + $0x8] sm:$0xff]
        %v808 = vunpack.c.l.b16 %v804
        %v809 = vunpack.c.h.b16 %v804
        %v810 = vunpack.c.l.b16 %v805
        %v811 = vunpack.c.h.b16 %v805
        %v812 = vpack.c.b16 %v810, %v808
        %v813 = vpack.c.b16 %v811, %v809
        %vm816 = vcmask 130048
        %v817 = vsel %vm816, %v647, 0
        %v819 = vsel %vm816, %v649, 0
        %v821 = vsel %vm816, %v651, 0
        %v823 = vsel %vm816, %v653, 0
        %v825 = vsel %vm816, %v655, 0
        %v827 = vsel %vm816, %v657, 0
        %v829 = vsel %vm816, %v659, 0
        %v831 = vsel %vm816, %v661, 0
        %833 = vmatprep.subr.bf16.mxu0 %v813
        %834 = vmatpush1.bf16.msra.mxu0 %v812
        %835 = vmatprep.subr.bf16.mxu0 0
        %836 = vmatpush1.bf16.msra.mxu0 0
        %837 = vmatprep.subr.bf16.mxu0 0
        %838 = vmatpush1.bf16.msra.mxu0 0
        %839 = vmatprep.subr.bf16.mxu0 0
        %840 = vmatpush1.bf16.msra.mxu0 0
        %841 = vmatprep.subr.bf16.mxu0 0
        %842 = vmatpush1.bf16.msra.mxu0 0
        %843 = vmatprep.subr.bf16.mxu0 0
        %844 = vmatpush1.bf16.msra.mxu0 0
        %845 = vmatprep.subr.bf16.mxu0 0
        %846 = vmatpush1.bf16.msra.mxu0 0
        %847 = vmatprep.subr.bf16.mxu0 0
        %848 = vmatpush1.bf16.msra.mxu0 0
        %849 = vmatprep.subr.bf16.mxu0 0
        %850 = vmatpush1.bf16.msra.mxu0 0
        %851 = vmatprep.subr.bf16.mxu0 0
        %852 = vmatpush1.bf16.msra.mxu0 0
        %853 = vmatprep.subr.bf16.mxu0 0
        %854 = vmatpush1.bf16.msra.mxu0 0
        %855 = vmatprep.subr.bf16.mxu0 0
        %856 = vmatpush1.bf16.msra.mxu0 0
        %857 = vmatprep.subr.bf16.mxu0 0
        %858 = vmatpush1.bf16.msra.mxu0 0
        %859 = vmatprep.subr.bf16.mxu0 0
        %860 = vmatpush1.bf16.msra.mxu0 0
        %861 = vmatprep.subr.bf16.mxu0 0
        %862 = vmatpush1.bf16.msra.mxu0 0
        %863 = vmatprep.subr.bf16.mxu0 0
        %864 = vmatpush1.bf16.msra.mxu0 0
        %865 = vmatprep.mubr.bf16.mxu0 0
        %866 = vmatmul.mubr.bf16.gmra.mrb[0].mxu0 %v817
        %v867 = vpop.f32.mrb[0].mxu0
        %v868 = vadd.f32 0.0, %v867
        %v869 = vpop.f32.mrb[0].mxu0
        %v870 = vadd.f32 0.0, %v869
        %v871 = vpop.f32.mrb[0].mxu0
        %v872 = vadd.f32 0.0, %v871
        %v873 = vpop.f32.mrb[0].mxu0
        %v874 = vadd.f32 0.0, %v873
        %875 = vmatprep.mubr.bf16.mxu0 0
        %876 = vmatmul.mubr.bf16.gmra.mrb[0].mxu0 %v819
        %v877 = vpop.f32.mrb[0].mxu0
        %v878 = vadd.f32 0.0, %v877
        %v879 = vpop.f32.mrb[0].mxu0
        %v880 = vadd.f32 0.0, %v879
        %v881 = vpop.f32.mrb[0].mxu0
        %v882 = vadd.f32 0.0, %v881
        %v883 = vpop.f32.mrb[0].mxu0
        %v884 = vadd.f32 0.0, %v883
        %885 = vmatprep.mubr.bf16.mxu0 0
        %886 = vmatmul.mubr.bf16.gmra.mrb[0].mxu0 %v821
        %v887 = vpop.f32.mrb[0].mxu0
        %v888 = vadd.f32 0.0, %v887
        %v889 = vpop.f32.mrb[0].mxu0
        %v890 = vadd.f32 0.0, %v889
        %v891 = vpop.f32.mrb[0].mxu0
        %v892 = vadd.f32 0.0, %v891
        %v893 = vpop.f32.mrb[0].mxu0
        %v894 = vadd.f32 0.0, %v893
        %895 = vmatprep.mubr.bf16.mxu0 0
        %896 = vmatmul.mubr.bf16.gmra.mrb[0].mxu0 %v823
        %v897 = vpop.f32.mrb[0].mxu0
        %v898 = vadd.f32 0.0, %v897
        %v899 = vpop.f32.mrb[0].mxu0
        %v900 = vadd.f32 0.0, %v899
        %v901 = vpop.f32.mrb[0].mxu0
        %v902 = vadd.f32 0.0, %v901
        %v903 = vpop.f32.mrb[0].mxu0
        %v904 = vadd.f32 0.0, %v903
        %905 = vmatprep.mubr.bf16.mxu0 0
        %906 = vmatmul.mubr.bf16.gmra.mrb[0].mxu0 %v825
        %v907 = vpop.f32.mrb[0].mxu0
        %v908 = vadd.f32 0.0, %v907
        %v909 = vpop.f32.mrb[0].mxu0
        %v910 = vadd.f32 0.0, %v909
        %v911 = vpop.f32.mrb[0].mxu0
        %v912 = vadd.f32 0.0, %v911
        %v913 = vpop.f32.mrb[0].mxu0
        %v914 = vadd.f32 0.0, %v913
        %915 = vmatprep.mubr.bf16.mxu0 0
        %916 = vmatmul.mubr.bf16.gmra.mrb[0].mxu0 %v827
        %v917 = vpop.f32.mrb[0].mxu0
        %v918 = vadd.f32 0.0, %v917
        %v919 = vpop.f32.mrb[0].mxu0
        %v920 = vadd.f32 0.0, %v919
        %v921 = vpop.f32.mrb[0].mxu0
        %v922 = vadd.f32 0.0, %v921
        %v923 = vpop.f32.mrb[0].mxu0
        %v924 = vadd.f32 0.0, %v923
        %925 = vmatprep.mubr.bf16.mxu0 0
        %926 = vmatmul.mubr.bf16.gmra.mrb[0].mxu0 %v829
        %v927 = vpop.f32.mrb[0].mxu0
        %v928 = vadd.f32 0.0, %v927
        %v929 = vpop.f32.mrb[0].mxu0
        %v930 = vadd.f32 0.0, %v929
        %v931 = vpop.f32.mrb[0].mxu0
        %v932 = vadd.f32 0.0, %v931
        %v933 = vpop.f32.mrb[0].mxu0
        %v934 = vadd.f32 0.0, %v933
        %935 = vmatprep.mubr.bf16.mxu0 0
        %936 = vmatmul.mubr.bf16.gmra.mrb[0].mxu0 %v831
        %v937 = vpop.f32.mrb[0].mxu0
        %v938 = vadd.f32 0.0, %v937
        %v939 = vpop.f32.mrb[0].mxu0
        %v940 = vadd.f32 0.0, %v939
        %v941 = vpop.f32.mrb[0].mxu0
        %v942 = vadd.f32 0.0, %v941
        %v943 = vpop.f32.mrb[0].mxu0
        %v944 = vadd.f32 0.0, %v943
        %945 = vdwg.mxu0
        %v946 = vld [vmem:[%s4] sm:$0x1]
        %v947 = vld [vmem:[%s5] sm:$0x1]
        %v949 = vlaneseq
        %v950 = vshrl.u32 %v949, 7
        %v951 = vsub.s32 0, %v950
        %v952 = vrot.slane %v946, %v951
        %v954 = vmul.f32 %v726, %v952
        %v955 = vmul.f32 %v730, %v952
        %v956 = vmul.f32 %v736, %v952
        %v957 = vmul.f32 %v740, %v952
        %v958 = vmul.f32 %v746, %v952
        %v959 = vmul.f32 %v750, %v952
        %v960 = vmul.f32 %v756, %v952
        %v961 = vmul.f32 %v760, %v952
        %v962 = vmul.f32 %v766, %v952
        %v963 = vmul.f32 %v770, %v952
        %v964 = vmul.f32 %v776, %v952
        %v965 = vmul.f32 %v780, %v952
        %v966 = vmul.f32 %v786, %v952
        %v967 = vmul.f32 %v790, %v952
        %v968 = vmul.f32 %v796, %v952
        %v969 = vmul.f32 %v800, %v952
        %v971 = vlaneseq
        %v972 = vshrl.u32 %v971, 7
        %v973 = vsub.s32 0, %v972
        %v974 = vrot.slane %v947, %v973
        %v976 = vadd.f32 %v954, %v974
        %v977 = vadd.f32 %v955, %v974
        %v978 = vadd.f32 %v956, %v974
        %v979 = vadd.f32 %v957, %v974
        %v980 = vadd.f32 %v958, %v974
        %v981 = vadd.f32 %v959, %v974
        %v982 = vadd.f32 %v960, %v974
        %v983 = vadd.f32 %v961, %v974
        %v984 = vadd.f32 %v962, %v974
        %v985 = vadd.f32 %v963, %v974
        %v986 = vadd.f32 %v964, %v974
        %v987 = vadd.f32 %v965, %v974
        %v988 = vadd.f32 %v966, %v974
        %v989 = vadd.f32 %v967, %v974
        %v990 = vadd.f32 %v968, %v974
        %v991 = vadd.f32 %v969, %v974
        %v992 = vmax.f32 %v976, 0.0
        %v993 = vmax.f32 %v977, 0.0
        %v994 = vmax.f32 %v978, 0.0
        %v995 = vmax.f32 %v979, 0.0
        %v996 = vmax.f32 %v980, 0.0
        %v997 = vmax.f32 %v981, 0.0
        %v998 = vmax.f32 %v982, 0.0
        %v999 = vmax.f32 %v983, 0.0
        %v1000 = vmax.f32 %v984, 0.0
        %v1001 = vmax.f32 %v985, 0.0
        %v1002 = vmax.f32 %v986, 0.0
        %v1003 = vmax.f32 %v987, 0.0
        %v1004 = vmax.f32 %v988, 0.0
        %v1005 = vmax.f32 %v989, 0.0
        %v1006 = vmax.f32 %v990, 0.0
        %v1007 = vmax.f32 %v991, 0.0
        %1008 = vst [vmem:[%s317] sm:$0xff] %v992
        %1009 = vst [vmem:[%s317 + $0x8] sm:$0xff] %v993
        %1010 = vst [vmem:[%s317 + $0x10] sm:$0xff] %v994
        %1011 = vst [vmem:[%s317 + $0x18] sm:$0xff] %v995
        %1012 = vst [vmem:[%s317 + $0x20] sm:$0xff] %v996
        %1013 = vst [vmem:[%s317 + $0x28] sm:$0xff] %v997
        %1014 = vst [vmem:[%s317 + $0x30] sm:$0xff] %v998
        %1015 = vst [vmem:[%s317 + $0x38] sm:$0xff] %v999
        %1016 = vst [vmem:[%s317 + $0x40] sm:$0xff] %v1000
        %1017 = vst [vmem:[%s317 + $0x48] sm:$0xff] %v1001
        %1018 = vst [vmem:[%s317 + $0x50] sm:$0xff] %v1002
        %1019 = vst [vmem:[%s317 + $0x58] sm:$0xff] %v1003
        %1020 = vst [vmem:[%s317 + $0x60] sm:$0xff] %v1004
        %1021 = vst [vmem:[%s317 + $0x68] sm:$0xff] %v1005
        %1022 = vst [vmem:[%s317 + $0x70] sm:$0xff] %v1006
        %1023 = vst [vmem:[%s317 + $0x78] sm:$0xff] %v1007
        %v1024 = vmul.f32 %v728, %v952
        %v1025 = vmul.f32 %v732, %v952
        %v1026 = vmul.f32 %v738, %v952
        %v1027 = vmul.f32 %v742, %v952
        %v1028 = vmul.f32 %v748, %v952
        %v1029 = vmul.f32 %v752, %v952
        %v1030 = vmul.f32 %v758, %v952
        %v1031 = vmul.f32 %v762, %v952
        %v1032 = vmul.f32 %v768, %v952
        %v1033 = vmul.f32 %v772, %v952
        %v1034 = vmul.f32 %v778, %v952
        %v1035 = vmul.f32 %v782, %v952
        %v1036 = vmul.f32 %v788, %v952
        %v1037 = vmul.f32 %v792, %v952
        %v1038 = vmul.f32 %v798, %v952
        %v1039 = vmul.f32 %v802, %v952
        %v1040 = vadd.f32 %v1024, %v974
        %v1041 = vadd.f32 %v1025, %v974
        %v1042 = vadd.f32 %v1026, %v974
        %v1043 = vadd.f32 %v1027, %v974
        %v1044 = vadd.f32 %v1028, %v974
        %v1045 = vadd.f32 %v1029, %v974
        %v1046 = vadd.f32 %v1030, %v974
        %v1047 = vadd.f32 %v1031, %v974
        %v1048 = vadd.f32 %v1032, %v974
        %v1049 = vadd.f32 %v1033, %v974
        %v1050 = vadd.f32 %v1034, %v974
        %v1051 = vadd.f32 %v1035, %v974
        %v1052 = vadd.f32 %v1036, %v974
        %v1053 = vadd.f32 %v1037, %v974
        %v1054 = vadd.f32 %v1038, %v974
        %v1055 = vadd.f32 %v1039, %v974
        %v1056 = vmax.f32 %v1040, 0.0
        %v1057 = vmax.f32 %v1041, 0.0
        %v1058 = vmax.f32 %v1042, 0.0
        %v1059 = vmax.f32 %v1043, 0.0
        %v1060 = vmax.f32 %v1044, 0.0
        %v1061 = vmax.f32 %v1045, 0.0
        %v1062 = vmax.f32 %v1046, 0.0
        %v1063 = vmax.f32 %v1047, 0.0
        %v1064 = vmax.f32 %v1048, 0.0
        %v1065 = vmax.f32 %v1049, 0.0
        %v1066 = vmax.f32 %v1050, 0.0
        %v1067 = vmax.f32 %v1051, 0.0
        %v1068 = vmax.f32 %v1052, 0.0
        %v1069 = vmax.f32 %v1053, 0.0
        %v1070 = vmax.f32 %v1054, 0.0
        %v1071 = vmax.f32 %v1055, 0.0
        %s1072 = scalar_lea.vmem %s317, 128 [#allocation2]
        %1073 = vst [vmem:[%s1072] sm:$0xff] %v1056
        %1074 = vst [vmem:[%s1072 + $0x8] sm:$0xff] %v1057
        %1075 = vst [vmem:[%s1072 + $0x10] sm:$0xff] %v1058
        %1076 = vst [vmem:[%s1072 + $0x18] sm:$0xff] %v1059
        %1077 = vst [vmem:[%s1072 + $0x20] sm:$0xff] %v1060
        %1078 = vst [vmem:[%s1072 + $0x28] sm:$0xff] %v1061
        %1079 = vst [vmem:[%s1072 + $0x30] sm:$0xff] %v1062
        %1080 = vst [vmem:[%s1072 + $0x38] sm:$0xff] %v1063
        %1081 = vst [vmem:[%s1072 + $0x40] sm:$0xff] %v1064
        %1082 = vst [vmem:[%s1072 + $0x48] sm:$0xff] %v1065
        %1083 = vst [vmem:[%s1072 + $0x50] sm:$0xff] %v1066
        %1084 = vst [vmem:[%s1072 + $0x58] sm:$0xff] %v1067
        %1085 = vst [vmem:[%s1072 + $0x60] sm:$0xff] %v1068
        %1086 = vst [vmem:[%s1072 + $0x68] sm:$0xff] %v1069
        %1087 = vst [vmem:[%s1072 + $0x70] sm:$0xff] %v1070
        %1088 = vst [vmem:[%s1072 + $0x78] sm:$0xff] %v1071
        %v1089 = vmul.f32 %v868, %v952
        %v1090 = vmul.f32 %v872, %v952
        %v1091 = vmul.f32 %v878, %v952
        %v1092 = vmul.f32 %v882, %v952
        %v1093 = vmul.f32 %v888, %v952
        %v1094 = vmul.f32 %v892, %v952
        %v1095 = vmul.f32 %v898, %v952
        %v1096 = vmul.f32 %v902, %v952
        %v1097 = vmul.f32 %v908, %v952
        %v1098 = vmul.f32 %v912, %v952
        %v1099 = vmul.f32 %v918, %v952
        %v1100 = vmul.f32 %v922, %v952
        %v1101 = vmul.f32 %v928, %v952
        %v1102 = vmul.f32 %v932, %v952
        %v1103 = vmul.f32 %v938, %v952
        %v1104 = vmul.f32 %v942, %v952
        %v1105 = vadd.f32 %v1089, %v974
        %v1106 = vadd.f32 %v1090, %v974
        %v1107 = vadd.f32 %v1091, %v974
        %v1108 = vadd.f32 %v1092, %v974
        %v1109 = vadd.f32 %v1093, %v974
        %v1110 = vadd.f32 %v1094, %v974
        %v1111 = vadd.f32 %v1095, %v974
        %v1112 = vadd.f32 %v1096, %v974
        %v1113 = vadd.f32 %v1097, %v974
        %v1114 = vadd.f32 %v1098, %v974
        %v1115 = vadd.f32 %v1099, %v974
        %v1116 = vadd.f32 %v1100, %v974
        %v1117 = vadd.f32 %v1101, %v974
        %v1118 = vadd.f32 %v1102, %v974
        %v1119 = vadd.f32 %v1103, %v974
        %v1120 = vadd.f32 %v1104, %v974
        %v1121 = vmax.f32 %v1105, 0.0
        %v1122 = vmax.f32 %v1106, 0.0
        %v1123 = vmax.f32 %v1107, 0.0
        %v1124 = vmax.f32 %v1108, 0.0
        %v1125 = vmax.f32 %v1109, 0.0
        %v1126 = vmax.f32 %v1110, 0.0
        %v1127 = vmax.f32 %v1111, 0.0
        %v1128 = vmax.f32 %v1112, 0.0
        %v1129 = vmax.f32 %v1113, 0.0
        %v1130 = vmax.f32 %v1114, 0.0
        %v1131 = vmax.f32 %v1115, 0.0
        %v1132 = vmax.f32 %v1116, 0.0
        %v1133 = vmax.f32 %v1117, 0.0
        %v1134 = vmax.f32 %v1118, 0.0
        %v1135 = vmax.f32 %v1119, 0.0
        %v1136 = vmax.f32 %v1120, 0.0
        %s1137 = scalar_lea.vmem %s317, 256 [#allocation2]
        %1138 = vst [vmem:[%s1137] sm:$0xff] %v1121
        %1139 = vst [vmem:[%s1137 + $0x8] sm:$0xff] %v1122
        %1140 = vst [vmem:[%s1137 + $0x10] sm:$0xff] %v1123
        %1141 = vst [vmem:[%s1137 + $0x18] sm:$0xff] %v1124
        %1142 = vst [vmem:[%s1137 + $0x20] sm:$0xff] %v1125
        %1143 = vst [vmem:[%s1137 + $0x28] sm:$0xff] %v1126
        %1144 = vst [vmem:[%s1137 + $0x30] sm:$0xff] %v1127
        %1145 = vst [vmem:[%s1137 + $0x38] sm:$0xff] %v1128
        %1146 = vst [vmem:[%s1137 + $0x40] sm:$0xff] %v1129
        %1147 = vst [vmem:[%s1137 + $0x48] sm:$0xff] %v1130
        %1148 = vst [vmem:[%s1137 + $0x50] sm:$0xff] %v1131
        %1149 = vst [vmem:[%s1137 + $0x58] sm:$0xff] %v1132
        %1150 = vst [vmem:[%s1137 + $0x60] sm:$0xff] %v1133
        %1151 = vst [vmem:[%s1137 + $0x68] sm:$0xff] %v1134
        %1152 = vst [vmem:[%s1137 + $0x70] sm:$0xff] %v1135
        %1153 = vst [vmem:[%s1137 + $0x78] sm:$0xff] %v1136
        %v1154 = vmul.f32 %v870, %v952
        %v1155 = vmul.f32 %v874, %v952
        %v1156 = vmul.f32 %v880, %v952
        %v1157 = vmul.f32 %v884, %v952
        %v1158 = vmul.f32 %v890, %v952
        %v1159 = vmul.f32 %v894, %v952
        %v1160 = vmul.f32 %v900, %v952
        %v1161 = vmul.f32 %v904, %v952
        %v1162 = vmul.f32 %v910, %v952
        %v1163 = vmul.f32 %v914, %v952
        %v1164 = vmul.f32 %v920, %v952
        %v1165 = vmul.f32 %v924, %v952
        %v1166 = vmul.f32 %v930, %v952
        %v1167 = vmul.f32 %v934, %v952
        %v1168 = vmul.f32 %v940, %v952
        %v1169 = vmul.f32 %v944, %v952
        %v1170 = vadd.f32 %v1154, %v974
        %v1171 = vadd.f32 %v1155, %v974
        %v1172 = vadd.f32 %v1156, %v974
        %v1173 = vadd.f32 %v1157, %v974
        %v1174 = vadd.f32 %v1158, %v974
        %v1175 = vadd.f32 %v1159, %v974
        %v1176 = vadd.f32 %v1160, %v974
        %v1177 = vadd.f32 %v1161, %v974
        %v1178 = vadd.f32 %v1162, %v974
        %v1179 = vadd.f32 %v1163, %v974
        %v1180 = vadd.f32 %v1164, %v974
        %v1181 = vadd.f32 %v1165, %v974
        %v1182 = vadd.f32 %v1166, %v974
        %v1183 = vadd.f32 %v1167, %v974
        %v1184 = vadd.f32 %v1168, %v974
        %v1185 = vadd.f32 %v1169, %v974
        %v1186 = vmax.f32 %v1170, 0.0
        %v1187 = vmax.f32 %v1171, 0.0
        %v1188 = vmax.f32 %v1172, 0.0
        %v1189 = vmax.f32 %v1173, 0.0
        %v1190 = vmax.f32 %v1174, 0.0
        %v1191 = vmax.f32 %v1175, 0.0
        %v1192 = vmax.f32 %v1176, 0.0
        %v1193 = vmax.f32 %v1177, 0.0
        %v1194 = vmax.f32 %v1178, 0.0
        %v1195 = vmax.f32 %v1179, 0.0
        %v1196 = vmax.f32 %v1180, 0.0
        %v1197 = vmax.f32 %v1181, 0.0
        %v1198 = vmax.f32 %v1182, 0.0
        %v1199 = vmax.f32 %v1183, 0.0
        %v1200 = vmax.f32 %v1184, 0.0
        %v1201 = vmax.f32 %v1185, 0.0
        %s1202 = scalar_lea.vmem %s317, 384 [#allocation2]
        %1203 = vst [vmem:[%s1202] sm:$0xff] %v1186
        %1204 = vst [vmem:[%s1202 + $0x8] sm:$0xff] %v1187
        %1205 = vst [vmem:[%s1202 + $0x10] sm:$0xff] %v1188
        %1206 = vst [vmem:[%s1202 + $0x18] sm:$0xff] %v1189
        %1207 = vst [vmem:[%s1202 + $0x20] sm:$0xff] %v1190
        %1208 = vst [vmem:[%s1202 + $0x28] sm:$0xff] %v1191
        %1209 = vst [vmem:[%s1202 + $0x30] sm:$0xff] %v1192
        %1210 = vst [vmem:[%s1202 + $0x38] sm:$0xff] %v1193
        %1211 = vst [vmem:[%s1202 + $0x40] sm:$0xff] %v1194
        %1212 = vst [vmem:[%s1202 + $0x48] sm:$0xff] %v1195
        %1213 = vst [vmem:[%s1202 + $0x50] sm:$0xff] %v1196
        %1214 = vst [vmem:[%s1202 + $0x58] sm:$0xff] %v1197
        %1215 = vst [vmem:[%s1202 + $0x60] sm:$0xff] %v1198
        %1216 = vst [vmem:[%s1202 + $0x68] sm:$0xff] %v1199
        %1217 = vst [vmem:[%s1202 + $0x70] sm:$0xff] %v1200
        %1218 = vst [vmem:[%s1202 + $0x78] sm:$0xff] %v1201
        %s1219 = sand.u32 %s183, 1
        %s1220 = sand.u32 %s183, 1
        %s1221 = smul.addr %s1220, 512
        %s1222 = scalar_lea.vmem [#allocation2], %s1221
        // Predicated region
        $region45: #{up_forward.3} parent=43 // pred_check
          %p1223 = pneg %p193
        $region46: #{up_forward.3} parent=43 // pred_check_branch
          %1225 = sbr.rel (%p1223) target = $region48
        $region47: #{up_forward.3} parent=43 // pred_region
          %s1226 = smul.u32 4, %s21
          %s1227 = smul.u32 8, %s22
          %s1228 = smul.addr %s1227, 2
          %s1229 = smul.addr %s1226, 32
          %s1230 = sadd.s32 %s1228, %s1229
          %s1231 = smul.addr %s1230, 8
          %s1232 = scalar_lea.vmem %s6, %s1231
          // Predicated region
          $region49: #{up_forward.3} parent=47 // pred_check
            _
          $region50: #{up_forward.3} parent=47 // pred_check_branch
            %1234 = sbr.rel (0) target = $region52
          $region51: #{up_forward.3} parent=47 // pred_region
            // Predicated region
            $region53: #{up_forward.3} parent=51 // pred_check
              _
            $region54: #{up_forward.3} parent=51 // pred_check_branch
              %1236 = sbr.rel (0) target = $region56
            $region55: #{up_forward.3} parent=51 // pred_region
              // Predicated region
              $region68: #{up_forward.3} parent=55 // pred_check
                _
              $region69: #{up_forward.3} parent=55 // pred_check_branch
                %1377 = sbr.rel (0) target = $region71
              $region70: #{up_forward.3} parent=55 // pred_region
                loop: start=0, step=1, limit=1
                $region72: #{up_forward.3} parent=70 // loop_pre_header
                  _
                $region73: #{up_forward.3} parent=70 // loop_header
                  %s1379 = sphi 0, %s1383
                  %p1380 = scmp.ge.s32.totalorder %s1379, 1
                  %s1384 = sphi %s1222, %s1222
                  %s1385 = sphi %s1232, %s1232
                $region74: #{up_forward.3} parent=70 // loop_header_branch
                  %1382 = sbr.rel (%p1380) target = $region78
                $region75: #{up_forward.3} parent=70 // loop_body
                  %v1386 = vld [vmem:[%s1384] sm:$0xff]
                  %1387 = vst [vmem:[%s1385] sm:$0xff] %v1386
                  %v1388 = vld [vmem:[%s1384 + $0x8] sm:$0xff]
                  %1389 = vst [vmem:[%s1385 + $0x8] sm:$0xff] %v1388
                  %v1390 = vld [vmem:[%s1384 + $0x10] sm:$0xff]
                  %1391 = vst [vmem:[%s1385 + $0x10] sm:$0xff] %v1390
                  %v1392 = vld [vmem:[%s1384 + $0x18] sm:$0xff]
                  %1393 = vst [vmem:[%s1385 + $0x18] sm:$0xff] %v1392
                  %v1394 = vld [vmem:[%s1384 + $0x20] sm:$0xff]
                  %1395 = vst [vmem:[%s1385 + $0x20] sm:$0xff] %v1394
                  %v1396 = vld [vmem:[%s1384 + $0x28] sm:$0xff]
                  %1397 = vst [vmem:[%s1385 + $0x28] sm:$0xff] %v1396
                  %v1398 = vld [vmem:[%s1384 + $0x30] sm:$0xff]
                  %1399 = vst [vmem:[%s1385 + $0x30] sm:$0xff] %v1398
                  %v1400 = vld [vmem:[%s1384 + $0x38] sm:$0xff]
                  %1401 = vst [vmem:[%s1385 + $0x38] sm:$0xff] %v1400
                  %v1402 = vld [vmem:[%s1384 + $0x40] sm:$0xff]
                  %1403 = vst [vmem:[%s1385 + $0x40] sm:$0xff] %v1402
                  %v1404 = vld [vmem:[%s1384 + $0x48] sm:$0xff]
                  %1405 = vst [vmem:[%s1385 + $0x48] sm:$0xff] %v1404
                  %v1406 = vld [vmem:[%s1384 + $0x50] sm:$0xff]
                  %1407 = vst [vmem:[%s1385 + $0x50] sm:$0xff] %v1406
                  %v1408 = vld [vmem:[%s1384 + $0x58] sm:$0xff]
                  %1409 = vst [vmem:[%s1385 + $0x58] sm:$0xff] %v1408
                  %v1410 = vld [vmem:[%s1384 + $0x60] sm:$0xff]
                  %1411 = vst [vmem:[%s1385 + $0x60] sm:$0xff] %v1410
                  %v1412 = vld [vmem:[%s1384 + $0x68] sm:$0xff]
                  %1413 = vst [vmem:[%s1385 + $0x68] sm:$0xff] %v1412
                  %v1414 = vld [vmem:[%s1384 + $0x70] sm:$0xff]
                  %1415 = vst [vmem:[%s1385 + $0x70] sm:$0xff] %v1414
                  %v1416 = vld [vmem:[%s1384 + $0x78] sm:$0xff]
                  %1417 = vst [vmem:[%s1385 + $0x78] sm:$0xff] %v1416
                  %v1418 = vld [vmem:[%s1384 + $0x80] sm:$0xff]
                  %1419 = vst [vmem:[%s1385 + $0x100] sm:$0xff] %v1418
                  %v1420 = vld [vmem:[%s1384 + $0x88] sm:$0xff]
                  %1421 = vst [vmem:[%s1385 + $0x108] sm:$0xff] %v1420
                  %v1422 = vld [vmem:[%s1384 + $0x90] sm:$0xff]
                  %1423 = vst [vmem:[%s1385 + $0x110] sm:$0xff] %v1422
                  %v1424 = vld [vmem:[%s1384 + $0x98] sm:$0xff]
                  %1425 = vst [vmem:[%s1385 + $0x118] sm:$0xff] %v1424
                  %v1426 = vld [vmem:[%s1384 + $0xa0] sm:$0xff]
                  %1427 = vst [vmem:[%s1385 + $0x120] sm:$0xff] %v1426
                  %v1428 = vld [vmem:[%s1384 + $0xa8] sm:$0xff]
                  %1429 = vst [vmem:[%s1385 + $0x128] sm:$0xff] %v1428
                  %v1430 = vld [vmem:[%s1384 + $0xb0] sm:$0xff]
                  %1431 = vst [vmem:[%s1385 + $0x130] sm:$0xff] %v1430
                  %v1432 = vld [vmem:[%s1384 + $0xb8] sm:$0xff]
                  %1433 = vst [vmem:[%s1385 + $0x138] sm:$0xff] %v1432
                  %v1434 = vld [vmem:[%s1384 + $0xc0] sm:$0xff]
                  %1435 = vst [vmem:[%s1385 + $0x140] sm:$0xff] %v1434
                  %v1436 = vld [vmem:[%s1384 + $0xc8] sm:$0xff]
                  %1437 = vst [vmem:[%s1385 + $0x148] sm:$0xff] %v1436
                  %v1438 = vld [vmem:[%s1384 + $0xd0] sm:$0xff]
                  %1439 = vst [vmem:[%s1385 + $0x150] sm:$0xff] %v1438
                  %v1440 = vld [vmem:[%s1384 + $0xd8] sm:$0xff]
                  %1441 = vst [vmem:[%s1385 + $0x158] sm:$0xff] %v1440
                  %v1442 = vld [vmem:[%s1384 + $0xe0] sm:$0xff]
                  %1443 = vst [vmem:[%s1385 + $0x160] sm:$0xff] %v1442
                  %v1444 = vld [vmem:[%s1384 + $0xe8] sm:$0xff]
                  %1445 = vst [vmem:[%s1385 + $0x168] sm:$0xff] %v1444
                  %v1446 = vld [vmem:[%s1384 + $0xf0] sm:$0xff]
                  %1447 = vst [vmem:[%s1385 + $0x170] sm:$0xff] %v1446
                  %v1448 = vld [vmem:[%s1384 + $0xf8] sm:$0xff]
                  %1449 = vst [vmem:[%s1385 + $0x178] sm:$0xff] %v1448
                  %v1450 = vld [vmem:[%s1384 + $0x100] sm:$0xff]
                  %1451 = vst [vmem:[%s1385 + $0x200] sm:$0xff] %v1450
                  %v1452 = vld [vmem:[%s1384 + $0x108] sm:$0xff]
                  %1453 = vst [vmem:[%s1385 + $0x208] sm:$0xff] %v1452
                  %v1454 = vld [vmem:[%s1384 + $0x110] sm:$0xff]
                  %1455 = vst [vmem:[%s1385 + $0x210] sm:$0xff] %v1454
                  %v1456 = vld [vmem:[%s1384 + $0x118] sm:$0xff]
                  %1457 = vst [vmem:[%s1385 + $0x218] sm:$0xff] %v1456
                  %v1458 = vld [vmem:[%s1384 + $0x120] sm:$0xff]
                  %1459 = vst [vmem:[%s1385 + $0x220] sm:$0xff] %v1458
                  %v1460 = vld [vmem:[%s1384 + $0x128] sm:$0xff]
                  %1461 = vst [vmem:[%s1385 + $0x228] sm:$0xff] %v1460
                  %v1462 = vld [vmem:[%s1384 + $0x130] sm:$0xff]
                  %1463 = vst [vmem:[%s1385 + $0x230] sm:$0xff] %v1462
                  %v1464 = vld [vmem:[%s1384 + $0x138] sm:$0xff]
                  %1465 = vst [vmem:[%s1385 + $0x238] sm:$0xff] %v1464
                  %v1466 = vld [vmem:[%s1384 + $0x140] sm:$0xff]
                  %1467 = vst [vmem:[%s1385 + $0x240] sm:$0xff] %v1466
                  %v1468 = vld [vmem:[%s1384 + $0x148] sm:$0xff]
                  %1469 = vst [vmem:[%s1385 + $0x248] sm:$0xff] %v1468
                  %v1470 = vld [vmem:[%s1384 + $0x150] sm:$0xff]
                  %1471 = vst [vmem:[%s1385 + $0x250] sm:$0xff] %v1470
                  %v1472 = vld [vmem:[%s1384 + $0x158] sm:$0xff]
                  %1473 = vst [vmem:[%s1385 + $0x258] sm:$0xff] %v1472
                  %v1474 = vld [vmem:[%s1384 + $0x160] sm:$0xff]
                  %1475 = vst [vmem:[%s1385 + $0x260] sm:$0xff] %v1474
                  %v1476 = vld [vmem:[%s1384 + $0x168] sm:$0xff]
                  %1477 = vst [vmem:[%s1385 + $0x268] sm:$0xff] %v1476
                  %v1478 = vld [vmem:[%s1384 + $0x170] sm:$0xff]
                  %1479 = vst [vmem:[%s1385 + $0x270] sm:$0xff] %v1478
                  %v1480 = vld [vmem:[%s1384 + $0x178] sm:$0xff]
                  %1481 = vst [vmem:[%s1385 + $0x278] sm:$0xff] %v1480
                  %v1482 = vld [vmem:[%s1384 + $0x180] sm:$0xff]
                  %1483 = vst [vmem:[%s1385 + $0x300] sm:$0xff] %v1482
                  %v1484 = vld [vmem:[%s1384 + $0x188] sm:$0xff]
                  %1485 = vst [vmem:[%s1385 + $0x308] sm:$0xff] %v1484
                  %v1486 = vld [vmem:[%s1384 + $0x190] sm:$0xff]
                  %1487 = vst [vmem:[%s1385 + $0x310] sm:$0xff] %v1486
                  %v1488 = vld [vmem:[%s1384 + $0x198] sm:$0xff]
                  %1489 = vst [vmem:[%s1385 + $0x318] sm:$0xff] %v1488
                  %v1490 = vld [vmem:[%s1384 + $0x1a0] sm:$0xff]
                  %1491 = vst [vmem:[%s1385 + $0x320] sm:$0xff] %v1490
                  %v1492 = vld [vmem:[%s1384 + $0x1a8] sm:$0xff]
                  %1493 = vst [vmem:[%s1385 + $0x328] sm:$0xff] %v1492
                  %v1494 = vld [vmem:[%s1384 + $0x1b0] sm:$0xff]
                  %1495 = vst [vmem:[%s1385 + $0x330] sm:$0xff] %v1494
                  %v1496 = vld [vmem:[%s1384 + $0x1b8] sm:$0xff]
                  %1497 = vst [vmem:[%s1385 + $0x338] sm:$0xff] %v1496
                  %v1498 = vld [vmem:[%s1384 + $0x1c0] sm:$0xff]
                  %1499 = vst [vmem:[%s1385 + $0x340] sm:$0xff] %v1498
                  %v1500 = vld [vmem:[%s1384 + $0x1c8] sm:$0xff]
                  %1501 = vst [vmem:[%s1385 + $0x348] sm:$0xff] %v1500
                  %v1502 = vld [vmem:[%s1384 + $0x1d0] sm:$0xff]
                  %1503 = vst [vmem:[%s1385 + $0x350] sm:$0xff] %v1502
                  %v1504 = vld [vmem:[%s1384 + $0x1d8] sm:$0xff]
                  %1505 = vst [vmem:[%s1385 + $0x358] sm:$0xff] %v1504
                  %v1506 = vld [vmem:[%s1384 + $0x1e0] sm:$0xff]
                  %1507 = vst [vmem:[%s1385 + $0x360] sm:$0xff] %v1506
                  %v1508 = vld [vmem:[%s1384 + $0x1e8] sm:$0xff]
                  %1509 = vst [vmem:[%s1385 + $0x368] sm:$0xff] %v1508
                  %v1510 = vld [vmem:[%s1384 + $0x1f0] sm:$0xff]
                  %1511 = vst [vmem:[%s1385 + $0x370] sm:$0xff] %v1510
                  %v1512 = vld [vmem:[%s1384 + $0x1f8] sm:$0xff]
                  %1513 = vst [vmem:[%s1385 + $0x378] sm:$0xff] %v1512
                $region76: #{up_forward.3} parent=70 // loop_footer
                  %s1383 = sadd.s32 1, %s1379
                $region77: #{up_forward.3} parent=70 // loop_footer_branch
                  %1378 = sbr.rel target = $region73
                $region78: #{up_forward.3} parent=70 // loop_exit
                  _
              $region71: #{up_forward.3} parent=55 // pred_fallthru
                _
              // Predicated region
              $region79: #{up_forward.3} parent=55 // pred_check
                _
              $region80: #{up_forward.3} parent=55 // pred_check_branch
                %1515 = sbr.rel target = $region82
              $region81: #{up_forward.3} parent=55 // pred_region
                _
              $region82: #{up_forward.3} parent=55 // pred_fallthru
                _
            $region56: #{up_forward.3} parent=51 // pred_fallthru
              _
            // Predicated region
            $region57: #{up_forward.3} parent=51 // pred_check
              _
            $region58: #{up_forward.3} parent=51 // pred_check_branch
              %1238 = sbr.rel target = $region60
            $region59: #{up_forward.3} parent=51 // pred_region
              loop: start=0, step=1, limit=1
              $region61: #{up_forward.3} parent=59 // loop_pre_header
                _
              $region62: #{up_forward.3} parent=59 // loop_header
                %s1241 = sphi 0, %s1245
                %p1242 = scmp.ge.s32.totalorder %s1241, 1
                %s1246 = sphi %s1222, %s1222
                %s1247 = sphi %s1232, %s1232
              $region63: #{up_forward.3} parent=59 // loop_header_branch
                %1244 = sbr.rel (%p1242) target = $region67
              $region64: #{up_forward.3} parent=59 // loop_body
                %v1248 = vld [vmem:[%s1246] sm:$0xff]
                %1249 = vst [vmem:[%s1247] sm:$0xff] %v1248
                %v1250 = vld [vmem:[%s1246 + $0x8] sm:$0xff]
                %1251 = vst [vmem:[%s1247 + $0x8] sm:$0xff] %v1250
                %v1252 = vld [vmem:[%s1246 + $0x10] sm:$0xff]
                %1253 = vst [vmem:[%s1247 + $0x10] sm:$0xff] %v1252
                %v1254 = vld [vmem:[%s1246 + $0x18] sm:$0xff]
                %1255 = vst [vmem:[%s1247 + $0x18] sm:$0xff] %v1254
                %v1256 = vld [vmem:[%s1246 + $0x20] sm:$0xff]
                %1257 = vst [vmem:[%s1247 + $0x20] sm:$0xff] %v1256
                %v1258 = vld [vmem:[%s1246 + $0x28] sm:$0xff]
                %1259 = vst [vmem:[%s1247 + $0x28] sm:$0xff] %v1258
                %v1260 = vld [vmem:[%s1246 + $0x30] sm:$0xff]
                %1261 = vst [vmem:[%s1247 + $0x30] sm:$0xff] %v1260
                %v1262 = vld [vmem:[%s1246 + $0x38] sm:$0xff]
                %1263 = vst [vmem:[%s1247 + $0x38] sm:$0xff] %v1262
                %v1264 = vld [vmem:[%s1246 + $0x40] sm:$0xff]
                %1265 = vst [vmem:[%s1247 + $0x40] sm:$0xff] %v1264
                %v1266 = vld [vmem:[%s1246 + $0x48] sm:$0xff]
                %1267 = vst [vmem:[%s1247 + $0x48] sm:$0xff] %v1266
                %v1268 = vld [vmem:[%s1246 + $0x50] sm:$0xff]
                %1269 = vst [vmem:[%s1247 + $0x50] sm:$0xff] %v1268
                %v1270 = vld [vmem:[%s1246 + $0x58] sm:$0xff]
                %1271 = vst [vmem:[%s1247 + $0x58] sm:$0xff] %v1270
                %v1272 = vld [vmem:[%s1246 + $0x60] sm:$0xff]
                %1273 = vst [vmem:[%s1247 + $0x60] sm:$0xff] %v1272
                %v1274 = vld [vmem:[%s1246 + $0x68] sm:$0xff]
                %1275 = vst [vmem:[%s1247 + $0x68] sm:$0xff] %v1274
                %v1276 = vld [vmem:[%s1246 + $0x70] sm:$0xff]
                %1277 = vst [vmem:[%s1247 + $0x70] sm:$0xff] %v1276
                %v1278 = vld [vmem:[%s1246 + $0x78] sm:$0xff]
                %1279 = vst [vmem:[%s1247 + $0x78] sm:$0xff] %v1278
                %v1280 = vld [vmem:[%s1246 + $0x80] sm:$0xff]
                %1281 = vst [vmem:[%s1247 + $0x100] sm:$0xff] %v1280
                %v1282 = vld [vmem:[%s1246 + $0x88] sm:$0xff]
                %1283 = vst [vmem:[%s1247 + $0x108] sm:$0xff] %v1282
                %v1284 = vld [vmem:[%s1246 + $0x90] sm:$0xff]
                %1285 = vst [vmem:[%s1247 + $0x110] sm:$0xff] %v1284
                %v1286 = vld [vmem:[%s1246 + $0x98] sm:$0xff]
                %1287 = vst [vmem:[%s1247 + $0x118] sm:$0xff] %v1286
                %v1288 = vld [vmem:[%s1246 + $0xa0] sm:$0xff]
                %1289 = vst [vmem:[%s1247 + $0x120] sm:$0xff] %v1288
                %v1290 = vld [vmem:[%s1246 + $0xa8] sm:$0xff]
                %1291 = vst [vmem:[%s1247 + $0x128] sm:$0xff] %v1290
                %v1292 = vld [vmem:[%s1246 + $0xb0] sm:$0xff]
                %1293 = vst [vmem:[%s1247 + $0x130] sm:$0xff] %v1292
                %v1294 = vld [vmem:[%s1246 + $0xb8] sm:$0xff]
                %1295 = vst [vmem:[%s1247 + $0x138] sm:$0xff] %v1294
                %v1296 = vld [vmem:[%s1246 + $0xc0] sm:$0xff]
                %1297 = vst [vmem:[%s1247 + $0x140] sm:$0xff] %v1296
                %v1298 = vld [vmem:[%s1246 + $0xc8] sm:$0xff]
                %1299 = vst [vmem:[%s1247 + $0x148] sm:$0xff] %v1298
                %v1300 = vld [vmem:[%s1246 + $0xd0] sm:$0xff]
                %1301 = vst [vmem:[%s1247 + $0x150] sm:$0xff] %v1300
                %v1302 = vld [vmem:[%s1246 + $0xd8] sm:$0xff]
                %1303 = vst [vmem:[%s1247 + $0x158] sm:$0xff] %v1302
                %v1304 = vld [vmem:[%s1246 + $0xe0] sm:$0xff]
                %1305 = vst [vmem:[%s1247 + $0x160] sm:$0xff] %v1304
                %v1306 = vld [vmem:[%s1246 + $0xe8] sm:$0xff]
                %1307 = vst [vmem:[%s1247 + $0x168] sm:$0xff] %v1306
                %v1308 = vld [vmem:[%s1246 + $0xf0] sm:$0xff]
                %1309 = vst [vmem:[%s1247 + $0x170] sm:$0xff] %v1308
                %v1310 = vld [vmem:[%s1246 + $0xf8] sm:$0xff]
                %1311 = vst [vmem:[%s1247 + $0x178] sm:$0xff] %v1310
                %v1312 = vld [vmem:[%s1246 + $0x100] sm:$0xff]
                %1313 = vst [vmem:[%s1247 + $0x200] sm:$0xff] %v1312
                %v1314 = vld [vmem:[%s1246 + $0x108] sm:$0xff]
                %1315 = vst [vmem:[%s1247 + $0x208] sm:$0xff] %v1314
                %v1316 = vld [vmem:[%s1246 + $0x110] sm:$0xff]
                %1317 = vst [vmem:[%s1247 + $0x210] sm:$0xff] %v1316
                %v1318 = vld [vmem:[%s1246 + $0x118] sm:$0xff]
                %1319 = vst [vmem:[%s1247 + $0x218] sm:$0xff] %v1318
                %v1320 = vld [vmem:[%s1246 + $0x120] sm:$0xff]
                %1321 = vst [vmem:[%s1247 + $0x220] sm:$0xff] %v1320
                %v1322 = vld [vmem:[%s1246 + $0x128] sm:$0xff]
                %1323 = vst [vmem:[%s1247 + $0x228] sm:$0xff] %v1322
                %v1324 = vld [vmem:[%s1246 + $0x130] sm:$0xff]
                %1325 = vst [vmem:[%s1247 + $0x230] sm:$0xff] %v1324
                %v1326 = vld [vmem:[%s1246 + $0x138] sm:$0xff]
                %1327 = vst [vmem:[%s1247 + $0x238] sm:$0xff] %v1326
                %v1328 = vld [vmem:[%s1246 + $0x140] sm:$0xff]
                %1329 = vst [vmem:[%s1247 + $0x240] sm:$0xff] %v1328
                %v1330 = vld [vmem:[%s1246 + $0x148] sm:$0xff]
                %1331 = vst [vmem:[%s1247 + $0x248] sm:$0xff] %v1330
                %v1332 = vld [vmem:[%s1246 + $0x150] sm:$0xff]
                %1333 = vst [vmem:[%s1247 + $0x250] sm:$0xff] %v1332
                %v1334 = vld [vmem:[%s1246 + $0x158] sm:$0xff]
                %1335 = vst [vmem:[%s1247 + $0x258] sm:$0xff] %v1334
                %v1336 = vld [vmem:[%s1246 + $0x160] sm:$0xff]
                %1337 = vst [vmem:[%s1247 + $0x260] sm:$0xff] %v1336
                %v1338 = vld [vmem:[%s1246 + $0x168] sm:$0xff]
                %1339 = vst [vmem:[%s1247 + $0x268] sm:$0xff] %v1338
                %v1340 = vld [vmem:[%s1246 + $0x170] sm:$0xff]
                %1341 = vst [vmem:[%s1247 + $0x270] sm:$0xff] %v1340
                %v1342 = vld [vmem:[%s1246 + $0x178] sm:$0xff]
                %1343 = vst [vmem:[%s1247 + $0x278] sm:$0xff] %v1342
                %v1344 = vld [vmem:[%s1246 + $0x180] sm:$0xff]
                %1345 = vst [vmem:[%s1247 + $0x300] sm:$0xff] %v1344
                %v1346 = vld [vmem:[%s1246 + $0x188] sm:$0xff]
                %1347 = vst [vmem:[%s1247 + $0x308] sm:$0xff] %v1346
                %v1348 = vld [vmem:[%s1246 + $0x190] sm:$0xff]
                %1349 = vst [vmem:[%s1247 + $0x310] sm:$0xff] %v1348
                %v1350 = vld [vmem:[%s1246 + $0x198] sm:$0xff]
                %1351 = vst [vmem:[%s1247 + $0x318] sm:$0xff] %v1350
                %v1352 = vld [vmem:[%s1246 + $0x1a0] sm:$0xff]
                %1353 = vst [vmem:[%s1247 + $0x320] sm:$0xff] %v1352
                %v1354 = vld [vmem:[%s1246 + $0x1a8] sm:$0xff]
                %1355 = vst [vmem:[%s1247 + $0x328] sm:$0xff] %v1354
                %v1356 = vld [vmem:[%s1246 + $0x1b0] sm:$0xff]
                %1357 = vst [vmem:[%s1247 + $0x330] sm:$0xff] %v1356
                %v1358 = vld [vmem:[%s1246 + $0x1b8] sm:$0xff]
                %1359 = vst [vmem:[%s1247 + $0x338] sm:$0xff] %v1358
                %v1360 = vld [vmem:[%s1246 + $0x1c0] sm:$0xff]
                %1361 = vst [vmem:[%s1247 + $0x340] sm:$0xff] %v1360
                %v1362 = vld [vmem:[%s1246 + $0x1c8] sm:$0xff]
                %1363 = vst [vmem:[%s1247 + $0x348] sm:$0xff] %v1362
                %v1364 = vld [vmem:[%s1246 + $0x1d0] sm:$0xff]
                %1365 = vst [vmem:[%s1247 + $0x350] sm:$0xff] %v1364
                %v1366 = vld [vmem:[%s1246 + $0x1d8] sm:$0xff]
                %1367 = vst [vmem:[%s1247 + $0x358] sm:$0xff] %v1366
                %v1368 = vld [vmem:[%s1246 + $0x1e0] sm:$0xff]
                %1369 = vst [vmem:[%s1247 + $0x360] sm:$0xff] %v1368
                %v1370 = vld [vmem:[%s1246 + $0x1e8] sm:$0xff]
                %1371 = vst [vmem:[%s1247 + $0x368] sm:$0xff] %v1370
                %v1372 = vld [vmem:[%s1246 + $0x1f0] sm:$0xff]
                %1373 = vst [vmem:[%s1247 + $0x370] sm:$0xff] %v1372
                %v1374 = vld [vmem:[%s1246 + $0x1f8] sm:$0xff]
                %1375 = vst [vmem:[%s1247 + $0x378] sm:$0xff] %v1374
              $region65: #{up_forward.3} parent=59 // loop_footer
                %s1245 = sadd.s32 1, %s1241
              $region66: #{up_forward.3} parent=59 // loop_footer_branch
                %1240 = sbr.rel target = $region62
              $region67: #{up_forward.3} parent=59 // loop_exit
                _
            $region60: #{up_forward.3} parent=51 // pred_fallthru
              _
          $region52: #{up_forward.3} parent=47 // pred_fallthru
            _
          %1516 = vnop
        $region48: #{up_forward.3} parent=43 // pred_fallthru
          _
      $region44: #{up_forward.3} parent=5 // pred_fallthru
        _
      %p1517 = scmp.le.s32.totalorder 2, %s12
      // Predicated region
      $region83: #{up_forward.3} parent=5 // pred_check
        %p1518 = pneg %p1517
      $region84: #{up_forward.3} parent=5 // pred_check_branch
        %1520 = sbr.rel (%p1518) target = $region86
      $region85: #{up_forward.3} parent=5 // pred_region
        %s1521 = ssub.s32 %s12, 2
        // Predicated region
        $region87: #{up_forward.3} parent=85 // pred_check
          %p1522 = pneg %p199
        $region88: #{up_forward.3} parent=85 // pred_check_branch
          %1524 = sbr.rel (%p1522) target = $region90
        $region89: #{up_forward.3} parent=85 // pred_region
          %s1525 = sand.u32 %s184, 1
          %s1526 = sand.u32 %s184, 1
          %s1527 = smul.addr %s1526, 512
          %s1528 = scalar_lea.vmem [#allocation2], %s1527
        $region90: #{up_forward.3} parent=85 // pred_fallthru
          _
      $region86: #{up_forward.3} parent=5 // pred_fallthru
        _
    $region6: #{up_forward.3} parent=1 // loop_footer
      %s16 = sadd.s32 1, %s12
    $region7: #{up_forward.3} parent=1 // loop_footer_branch
      %11 = sbr.rel target = $region3
    $region8: #{up_forward.3} parent=1 // loop_exit
      _

</llo_original>
